<compile_context>
chip_gen: v5e
topology: v5e:2x2
jax: 0.10.0
libtpu: 0.0.40
codegen_flags: <defaults>
</compile_context>

<pallas_src>
import jax
import jax.numpy as jnp
from jax.experimental import pallas as pl
from jax.experimental.pallas import tpu as pltpu

NUM_CLASSES = 3
BN_EPS = 1e-5
VMEM_LIMIT = 32 * 1024 * 1024


def _relu(t):
    return jnp.maximum(t, 0.0)


def _mm_bf16(w_ref, a):
    """MXU matmul: bf16 operands, f32 accumulation (weights pre-cast to bf16)."""
    return jnp.dot(w_ref[...], a.astype(jnp.bfloat16),
                   preferred_element_type=jnp.float32)


# -----------------------------------------------------------------------------
# Pass 1: conv1-3 per point tile, accumulate global max of x3 per batch.
# -----------------------------------------------------------------------------
def global_feat_kernel(x_ref,                     # (1, 3, T) f32
                       w1_ref, b1_ref,            # (64, 3) f32, (64, 1) f32
                       w2_ref, b2_ref,            # (128, 64) bf16, (128, 1) f32
                       w3_ref, b3_ref,            # (1024, 128) bf16, (1024, 1)
                       g_ref):                    # (1, 1024, 1) f32 accumulator
    t = pl.program_id(1)
    x = x_ref[0]                                                   # (3, T)
    # conv1 in f32 (K=3, negligible cost).
    x1 = _relu(jnp.dot(w1_ref[...], x, preferred_element_type=jnp.float32)
               + b1_ref[...])                                      # (64, T)
    x2 = _relu(_mm_bf16(w2_ref, x1) + b2_ref[...])                 # (128, T)
    x3 = _relu(_mm_bf16(w3_ref, x2) + b3_ref[...])                 # (1024, T)
    tile_max = jnp.max(x3, axis=1, keepdims=True)                  # (1024, 1)

    @pl.when(t == 0)
    def _():
        g_ref[...] = jnp.full_like(g_ref, -jnp.inf)

    g_ref[0] = jnp.maximum(g_ref[0], tile_max)


# -----------------------------------------------------------------------------
# Pass 2: conv1 (recomputed, cheap) + conv4-7 per point tile.
# -----------------------------------------------------------------------------
def seg_head_kernel(x_ref,                        # (1, 3, T) f32
                    bias4_ref,                    # (1, 512, 1) f32 (= g@W4b + b4)
                    w1_ref, b1_ref,               # (64, 3) f32, (64, 1) f32
                    w4a_ref,                      # (512, 64) bf16
                    w5_ref, b5_ref,               # (256, 512) bf16, (256, 1)
                    w6_ref, b6_ref,               # (128, 256) bf16, (128, 1)
                    w7_ref, b7_ref,               # (C, 128) bf16, (C, 1)
                    out_ref):                     # (1, C, T) f32, lane-dense
    x = x_ref[0]                                                   # (3, T)
    x1 = _relu(jnp.dot(w1_ref[...], x, preferred_element_type=jnp.float32)
               + b1_ref[...])                                      # (64, T)
    h = _relu(_mm_bf16(w4a_ref, x1) + bias4_ref[0])                # (512, T)
    h = _relu(_mm_bf16(w5_ref, h) + b5_ref[...])                   # (256, T)
    h = _relu(_mm_bf16(w6_ref, h) + b6_ref[...])                   # (128, T)
    out_ref[0] = _mm_bf16(w7_ref, h) + b7_ref[...]                 # (C, T)


# -----------------------------------------------------------------------------
# Host-side glue: BN folding, weight prep, pallas_call plumbing.
# -----------------------------------------------------------------------------
def fold_bn(w, b, gamma, beta, mean, var):
    """Fold eval-mode BatchNorm1d into a (Cout, Cin) conv weight + bias."""
    scale = gamma / jnp.sqrt(var + BN_EPS)                         # (Cout,)
    return w * scale[:, None], (b - mean) * scale + beta


def pointnet_seg_forward(x, params, *, tile_n=256):
    """x: (B, 3, N) float32 -> (B, num_classes, N) float32 (eval-mode BN)."""
    f32, bf16 = jnp.float32, jnp.bfloat16
    B, cin, N = x.shape
    assert cin == 3
    tile_n = min(tile_n, N)
    # TODO(synk): pad N and mask padded points out of the global max for ragged N.
    assert N % tile_n == 0, "N must be a multiple of tile_n"
    num_tiles = N // tile_n
    x = x.astype(f32)

    # Fold eval-mode BatchNorm into the 1x1 convs (weights are (Cout, Cin),
    # matching squeezed PyTorch Conv1d weights).
    w1, b1 = fold_bn(params["w1"], params["b1"], *params["bn1"])
    w2, b2 = fold_bn(params["w2"], params["b2"], *params["bn2"])
    w3, b3 = fold_bn(params["w3"], params["b3"], *params["bn3"])
    w4, b4 = fold_bn(params["w4"], params["b4"], *params["bn4"])
    w5, b5 = fold_bn(params["w5"], params["b5"], *params["bn5"])
    w6, b6 = fold_bn(params["w6"], params["b6"], *params["bn6"])
    w7, b7 = params["w7"], params["b7"]

    # conv4 on cat([x1, g]) == W4[:, :64] @ x1 + W4[:, 64:] @ g
    w4a = w4[:, :64]                                               # (512, 64)
    w4b = w4[:, 64:]                                               # (512, 1024)

    col = lambda v: v.reshape(-1, 1).astype(f32)                   # bias columns

    def full_spec(a):
        return pl.BlockSpec(a.shape, lambda b, t: (0,) * a.ndim)

    # ---------------- pass 1: global feature g = max_n x3 ----------------
    gf_weights = [w1.astype(f32), col(b1),
                  w2.astype(bf16), col(b2),
                  w3.astype(bf16), col(b3)]
    g = pl.pallas_call(
        global_feat_kernel,
        out_shape=jax.ShapeDtypeStruct((B, 1024, 1), f32),
        grid_spec=pltpu.PrefetchScalarGridSpec(
            num_scalar_prefetch=0,
            grid=(B, num_tiles),
            in_specs=[pl.BlockSpec((1, 3, tile_n), lambda b, t: (b, 0, t))]
                    + [full_spec(a) for a in gf_weights],
            out_specs=pl.BlockSpec((1, 1024, 1), lambda b, t: (b, 0, 0)),
        ),
        compiler_params=pltpu.CompilerParams(
            dimension_semantics=("parallel", "arbitrary"),
            vmem_limit_bytes=VMEM_LIMIT,
        ),
    )(x, *gf_weights)

    # Fold the conv4 global-feature contribution into a per-batch bias
    # (tiny (B,1024)x(1024,512) matmul; done once, not per tile).
    bias4 = jnp.einsum("bc,oc->bo",
                       g[:, :, 0].astype(bf16), w4b.astype(bf16),
                       preferred_element_type=f32) + b4[None, :]
    bias4 = bias4.reshape(B, 512, 1).astype(f32)

    # ---------------- pass 2: segmentation head ----------------
    sh_weights = [w1.astype(f32), col(b1),
                  w4a.astype(bf16),
                  w5.astype(bf16), col(b5),
                  w6.astype(bf16), col(b6),
                  w7.astype(bf16), col(b7)]
    out = pl.pallas_call(
        seg_head_kernel,
        out_shape=jax.ShapeDtypeStruct((B, NUM_CLASSES, N), f32),
        grid_spec=pltpu.PrefetchScalarGridSpec(
            num_scalar_prefetch=0,
            grid=(B, num_tiles),
            in_specs=[pl.BlockSpec((1, 3, tile_n), lambda b, t: (b, 0, t)),
                      pl.BlockSpec((1, 512, 1), lambda b, t: (b, 0, 0))]
                    + [full_spec(a) for a in sh_weights],
            out_specs=pl.BlockSpec((1, NUM_CLASSES, tile_n),
                                   lambda b, t: (b, 0, t)),
        ),
        compiler_params=pltpu.CompilerParams(
            dimension_semantics=("parallel", "parallel"),
            vmem_limit_bytes=VMEM_LIMIT,
        ),
    )(x, bias4, *sh_weights)
    return out


# -----------------------------------------------------------------------------
# Deterministic parameter init.  Conv1d(Cin, Cout, 1).weight is (Cout, Cin, 1);
# we store the squeezed (Cout, Cin) matrix directly (same layout as PyTorch).
# -----------------------------------------------------------------------------
def init_params(key):
    dims = [("1", 3, 64), ("2", 64, 128), ("3", 128, 1024),
            ("4", 1088, 512), ("5", 512, 256), ("6", 256, 128),
            ("7", 128, NUM_CLASSES)]
    params = {}
    for name, cin, cout in dims:
        key, kw, kb = jax.random.split(key, 3)
        scale = 1.0 / jnp.sqrt(jnp.float32(cin))
        params[f"w{name}"] = jax.random.uniform(
            kw, (cout, cin), jnp.float32, -scale, scale)
        params[f"b{name}"] = jax.random.uniform(
            kb, (cout,), jnp.float32, -scale, scale)

    bn_dims = {"bn1": 64, "bn2": 128, "bn3": 1024,
               "bn4": 512, "bn5": 256, "bn6": 128}
    for name, c in bn_dims.items():
        key, kg, kb, km, kv = jax.random.split(key, 5)
        gamma = 1.0 + 0.1 * jax.random.normal(kg, (c,), jnp.float32)
        beta = 0.1 * jax.random.normal(kb, (c,), jnp.float32)
        mean = 0.1 * jax.random.normal(km, (c,), jnp.float32)
        var = 1.0 + 0.1 * jax.random.uniform(kv, (c,), jnp.float32)
        params[name] = (gamma, beta, mean, var)
    return params


# -----------------------------------------------------------------------------
# Pure-JAX reference (literal PyTorch structure incl. the 1088-wide concat),
# using the same operand dtypes (conv1 f32, convs 2-7 bf16-operand / f32-acc).
# -----------------------------------------------------------------------------
def reference_forward(x, params):
    f32, bf16 = jnp.float32, jnp.bfloat16
    w1, b1 = fold_bn(params["w1"], params["b1"], *params["bn1"])
    w2, b2 = fold_bn(params["w2"], params["b2"], *params["bn2"])
    w3, b3 = fold_bn(params["w3"], params["b3"], *params["bn3"])
    w4, b4 = fold_bn(params["w4"], params["b4"], *params["bn4"])
    w5, b5 = fold_bn(params["w5"], params["b5"], *params["bn5"])
    w6, b6 = fold_bn(params["w6"], params["b6"], *params["bn6"])

    def conv_f32(w, b, a):
        y = jnp.einsum("oc,bcn->bon", w, a, preferred_element_type=f32,
                       precision=jax.lax.Precision.HIGHEST)
        return y + b[None, :, None]

    def conv_bf16(w, b, a):
        y = jnp.einsum("oc,bcn->bon", w.astype(bf16), a.astype(bf16),
                       preferred_element_type=f32)
        return y + b[None, :, None]

    relu = jax.nn.relu
    x = x.astype(f32)
    B, _, N = x.shape
    x1 = relu(conv_f32(w1, b1, x))                                 # (B, 64, N)
    x2 = relu(conv_bf16(w2, b2, x1))                               # (B, 128, N)
    x3 = relu(conv_bf16(w3, b3, x2))                               # (B, 1024, N)
    g = jnp.max(x3, axis=2, keepdims=True)                         # (B, 1024, 1)
    cat = jnp.concatenate([x1, jnp.broadcast_to(g, (B, 1024, N))], axis=1)
    h = relu(conv_bf16(w4, b4, cat))
    h = relu(conv_bf16(w5, b5, h))
    h = relu(conv_bf16(w6, b6, h))
    return conv_bf16(params["w7"], params["b7"], h)                # (B, C, N)


if __name__ == "__main__":
    key = jax.random.PRNGKey(0)
    key, kx, kp = jax.random.split(key, 3)

    B, N = 2, 512                                  # (B, 3, N) point clouds
    x = jax.random.normal(kx, (B, 3, N), jnp.float32)
    params = init_params(kp)

    out = jax.block_until_ready(pointnet_seg_forward(x, params, tile_n=256))
    ref = jax.block_until_ready(reference_forward(x, params))

    assert out.shape == (B, NUM_CLASSES, N)
    max_diff = float(jnp.max(jnp.abs(out - ref)))
    assert jnp.allclose(out, ref, atol=2e-3, rtol=2e-3), max_diff
    print("KERNEL_OK")
</pallas_src>

<mosaic_0001>
module attributes {stable_mosaic.version = 11 : i64} {
  func.func @global_feat_kernel(%arg0: i32, %arg1: i32, %arg2: memref<1x3x256xf32, #tpu.memory_space<vmem>>, %arg3: memref<64x3xf32, #tpu.memory_space<vmem>>, %arg4: memref<64x1xf32, #tpu.memory_space<vmem>>, %arg5: memref<128x64xbf16, #tpu.memory_space<vmem>>, %arg6: memref<128x1xf32, #tpu.memory_space<vmem>>, %arg7: memref<1024x128xbf16, #tpu.memory_space<vmem>>, %arg8: memref<1024x1xf32, #tpu.memory_space<vmem>>, %arg9: memref<1x1024x1xf32, #tpu.memory_space<vmem>>) attributes {dimension_semantics = [#tpu.dimension_semantics<parallel>, #tpu.dimension_semantics<arbitrary>], iteration_bounds = array<i64: 2, 2>, scalar_prefetch = 0 : i64, scratch_operands = 0 : i64, tpu.core_type = #tpu.core_type<tc>, window_params = [{transform_indices = @transform_0, window_bounds = array<i64: 1, 3, 256>}, {pipeline_mode = #tpu.pipeline_mode<synchronous>, transform_indices = @transform_1, window_bounds = array<i64: 64, 3>}, {pipeline_mode = #tpu.pipeline_mode<synchronous>, transform_indices = @transform_2, window_bounds = array<i64: 64, 1>}, {pipeline_mode = #tpu.pipeline_mode<synchronous>, transform_indices = @transform_3, window_bounds = array<i64: 128, 64>}, {pipeline_mode = #tpu.pipeline_mode<synchronous>, transform_indices = @transform_4, window_bounds = array<i64: 128, 1>}, {pipeline_mode = #tpu.pipeline_mode<synchronous>, transform_indices = @transform_5, window_bounds = array<i64: 1024, 128>}, {pipeline_mode = #tpu.pipeline_mode<synchronous>, transform_indices = @transform_6, window_bounds = array<i64: 1024, 1>}, {transform_indices = @transform_7, window_bounds = array<i64: 1, 1024, 1>}]} {
    %c0 = arith.constant 0 : index
    %c0_0 = arith.constant 0 : index
    %c0_1 = arith.constant 0 : index
    %0 = vector.load %arg2[%c0, %c0_0, %c0_1] : memref<1x3x256xf32, #tpu.memory_space<vmem>>, vector<1x3x256xf32>
    %1 = vector.shape_cast %0 : vector<1x3x256xf32> to vector<3x256xf32>
    %c0_2 = arith.constant 0 : index
    %c0_3 = arith.constant 0 : index
    %2 = vector.load %arg3[%c0_2, %c0_3] : memref<64x3xf32, #tpu.memory_space<vmem>>, vector<64x3xf32>
    %cst = arith.constant dense<0.000000e+00> : vector<64x256xf32>
    %3 = tpu.matmul %2, %1, %cst {dimension_numbers = #tpu.dot_dimension_numbers<[1], [0], [0], [1], [0, 0, 1, 1], [], []>} : vector<64x3xf32>, vector<3x256xf32>, vector<64x256xf32> -> vector<64x256xf32>
    %c0_4 = arith.constant 0 : index
    %c0_5 = arith.constant 0 : index
    %4 = vector.load %arg4[%c0_4, %c0_5] : memref<64x1xf32, #tpu.memory_space<vmem>>, vector<64x1xf32>
    %5 = vector.broadcast %4 : vector<64x1xf32> to vector<64x256xf32>
    %6 = arith.addf %3, %5 : vector<64x256xf32>
    %cst_6 = arith.constant 0.000000e+00 : f32
    %7 = vector.broadcast %cst_6 : f32 to vector<64x256xf32>
    %8 = arith.maximumf %6, %7 : vector<64x256xf32>
    %c0_7 = arith.constant 0 : index
    %c0_8 = arith.constant 0 : index
    %9 = vector.load %arg5[%c0_7, %c0_8] : memref<128x64xbf16, #tpu.memory_space<vmem>>, vector<128x64xbf16>
    %10 = arith.truncf %8 : vector<64x256xf32> to vector<64x256xbf16>
    %cst_9 = arith.constant dense<0.000000e+00> : vector<128x256xf32>
    %11 = tpu.matmul %9, %10, %cst_9 {dimension_numbers = #tpu.dot_dimension_numbers<[1], [0], [0], [1], [0, 0, 1, 1], [], []>} : vector<128x64xbf16>, vector<64x256xbf16>, vector<128x256xf32> -> vector<128x256xf32>
    %c0_10 = arith.constant 0 : index
    %c0_11 = arith.constant 0 : index
    %12 = vector.load %arg6[%c0_10, %c0_11] : memref<128x1xf32, #tpu.memory_space<vmem>>, vector<128x1xf32>
    %13 = vector.broadcast %12 : vector<128x1xf32> to vector<128x256xf32>
    %14 = arith.addf %11, %13 : vector<128x256xf32>
    %cst_12 = arith.constant 0.000000e+00 : f32
    %15 = vector.broadcast %cst_12 : f32 to vector<128x256xf32>
    %16 = arith.maximumf %14, %15 : vector<128x256xf32>
    %c0_13 = arith.constant 0 : index
    %c0_14 = arith.constant 0 : index
    %17 = vector.load %arg7[%c0_13, %c0_14] : memref<1024x128xbf16, #tpu.memory_space<vmem>>, vector<1024x128xbf16>
    %18 = arith.truncf %16 : vector<128x256xf32> to vector<128x256xbf16>
    %cst_15 = arith.constant dense<0.000000e+00> : vector<1024x256xf32>
    %19 = tpu.matmul %17, %18, %cst_15 {dimension_numbers = #tpu.dot_dimension_numbers<[1], [0], [0], [1], [0, 0, 1, 1], [], []>} : vector<1024x128xbf16>, vector<128x256xbf16>, vector<1024x256xf32> -> vector<1024x256xf32>
    %c0_16 = arith.constant 0 : index
    %c0_17 = arith.constant 0 : index
    %20 = vector.load %arg8[%c0_16, %c0_17] : memref<1024x1xf32, #tpu.memory_space<vmem>>, vector<1024x1xf32>
    %21 = vector.broadcast %20 : vector<1024x1xf32> to vector<1024x256xf32>
    %22 = arith.addf %19, %21 : vector<1024x256xf32>
    %cst_18 = arith.constant 0.000000e+00 : f32
    %23 = vector.broadcast %cst_18 : f32 to vector<1024x256xf32>
    %24 = arith.maximumf %22, %23 : vector<1024x256xf32>
    %cst_19 = arith.constant dense<0xFF800000> : vector<1024xf32>
    %25 = vector.multi_reduction <maximumf>, %24, %cst_19 [1] : vector<1024x256xf32> to vector<1024xf32>
    %26 = vector.shape_cast %25 : vector<1024xf32> to vector<1024x1xf32>
    %c0_i32 = arith.constant 0 : i32
    %27 = arith.cmpi eq, %arg1, %c0_i32 : i32
    %28 = arith.extui %27 : i1 to i32
    %c0_i32_20 = arith.constant 0 : i32
    %29 = arith.cmpi ne, %28, %c0_i32_20 : i32
    scf.if %29 {
      %cst_27 = arith.constant 0xFF800000 : f32
      %36 = vector.broadcast %cst_27 : f32 to vector<1x1024x1xf32>
      %c0_28 = arith.constant 0 : index
      %c0_29 = arith.constant 0 : index
      %c0_30 = arith.constant 0 : index
      %37 = vector.load %arg9[%c0_28, %c0_29, %c0_30] : memref<1x1024x1xf32, #tpu.memory_space<vmem>>, vector<1x1024x1xf32>
      tpu.vector_store %arg9[%c0_28, %c0_29, %c0_30], %36 {strides = array<i32>} : memref<1x1024x1xf32, #tpu.memory_space<vmem>>, vector<1x1024x1xf32>,
    } else {
    }
    %c0_21 = arith.constant 0 : index
    %c0_22 = arith.constant 0 : index
    %c0_23 = arith.constant 0 : index
    %30 = vector.load %arg9[%c0_21, %c0_22, %c0_23] : memref<1x1024x1xf32, #tpu.memory_space<vmem>>, vector<1x1024x1xf32>
    %31 = vector.shape_cast %30 : vector<1x1024x1xf32> to vector<1024x1xf32>
    %32 = arith.maximumf %31, %26 : vector<1024x1xf32>
    %c0_24 = arith.constant 0 : index
    %c0_25 = arith.constant 0 : index
    %c0_26 = arith.constant 0 : index
    %33 = vector.load %arg9[%c0_24, %c0_25, %c0_26] : memref<1x1024x1xf32, #tpu.memory_space<vmem>>, vector<1x1024x1xf32>
    %34 = vector.shape_cast %33 : vector<1x1024x1xf32> to vector<1024x1xf32>
    %35 = vector.shape_cast %32 : vector<1024x1xf32> to vector<1x1024x1xf32>
    tpu.vector_store %arg9[%c0_24, %c0_25, %c0_26], %35 {strides = array<i32>} : memref<1x1024x1xf32, #tpu.memory_space<vmem>>, vector<1x1024x1xf32>,
    return
  }
  func.func @transform_0(%arg0: i32, %arg1: i32) -> (i32, i32, i32) {
    %c0_i32 = arith.constant 0 : i32
    %c0_i32_0 = arith.constant 0 : i32
    return %arg0, %c0_i32, %arg1 : i32, i32, i32
  }
  func.func @transform_1(%arg0: i32, %arg1: i32) -> (i32, i32) {
    %c0_i32 = arith.constant 0 : i32
    %c0_i32_0 = arith.constant 0 : i32
    %c0_i32_1 = arith.constant 0 : i32
    return %c0_i32, %c0_i32_0 : i32, i32
  }
  func.func @transform_2(%arg0: i32, %arg1: i32) -> (i32, i32) {
    %c0_i32 = arith.constant 0 : i32
    %c0_i32_0 = arith.constant 0 : i32
    %c0_i32_1 = arith.constant 0 : i32
    return %c0_i32, %c0_i32_0 : i32, i32
  }
  func.func @transform_3(%arg0: i32, %arg1: i32) -> (i32, i32) {
    %c0_i32 = arith.constant 0 : i32
    %c0_i32_0 = arith.constant 0 : i32
    %c0_i32_1 = arith.constant 0 : i32
    return %c0_i32, %c0_i32_0 : i32, i32
  }
  func.func @transform_4(%arg0: i32, %arg1: i32) -> (i32, i32) {
    %c0_i32 = arith.constant 0 : i32
    %c0_i32_0 = arith.constant 0 : i32
    %c0_i32_1 = arith.constant 0 : i32
    return %c0_i32, %c0_i32_0 : i32, i32
  }
  func.func @transform_5(%arg0: i32, %arg1: i32) -> (i32, i32) {
    %c0_i32 = arith.constant 0 : i32
    %c0_i32_0 = arith.constant 0 : i32
    %c0_i32_1 = arith.constant 0 : i32
    return %c0_i32, %c0_i32_0 : i32, i32
  }
  func.func @transform_6(%arg0: i32, %arg1: i32) -> (i32, i32) {
    %c0_i32 = arith.constant 0 : i32
    %c0_i32_0 = arith.constant 0 : i32
    %c0_i32_1 = arith.constant 0 : i32
    return %c0_i32, %c0_i32_0 : i32, i32
  }
  func.func @transform_7(%arg0: i32, %arg1: i32) -> (i32, i32, i32) {
    %c0_i32 = arith.constant 0 : i32
    %c0_i32_0 = arith.constant 0 : i32
    %c0_i32_1 = arith.constant 0 : i32
    return %arg0, %c0_i32, %c0_i32_0 : i32, i32, i32
  }
}

</mosaic_0001>

<llo_original>
// kernel: tpu_custom_call.1
$region0: #{tpu_custom_call.1}
  #allocation0 [shape = 'u32[]', space=smem, size = 0x4, offset = 0x4, fixed_abs, tag = 'smem constant byte address 0x4 - core index']
  #allocation1 [shape = 'u32[72,128]{1,0:T(1,128)}', space=vmem, size = 0x9000, scoped, tag = 'internal scratch']
  %s0 = inlined_call_operand.vmem [shape: f32[2,3,512], index: 0, kind: input, shape index: {}]
  %s1 = inlined_call_operand.vmem [shape: f32[64,3], index: 1, kind: input, shape index: {}]
  %s2 = inlined_call_operand.vmem [shape: f32[64,1], index: 2, kind: input, shape index: {}]
  %s3 = inlined_call_operand.vmem [shape: bf16[128,64], index: 3, kind: input, shape index: {}]
  %s4 = inlined_call_operand.vmem [shape: f32[128,1], index: 4, kind: input, shape index: {}]
  %s5 = inlined_call_operand.vmem [shape: bf16[1024,128], index: 5, kind: input, shape index: {}]
  %s6 = inlined_call_operand.vmem [shape: f32[1024,1], index: 6, kind: input, shape index: {}]
  %s7 = inlined_call_operand.vmem [shape: f32[2,1024,1], index: 7, kind: output, shape index: {}]
  %s8 = sld [smem:[#allocation0]]
  $region65: #{tpu_custom_call.1} parent=0
    _
  %s10 = ssub.s32 1, %s8
  %s11 = scalar_select 0, %s10, %s8
  loop: start=0, step=1, limit=6
  $region2: #{tpu_custom_call.1} parent=0 // loop_pre_header
    _
  $region3: #{tpu_custom_call.1} parent=0 // loop_header
    %s13 = sphi 0, %s17
    %p14 = scmp.ge.s32.totalorder %s13, 6
    %s20 = sphi 0, %s32
    %s21 = sphi 0, %s28
    %s22 = sphi 0, %s20
    %s23 = sphi 0, %s21
    %s24 = sphi 0, %s22
    %s25 = sphi 0, %s23
    %s37 = sphi 0, %s39
    %s40 = sphi 0, %s37
    %s41 = sphi 0, %s40
    %s57 = sphi 0, %s41
    %s61 = sphi 0, %s61
    %s63 = sphi 0, %s61
    %s64 = sphi 0, %s63
    %s78 = sphi 0, %s64
    %s82 = sphi 0, %s82
    %s84 = sphi 0, %s82
    %s85 = sphi 0, %s84
    %s99 = sphi 0, %s85
    %s103 = sphi 0, %s103
    %s105 = sphi 0, %s103
    %s106 = sphi 0, %s105
    %s120 = sphi 0, %s106
    %s124 = sphi 0, %s124
    %s126 = sphi 0, %s124
    %s127 = sphi 0, %s126
    %s141 = sphi 0, %s127
    %s145 = sphi 0, %s145
    %s147 = sphi 0, %s145
    %s148 = sphi 0, %s147
    %s162 = sphi 0, %s148
    %s166 = sphi 0, %s166
    %s168 = sphi 0, %s166
    %s169 = sphi 0, %s168
    %s183 = sphi 0, %s169
    %s189 = sphi 0, %s191
    %s192 = sphi 0, %s189
    %s193 = sphi 0, %s192
    %s209 = sphi 0, %s193
  $region4: #{tpu_custom_call.1} parent=0 // loop_header_branch
    %16 = sbr.rel (%p14) target = $region8
  $region5: #{tpu_custom_call.1} parent=0 // loop_body
    %s18 = ssub.s32 %s13, 1
    %s19 = ssub.s32 %s13, 2
    %s26 = sadd.s32 1, %s21
    %p27 = scmp.ge.s32.totalorder %s26, 2
    %s28 = scalar_select %p27, 0, %s26
    %s29 = sadd.s32 1, %s20
    %s30 = scalar_select %p27, %s29, %s20
    %p31 = scmp.ge.s32.totalorder %s30, 2
    %s32 = scalar_select %p31, 0, %s30
    %s33 = ssub.s32 %s20, %s32
    %s34 = ssub.s32 %s21, %s28
    %s35 = sor.u32 %s33, %s34
    %p36 = scmp.eq.s32.totalorder %s35, 0
    %s38 = sadd.s32 %s37, 1
    %s39 = scalar_select %p36, %s37, %s38
    %p42 = pneg %p36
    %p43 = scmp.eq.s32.totalorder %s13, 3
    %p44 = por %p42, %p43
    %p45 = scmp.ne.s32.totalorder %s37, %s40
    %p46 = scmp.eq.s32.totalorder %s13, 0
    %p47 = por %p45, %p46
    %p48 = scmp.ne.s32.totalorder %s37, %s40
    %p49 = scmp.eq.s32.totalorder %s18, 3
    %p50 = por %p48, %p49
    %p51 = scmp.ne.s32.totalorder %s40, %s41
    %p52 = scmp.eq.s32.totalorder %s18, 0
    %p53 = por %p51, %p52
    %p54 = scmp.ne.s32.totalorder %s40, %s41
    %p55 = scmp.eq.s32.totalorder %s19, 3
    %p56 = por %p54, %p55
    %p58 = scmp.ne.s32.totalorder %s41, %s57
    %p59 = scmp.eq.s32.totalorder %s19, 0
    %p60 = por %p58, %p59
    %s62 = sadd.s32 %s61, 1
    %p65 = scmp.eq.s32.totalorder %s13, 3
    %p66 = scmp.ne.s32.totalorder %s61, %s63
    %p67 = scmp.eq.s32.totalorder %s13, 0
    %p68 = por %p66, %p67
    %p69 = scmp.ne.s32.totalorder %s61, %s63
    %p70 = scmp.eq.s32.totalorder %s18, 3
    %p71 = por %p69, %p70
    %p72 = scmp.ne.s32.totalorder %s63, %s64
    %p73 = scmp.eq.s32.totalorder %s18, 0
    %p74 = por %p72, %p73
    %p75 = scmp.ne.s32.totalorder %s63, %s64
    %p76 = scmp.eq.s32.totalorder %s19, 3
    %p77 = por %p75, %p76
    %p79 = scmp.ne.s32.totalorder %s64, %s78
    %p80 = scmp.eq.s32.totalorder %s19, 0
    %p81 = por %p79, %p80
    %s83 = sadd.s32 %s82, 1
    %p86 = scmp.eq.s32.totalorder %s13, 3
    %p87 = scmp.ne.s32.totalorder %s82, %s84
    %p88 = scmp.eq.s32.totalorder %s13, 0
    %p89 = por %p87, %p88
    %p90 = scmp.ne.s32.totalorder %s82, %s84
    %p91 = scmp.eq.s32.totalorder %s18, 3
    %p92 = por %p90, %p91
    %p93 = scmp.ne.s32.totalorder %s84, %s85
    %p94 = scmp.eq.s32.totalorder %s18, 0
    %p95 = por %p93, %p94
    %p96 = scmp.ne.s32.totalorder %s84, %s85
    %p97 = scmp.eq.s32.totalorder %s19, 3
    %p98 = por %p96, %p97
    %p100 = scmp.ne.s32.totalorder %s85, %s99
    %p101 = scmp.eq.s32.totalorder %s19, 0
    %p102 = por %p100, %p101
    %s104 = sadd.s32 %s103, 1
    %p107 = scmp.eq.s32.totalorder %s13, 3
    %p108 = scmp.ne.s32.totalorder %s103, %s105
    %p109 = scmp.eq.s32.totalorder %s13, 0
    %p110 = por %p108, %p109
    %p111 = scmp.ne.s32.totalorder %s103, %s105
    %p112 = scmp.eq.s32.totalorder %s18, 3
    %p113 = por %p111, %p112
    %p114 = scmp.ne.s32.totalorder %s105, %s106
    %p115 = scmp.eq.s32.totalorder %s18, 0
    %p116 = por %p114, %p115
    %p117 = scmp.ne.s32.totalorder %s105, %s106
    %p118 = scmp.eq.s32.totalorder %s19, 3
    %p119 = por %p117, %p118
    %p121 = scmp.ne.s32.totalorder %s106, %s120
    %p122 = scmp.eq.s32.totalorder %s19, 0
    %p123 = por %p121, %p122
    %s125 = sadd.s32 %s124, 1
    %p128 = scmp.eq.s32.totalorder %s13, 3
    %p129 = scmp.ne.s32.totalorder %s124, %s126
    %p130 = scmp.eq.s32.totalorder %s13, 0
    %p131 = por %p129, %p130
    %p132 = scmp.ne.s32.totalorder %s124, %s126
    %p133 = scmp.eq.s32.totalorder %s18, 3
    %p134 = por %p132, %p133
    %p135 = scmp.ne.s32.totalorder %s126, %s127
    %p136 = scmp.eq.s32.totalorder %s18, 0
    %p137 = por %p135, %p136
    %p138 = scmp.ne.s32.totalorder %s126, %s127
    %p139 = scmp.eq.s32.totalorder %s19, 3
    %p140 = por %p138, %p139
    %p142 = scmp.ne.s32.totalorder %s127, %s141
    %p143 = scmp.eq.s32.totalorder %s19, 0
    %p144 = por %p142, %p143
    %s146 = sadd.s32 %s145, 1
    %p149 = scmp.eq.s32.totalorder %s13, 3
    %p150 = scmp.ne.s32.totalorder %s145, %s147
    %p151 = scmp.eq.s32.totalorder %s13, 0
    %p152 = por %p150, %p151
    %p153 = scmp.ne.s32.totalorder %s145, %s147
    %p154 = scmp.eq.s32.totalorder %s18, 3
    %p155 = por %p153, %p154
    %p156 = scmp.ne.s32.totalorder %s147, %s148
    %p157 = scmp.eq.s32.totalorder %s18, 0
    %p158 = por %p156, %p157
    %p159 = scmp.ne.s32.totalorder %s147, %s148
    %p160 = scmp.eq.s32.totalorder %s19, 3
    %p161 = por %p159, %p160
    %p163 = scmp.ne.s32.totalorder %s148, %s162
    %p164 = scmp.eq.s32.totalorder %s19, 0
    %p165 = por %p163, %p164
    %s167 = sadd.s32 %s166, 1
    %p170 = scmp.eq.s32.totalorder %s13, 3
    %p171 = scmp.ne.s32.totalorder %s166, %s168
    %p172 = scmp.eq.s32.totalorder %s13, 0
    %p173 = por %p171, %p172
    %p174 = scmp.ne.s32.totalorder %s166, %s168
    %p175 = scmp.eq.s32.totalorder %s18, 3
    %p176 = por %p174, %p175
    %p177 = scmp.ne.s32.totalorder %s168, %s169
    %p178 = scmp.eq.s32.totalorder %s18, 0
    %p179 = por %p177, %p178
    %p180 = scmp.ne.s32.totalorder %s168, %s169
    %p181 = scmp.eq.s32.totalorder %s19, 3
    %p182 = por %p180, %p181
    %p184 = scmp.ne.s32.totalorder %s169, %s183
    %p185 = scmp.eq.s32.totalorder %s19, 0
    %p186 = por %p184, %p185
    %s187 = ssub.s32 %s20, %s32
    %p188 = scmp.eq.s32.totalorder %s187, 0
    %s190 = sadd.s32 %s189, 1
    %s191 = scalar_select %p188, %s189, %s190
    %p194 = pneg %p188
    %p195 = scmp.eq.s32.totalorder %s13, 3
    %p196 = por %p194, %p195
    %p197 = scmp.ne.s32.totalorder %s189, %s192
    %p198 = scmp.eq.s32.totalorder %s13, 0
    %p199 = por %p197, %p198
    %p200 = scmp.ne.s32.totalorder %s189, %s192
    %p201 = scmp.eq.s32.totalorder %s18, 3
    %p202 = por %p200, %p201
    %p203 = scmp.ne.s32.totalorder %s192, %s193
    %p204 = scmp.eq.s32.totalorder %s18, 0
    %p205 = por %p203, %p204
    %p206 = scmp.ne.s32.totalorder %s192, %s193
    %p207 = scmp.eq.s32.totalorder %s19, 3
    %p208 = por %p206, %p207
    %p210 = scmp.ne.s32.totalorder %s193, %s209
    %p211 = scmp.eq.s32.totalorder %s19, 0
    %p212 = por %p210, %p211
    %p213 = scmp.le.s32.totalorder 1, %s13
    %p214 = scmp.lt.s32.totalorder %s13, 5
    %p215 = pnand %p213, %p214
    %p216 = pneg %p215
    // Predicated region
    $region9: #{tpu_custom_call.1} parent=5 // pred_check
      _
    $region10: #{tpu_custom_call.1} parent=5 // pred_check_branch
      %218 = sbr.rel (%p215) target = $region12
    $region11: #{tpu_custom_call.1} parent=5 // pred_region
      %s219 = ssub.s32 %s13, 1
      // Predicated region
      $region13: #{tpu_custom_call.1} parent=11 // pred_check
        %p220 = pneg %p74
      $region14: #{tpu_custom_call.1} parent=11 // pred_check_branch
        %222 = sbr.rel (%p220) target = $region16
      $region15: #{tpu_custom_call.1} parent=11 // pred_region
        _
      $region16: #{tpu_custom_call.1} parent=11 // pred_fallthru
        _
      // Predicated region
      $region17: #{tpu_custom_call.1} parent=11 // pred_check
        %p223 = pneg %p95
      $region18: #{tpu_custom_call.1} parent=11 // pred_check_branch
        %225 = sbr.rel (%p223) target = $region20
      $region19: #{tpu_custom_call.1} parent=11 // pred_region
        _
      $region20: #{tpu_custom_call.1} parent=11 // pred_fallthru
        _
      // Predicated region
      $region21: #{tpu_custom_call.1} parent=11 // pred_check
        %p226 = pneg %p116
      $region22: #{tpu_custom_call.1} parent=11 // pred_check_branch
        %228 = sbr.rel (%p226) target = $region24
      $region23: #{tpu_custom_call.1} parent=11 // pred_region
        _
      $region24: #{tpu_custom_call.1} parent=11 // pred_fallthru
        _
      // Predicated region
      $region25: #{tpu_custom_call.1} parent=11 // pred_check
        %p229 = pneg %p137
      $region26: #{tpu_custom_call.1} parent=11 // pred_check_branch
        %231 = sbr.rel (%p229) target = $region28
      $region27: #{tpu_custom_call.1} parent=11 // pred_region
        _
      $region28: #{tpu_custom_call.1} parent=11 // pred_fallthru
        _
      // Predicated region
      $region29: #{tpu_custom_call.1} parent=11 // pred_check
        %p232 = pneg %p158
      $region30: #{tpu_custom_call.1} parent=11 // pred_check_branch
        %234 = sbr.rel (%p232) target = $region32
      $region31: #{tpu_custom_call.1} parent=11 // pred_region
        _
      $region32: #{tpu_custom_call.1} parent=11 // pred_fallthru
        _
      // Predicated region
      $region33: #{tpu_custom_call.1} parent=11 // pred_check
        %p235 = pneg %p179
      $region34: #{tpu_custom_call.1} parent=11 // pred_check_branch
        %237 = sbr.rel (%p235) target = $region36
      $region35: #{tpu_custom_call.1} parent=11 // pred_region
        _
      $region36: #{tpu_custom_call.1} parent=11 // pred_fallthru
        _
    $region12: #{tpu_custom_call.1} parent=5 // pred_fallthru
      _
    %p238 = scmp.lt.s32.totalorder %s13, 4
    // Predicated region
    $region37: #{tpu_custom_call.1} parent=5 // pred_check
      %p239 = pneg %p238
    $region38: #{tpu_custom_call.1} parent=5 // pred_check_branch
      %241 = sbr.rel (%p239) target = $region40
    $region39: #{tpu_custom_call.1} parent=5 // pred_region
      // Predicated region
      $region41: #{tpu_custom_call.1} parent=39 // pred_check
        %p242 = pneg %p47
      $region42: #{tpu_custom_call.1} parent=39 // pred_check_branch
        %244 = sbr.rel (%p242) target = $region44
      $region43: #{tpu_custom_call.1} parent=39 // pred_region
        %s245 = smul.u32 2, %s21
        %p246 = scmp.lt.s32.totalorder %s20, 1
        %s247 = scalar_select %p246, %s20, 1
        %p248 = scmp.lt.s32.totalorder %s245, 3
        %s249 = scalar_select %p248, %s245, 3
        %s250 = smul.addr %s247, 4
        %s251 = sadd.s32 %s249, %s250
        %s252 = smul.addr %s251, 4
        %s253 = scalar_lea.vmem %s0, %s252
        %s254 = smul.u32 2, %s21
      $region44: #{tpu_custom_call.1} parent=39 // pred_fallthru
        _
    $region40: #{tpu_custom_call.1} parent=5 // pred_fallthru
      _
    %p255 = scmp.le.s32.totalorder 1, %s13
    %p256 = scmp.lt.s32.totalorder %s13, 5
    %p257 = pnand %p255, %p256
    %p258 = pneg %p257
    // Predicated region
    $region45: #{tpu_custom_call.1} parent=5 // pred_check
      _
    $region46: #{tpu_custom_call.1} parent=5 // pred_check_branch
      %260 = sbr.rel (%p257) target = $region48
    $region47: #{tpu_custom_call.1} parent=5 // pred_region
      %s261 = ssub.s32 %s13, 1
      %s262 = smul.u32 2, %s23
      %p263 = scmp.lt.s32.totalorder %s22, 1
      %s264 = scalar_select %p263, %s22, 1
      %p265 = scmp.lt.s32.totalorder %s262, 3
      %s266 = scalar_select %p265, %s262, 3
      %s267 = smul.addr %s264, 4
      %s268 = sadd.s32 %s266, %s267
      %s269 = smul.addr %s268, 4
      %s270 = scalar_lea.vmem %s0, %s269
      %p271 = pneg %p53
      %p272 = pneg %p50
      %p273 = pneg %p74
      %p274 = pneg %p71
      %p275 = pneg %p95
      %p276 = pneg %p92
      %p277 = pneg %p116
      %p278 = pneg %p113
      %p279 = pneg %p137
      %p280 = pneg %p134
      %p281 = pneg %p158
      %p282 = pneg %p155
      %p283 = pneg %p179
      %p284 = pneg %p176
      %p285 = pneg %p205
      %p286 = pneg %p202
      %p287 = scmp.lt.s32.totalorder %s22, 1
      %s288 = scalar_select %p287, %s22, 1
      %s289 = smul.addr %s288, 128
      %s290 = smul.addr %s289, 8
      %s291 = scalar_lea.vmem %s7, %s290
      %s292 = smul.u32 2, %s23
      %p293 = scmp.lt.s32.totalorder %s22, 1
      %s294 = scalar_select %p293, %s22, 1
      %p295 = scmp.lt.s32.totalorder %s292, 3
      %s296 = scalar_select %p295, %s292, 3
      %s297 = smul.addr %s294, 4
      %s298 = sadd.s32 %s296, %s297
      %s299 = smul.addr %s298, 4
      %s300 = scalar_lea.vmem %s0, %s299
      %s301 = smul.u32 2, %s23
      %p302 = scmp.lt.s32.totalorder %s22, 1
      %s303 = scalar_select %p302, %s22, 1
      %s304 = smul.addr %s303, 128
      %s305 = smul.addr %s304, 8
      %s306 = scalar_lea.vmem %s7, %s305
      %v308 = vld [vmem:[%s300] sm:$0x77]
      %v309 = vld [vmem:[%s1] sm:$0xff]
      %v310 = vld [vmem:[%s1 + $0x8] sm:$0xff]
      %v311 = vld [vmem:[%s1 + $0x10] sm:$0xff]
      %v312 = vld [vmem:[%s1 + $0x18] sm:$0xff]
      %v313 = vld [vmem:[%s1 + $0x20] sm:$0xff]
      %v314 = vld [vmem:[%s1 + $0x28] sm:$0xff]
      %v315 = vld [vmem:[%s1 + $0x30] sm:$0xff]
      %v316 = vld [vmem:[%s1 + $0x38] sm:$0xff]
      %v317 = vld [vmem:[%s2] sm:$0xff]
      %v318 = vld [vmem:[%s2 + $0x8] sm:$0xff]
      %v319 = vld [vmem:[%s2 + $0x10] sm:$0xff]
      %v320 = vld [vmem:[%s2 + $0x18] sm:$0xff]
      %v321 = vld [vmem:[%s2 + $0x20] sm:$0xff]
      %v322 = vld [vmem:[%s2 + $0x28] sm:$0xff]
      %v323 = vld [vmem:[%s2 + $0x30] sm:$0xff]
      %v324 = vld [vmem:[%s2 + $0x38] sm:$0xff]
      %326 = vset.pattern.permute.xlu0 0
      %327 = vperm.xlu0 %326, %v317
      %v328 = vpop.permute.xlu0 %327
      %331 = vset.pattern.permute.xlu0 0
      %332 = vperm.xlu0 %331, %v318
      %v333 = vpop.permute.xlu0 %332
      %336 = vset.pattern.permute.xlu0 0
      %337 = vperm.xlu0 %336, %v319
      %v338 = vpop.permute.xlu0 %337
      %341 = vset.pattern.permute.xlu0 0
      %342 = vperm.xlu0 %341, %v320
      %v343 = vpop.permute.xlu0 %342
      %346 = vset.pattern.permute.xlu0 0
      %347 = vperm.xlu0 %346, %v321
      %v348 = vpop.permute.xlu0 %347
      %351 = vset.pattern.permute.xlu0 0
      %352 = vperm.xlu0 %351, %v322
      %v353 = vpop.permute.xlu0 %352
      %356 = vset.pattern.permute.xlu0 0
      %357 = vperm.xlu0 %356, %v323
      %v358 = vpop.permute.xlu0 %357
      %361 = vset.pattern.permute.xlu0 0
      %362 = vperm.xlu0 %361, %v324
      %v363 = vpop.permute.xlu0 %362
      %366 = vst [vmem:[#allocation1] ss:$2 sm:$0xff] %v308
      %v367 = vld.sshfl [vmem:[#allocation1] sm:$0xff pattern:$0x75316420]
      %v368 = vld.sshfl [vmem:[#allocation1 + $0x8] sm:$0xff pattern:$0x75316420]
      %vm369 = vcmask 23552
      %v371 = vsel %vm369, %v309, 0
      %v374 = vsel %vm369, %v310, 0
      %v377 = vsel %vm369, %v311, 0
      %v380 = vsel %vm369, %v312, 0
      %v383 = vsel %vm369, %v313, 0
      %v386 = vsel %vm369, %v314, 0
      %v389 = vsel %vm369, %v315, 0
      %v392 = vsel %vm369, %v316, 0
      %vm394 = vcmask 1042432
      %v395 = vsel %vm394, %v367, 0
      %v397 = vsel %vm394, %v368, 0
      %399 = vmatpush.msra.mxu0 0.0
      %400 = vmatpush.msra.mxu0 0.0
      %401 = vmatpush.msra.mxu0 0.0
      %402 = vmatpush.msra.mxu0 0.0
      %403 = vmatpush.msra.mxu0 0.0
      %404 = vmatpush.msra.mxu0 0.0
      %405 = vmatpush.msra.mxu0 0.0
      %406 = vmatpush.msra.mxu0 0.0
      %407 = vmatpush.msra.mxu0 0.0
      %408 = vmatpush.msra.mxu0 0.0
      %409 = vmatpush.msra.mxu0 0.0
      %410 = vmatpush.msra.mxu0 0.0
      %411 = vmatpush.msra.mxu0 0.0
      %412 = vmatpush.msra.mxu0 0.0
      %413 = vmatpush.msra.mxu0 0.0
      %414 = vmatpush.msra.mxu0 %v395
      %415 = vmatmul.f32.gmra.mxu0 %v371
      %v416 = vpop.f32.mrf.mxu0
      %v417 = vadd.f32 %v328, %v416
      %418 = vmatmul.f32.gmra.mxu0 %v374
      %v419 = vpop.f32.mrf.mxu0
      %v420 = vadd.f32 %v333, %v419
      %421 = vmatmul.f32.gmra.mxu0 %v377
      %v422 = vpop.f32.mrf.mxu0
      %v423 = vadd.f32 %v338, %v422
      %424 = vmatmul.f32.gmra.mxu0 %v380
      %v425 = vpop.f32.mrf.mxu0
      %v426 = vadd.f32 %v343, %v425
      %427 = vmatmul.f32.gmra.mxu0 %v383
      %v428 = vpop.f32.mrf.mxu0
      %v429 = vadd.f32 %v348, %v428
      %430 = vmatmul.f32.gmra.mxu0 %v386
      %v431 = vpop.f32.mrf.mxu0
      %v432 = vadd.f32 %v353, %v431
      %433 = vmatmul.f32.gmra.mxu0 %v389
      %v434 = vpop.f32.mrf.mxu0
      %v435 = vadd.f32 %v358, %v434
      %436 = vmatmul.f32.gmra.mxu0 %v392
      %v437 = vpop.f32.mrf.mxu0
      %v438 = vadd.f32 %v363, %v437
      %439 = vdwg.mxu0
      %440 = vmatpush.msra.mxu0 0.0
      %441 = vmatpush.msra.mxu0 0.0
      %442 = vmatpush.msra.mxu0 0.0
      %443 = vmatpush.msra.mxu0 0.0
      %444 = vmatpush.msra.mxu0 0.0
      %445 = vmatpush.msra.mxu0 0.0
      %446 = vmatpush.msra.mxu0 0.0
      %447 = vmatpush.msra.mxu0 0.0
      %448 = vmatpush.msra.mxu0 0.0
      %449 = vmatpush.msra.mxu0 0.0
      %450 = vmatpush.msra.mxu0 0.0
      %451 = vmatpush.msra.mxu0 0.0
      %452 = vmatpush.msra.mxu0 0.0
      %453 = vmatpush.msra.mxu0 0.0
      %454 = vmatpush.msra.mxu0 0.0
      %455 = vmatpush.msra.mxu0 %v397
      %456 = vmatmul.f32.gmra.mxu0 %v371
      %v457 = vpop.f32.mrf.mxu0
      %v458 = vadd.f32 %v328, %v457
      %459 = vmatmul.f32.gmra.mxu0 %v374
      %v460 = vpop.f32.mrf.mxu0
      %v461 = vadd.f32 %v333, %v460
      %462 = vmatmul.f32.gmra.mxu0 %v377
      %v463 = vpop.f32.mrf.mxu0
      %v464 = vadd.f32 %v338, %v463
      %465 = vmatmul.f32.gmra.mxu0 %v380
      %v466 = vpop.f32.mrf.mxu0
      %v467 = vadd.f32 %v343, %v466
      %468 = vmatmul.f32.gmra.mxu0 %v383
      %v469 = vpop.f32.mrf.mxu0
      %v470 = vadd.f32 %v348, %v469
      %471 = vmatmul.f32.gmra.mxu0 %v386
      %v472 = vpop.f32.mrf.mxu0
      %v473 = vadd.f32 %v353, %v472
      %474 = vmatmul.f32.gmra.mxu0 %v389
      %v475 = vpop.f32.mrf.mxu0
      %v476 = vadd.f32 %v358, %v475
      %477 = vmatmul.f32.gmra.mxu0 %v392
      %v478 = vpop.f32.mrf.mxu0
      %v479 = vadd.f32 %v363, %v478
      %480 = vdwg.mxu0
      %v481 = vmax.f32 %v417, 0.0
      %v482 = vmax.f32 %v458, 0.0
      %v483 = vmax.f32 %v420, 0.0
      %v484 = vmax.f32 %v461, 0.0
      %v485 = vmax.f32 %v423, 0.0
      %v486 = vmax.f32 %v464, 0.0
      %v487 = vmax.f32 %v426, 0.0
      %v488 = vmax.f32 %v467, 0.0
      %v489 = vmax.f32 %v429, 0.0
      %v490 = vmax.f32 %v470, 0.0
      %v491 = vmax.f32 %v432, 0.0
      %v492 = vmax.f32 %v473, 0.0
      %v493 = vmax.f32 %v435, 0.0
      %v494 = vmax.f32 %v476, 0.0
      %v495 = vmax.f32 %v438, 0.0
      %v496 = vmax.f32 %v479, 0.0
      %v497 = vld [vmem:[%s3] sm:$0xf]
      %v498 = vld [vmem:[%s3 + $0x4] sm:$0xf]
      %v499 = vld [vmem:[%s3 + $0x8] sm:$0xf]
      %v500 = vld [vmem:[%s3 + $0xc] sm:$0xf]
      %v501 = vld [vmem:[%s3 + $0x10] sm:$0xf]
      %v502 = vld [vmem:[%s3 + $0x14] sm:$0xf]
      %v503 = vld [vmem:[%s3 + $0x18] sm:$0xf]
      %v504 = vld [vmem:[%s3 + $0x1c] sm:$0xf]
      %v505 = vld [vmem:[%s3 + $0x20] sm:$0xf]
      %v506 = vld [vmem:[%s3 + $0x24] sm:$0xf]
      %v507 = vld [vmem:[%s3 + $0x28] sm:$0xf]
      %v508 = vld [vmem:[%s3 + $0x2c] sm:$0xf]
      %v509 = vld [vmem:[%s3 + $0x30] sm:$0xf]
      %v510 = vld [vmem:[%s3 + $0x34] sm:$0xf]
      %v511 = vld [vmem:[%s3 + $0x38] sm:$0xf]
      %v512 = vld [vmem:[%s3 + $0x3c] sm:$0xf]
      %v513 = vpack.c.bf16 %v483, %v481
      %v514 = vpack.c.bf16 %v484, %v482
      %v515 = vpack.c.bf16 %v487, %v485
      %v516 = vpack.c.bf16 %v488, %v486
      %v517 = vpack.c.bf16 %v491, %v489
      %v518 = vpack.c.bf16 %v492, %v490
      %v519 = vpack.c.bf16 %v495, %v493
      %v520 = vpack.c.bf16 %v496, %v494
      %v521 = vld [vmem:[%s4] sm:$0xff]
      %v522 = vld [vmem:[%s4 + $0x8] sm:$0xff]
      %v523 = vld [vmem:[%s4 + $0x10] sm:$0xff]
      %v524 = vld [vmem:[%s4 + $0x18] sm:$0xff]
      %v525 = vld [vmem:[%s4 + $0x20] sm:$0xff]
      %v526 = vld [vmem:[%s4 + $0x28] sm:$0xff]
      %v527 = vld [vmem:[%s4 + $0x30] sm:$0xff]
      %v528 = vld [vmem:[%s4 + $0x38] sm:$0xff]
      %v529 = vld [vmem:[%s4 + $0x40] sm:$0xff]
      %v530 = vld [vmem:[%s4 + $0x48] sm:$0xff]
      %v531 = vld [vmem:[%s4 + $0x50] sm:$0xff]
      %v532 = vld [vmem:[%s4 + $0x58] sm:$0xff]
      %v533 = vld [vmem:[%s4 + $0x60] sm:$0xff]
      %v534 = vld [vmem:[%s4 + $0x68] sm:$0xff]
      %v535 = vld [vmem:[%s4 + $0x70] sm:$0xff]
      %v536 = vld [vmem:[%s4 + $0x78] sm:$0xff]
      %538 = vset.pattern.permute.xlu0 0
      %539 = vperm.xlu0 %538, %v521
      %v540 = vpop.permute.xlu0 %539
      %543 = vset.pattern.permute.xlu0 0
      %544 = vperm.xlu0 %543, %v522
      %v545 = vpop.permute.xlu0 %544
      %548 = vset.pattern.permute.xlu0 0
      %549 = vperm.xlu0 %548, %v523
      %v550 = vpop.permute.xlu0 %549
      %553 = vset.pattern.permute.xlu0 0
      %554 = vperm.xlu0 %553, %v524
      %v555 = vpop.permute.xlu0 %554
      %558 = vset.pattern.permute.xlu0 0
      %559 = vperm.xlu0 %558, %v525
      %v560 = vpop.permute.xlu0 %559
      %563 = vset.pattern.permute.xlu0 0
      %564 = vperm.xlu0 %563, %v526
      %v565 = vpop.permute.xlu0 %564
      %568 = vset.pattern.permute.xlu0 0
      %569 = vperm.xlu0 %568, %v527
      %v570 = vpop.permute.xlu0 %569
      %573 = vset.pattern.permute.xlu0 0
      %574 = vperm.xlu0 %573, %v528
      %v575 = vpop.permute.xlu0 %574
      %578 = vset.pattern.permute.xlu0 0
      %579 = vperm.xlu0 %578, %v529
      %v580 = vpop.permute.xlu0 %579
      %583 = vset.pattern.permute.xlu0 0
      %584 = vperm.xlu0 %583, %v530
      %v585 = vpop.permute.xlu0 %584
      %588 = vset.pattern.permute.xlu0 0
      %589 = vperm.xlu0 %588, %v531
      %v590 = vpop.permute.xlu0 %589
      %593 = vset.pattern.permute.xlu0 0
      %594 = vperm.xlu0 %593, %v532
      %v595 = vpop.permute.xlu0 %594
      %598 = vset.pattern.permute.xlu0 0
      %599 = vperm.xlu0 %598, %v533
      %v600 = vpop.permute.xlu0 %599
      %603 = vset.pattern.permute.xlu0 0
      %604 = vperm.xlu0 %603, %v534
      %v605 = vpop.permute.xlu0 %604
      %608 = vset.pattern.permute.xlu0 0
      %609 = vperm.xlu0 %608, %v535
      %v610 = vpop.permute.xlu0 %609
      %613 = vset.pattern.permute.xlu0 0
      %614 = vperm.xlu0 %613, %v536
      %v615 = vpop.permute.xlu0 %614
      %v633 = vunpack.c.l.b16 %v497
      %v634 = vunpack.c.l.b16 %v498
      %v635 = vunpack.c.l.b16 %v499
      %v636 = vunpack.c.l.b16 %v500
      %v637 = vunpack.c.l.b16 %v501
      %v638 = vunpack.c.l.b16 %v502
      %v639 = vunpack.c.l.b16 %v503
      %v640 = vunpack.c.l.b16 %v504
      %v641 = vunpack.c.l.b16 %v505
      %v642 = vunpack.c.l.b16 %v506
      %v643 = vunpack.c.l.b16 %v507
      %v644 = vunpack.c.l.b16 %v508
      %v645 = vunpack.c.l.b16 %v509
      %v646 = vunpack.c.l.b16 %v510
      %v647 = vunpack.c.l.b16 %v511
      %v648 = vunpack.c.l.b16 %v512
      %v649 = vpack.c.b16 %v634, %v633
      %v650 = vpack.c.b16 %v636, %v635
      %v651 = vpack.c.b16 %v638, %v637
      %v652 = vpack.c.b16 %v640, %v639
      %v653 = vpack.c.b16 %v642, %v641
      %v654 = vpack.c.b16 %v644, %v643
      %v655 = vpack.c.b16 %v646, %v645
      %v656 = vpack.c.b16 %v648, %v647
      %vm657 = vcmask 523264
      %v659 = vsel %vm657, %v649, 0
      %v662 = vsel %vm657, %v650, 0
      %v665 = vsel %vm657, %v651, 0
      %v668 = vsel %vm657, %v652, 0
      %v671 = vsel %vm657, %v653, 0
      %v674 = vsel %vm657, %v654, 0
      %v677 = vsel %vm657, %v655, 0
      %v680 = vsel %vm657, %v656, 0
      %682 = vmatpush.bf16.msra.mxu0 0
      %683 = vmatpush.bf16.msra.mxu0 0
      %684 = vmatpush.bf16.msra.mxu0 0
      %685 = vmatpush.bf16.msra.mxu0 0
      %686 = vmatpush.bf16.msra.mxu0 %v519
      %687 = vmatpush.bf16.msra.mxu0 %v517
      %688 = vmatpush.bf16.msra.mxu0 %v515
      %689 = vmatpush.bf16.msra.mxu0 %v513
      %690 = vmatmul.bf16.gmra.mxu0 %v659
      %v691 = vpop.f32.mrf.mxu0
      %v692 = vadd.f32 %v540, %v691
      %v693 = vpop.f32.mrf.mxu0
      %v694 = vadd.f32 %v545, %v693
      %695 = vmatmul.bf16.gmra.mxu0 %v662
      %v696 = vpop.f32.mrf.mxu0
      %v697 = vadd.f32 %v550, %v696
      %v698 = vpop.f32.mrf.mxu0
      %v699 = vadd.f32 %v555, %v698
      %700 = vmatmul.bf16.gmra.mxu0 %v665
      %v701 = vpop.f32.mrf.mxu0
      %v702 = vadd.f32 %v560, %v701
      %v703 = vpop.f32.mrf.mxu0
      %v704 = vadd.f32 %v565, %v703
      %705 = vmatmul.bf16.gmra.mxu0 %v668
      %v706 = vpop.f32.mrf.mxu0
      %v707 = vadd.f32 %v570, %v706
      %v708 = vpop.f32.mrf.mxu0
      %v709 = vadd.f32 %v575, %v708
      %710 = vmatmul.bf16.gmra.mxu0 %v671
      %v711 = vpop.f32.mrf.mxu0
      %v712 = vadd.f32 %v580, %v711
      %v713 = vpop.f32.mrf.mxu0
      %v714 = vadd.f32 %v585, %v713
      %715 = vmatmul.bf16.gmra.mxu0 %v674
      %v716 = vpop.f32.mrf.mxu0
      %v717 = vadd.f32 %v590, %v716
      %v718 = vpop.f32.mrf.mxu0
      %v719 = vadd.f32 %v595, %v718
      %720 = vmatmul.bf16.gmra.mxu0 %v677
      %v721 = vpop.f32.mrf.mxu0
      %v722 = vadd.f32 %v600, %v721
      %v723 = vpop.f32.mrf.mxu0
      %v724 = vadd.f32 %v605, %v723
      %725 = vmatmul.bf16.gmra.mxu0 %v680
      %v726 = vpop.f32.mrf.mxu0
      %v727 = vadd.f32 %v610, %v726
      %v728 = vpop.f32.mrf.mxu0
      %v729 = vadd.f32 %v615, %v728
      %730 = vdwg.mxu0
      %731 = vmatpush.bf16.msra.mxu0 0
      %732 = vmatpush.bf16.msra.mxu0 0
      %733 = vmatpush.bf16.msra.mxu0 0
      %734 = vmatpush.bf16.msra.mxu0 0
      %735 = vmatpush.bf16.msra.mxu0 %v520
      %736 = vmatpush.bf16.msra.mxu0 %v518
      %737 = vmatpush.bf16.msra.mxu0 %v516
      %738 = vmatpush.bf16.msra.mxu0 %v514
      %739 = vmatmul.bf16.gmra.mxu0 %v659
      %v740 = vpop.f32.mrf.mxu0
      %v741 = vadd.f32 %v540, %v740
      %v742 = vpop.f32.mrf.mxu0
      %v743 = vadd.f32 %v545, %v742
      %744 = vmatmul.bf16.gmra.mxu0 %v662
      %v745 = vpop.f32.mrf.mxu0
      %v746 = vadd.f32 %v550, %v745
      %v747 = vpop.f32.mrf.mxu0
      %v748 = vadd.f32 %v555, %v747
      %749 = vmatmul.bf16.gmra.mxu0 %v665
      %v750 = vpop.f32.mrf.mxu0
      %v751 = vadd.f32 %v560, %v750
      %v752 = vpop.f32.mrf.mxu0
      %v753 = vadd.f32 %v565, %v752
      %754 = vmatmul.bf16.gmra.mxu0 %v668
      %v755 = vpop.f32.mrf.mxu0
      %v756 = vadd.f32 %v570, %v755
      %v757 = vpop.f32.mrf.mxu0
      %v758 = vadd.f32 %v575, %v757
      %759 = vmatmul.bf16.gmra.mxu0 %v671
      %v760 = vpop.f32.mrf.mxu0
      %v761 = vadd.f32 %v580, %v760
      %v762 = vpop.f32.mrf.mxu0
      %v763 = vadd.f32 %v585, %v762
      %764 = vmatmul.bf16.gmra.mxu0 %v674
      %v765 = vpop.f32.mrf.mxu0
      %v766 = vadd.f32 %v590, %v765
      %v767 = vpop.f32.mrf.mxu0
      %v768 = vadd.f32 %v595, %v767
      %769 = vmatmul.bf16.gmra.mxu0 %v677
      %v770 = vpop.f32.mrf.mxu0
      %v771 = vadd.f32 %v600, %v770
      %v772 = vpop.f32.mrf.mxu0
      %v773 = vadd.f32 %v605, %v772
      %774 = vmatmul.bf16.gmra.mxu0 %v680
      %v775 = vpop.f32.mrf.mxu0
      %v776 = vadd.f32 %v610, %v775
      %v777 = vpop.f32.mrf.mxu0
      %v778 = vadd.f32 %v615, %v777
      %779 = vdwg.mxu0
      %v780 = vmax.f32 %v692, 0.0
      %v781 = vmax.f32 %v741, 0.0
      %v782 = vmax.f32 %v694, 0.0
      %v783 = vmax.f32 %v743, 0.0
      %v784 = vmax.f32 %v697, 0.0
      %v785 = vmax.f32 %v746, 0.0
      %v786 = vmax.f32 %v699, 0.0
      %v787 = vmax.f32 %v748, 0.0
      %v788 = vmax.f32 %v702, 0.0
      %v789 = vmax.f32 %v751, 0.0
      %v790 = vmax.f32 %v704, 0.0
      %v791 = vmax.f32 %v753, 0.0
      %v792 = vmax.f32 %v707, 0.0
      %v793 = vmax.f32 %v756, 0.0
      %v794 = vmax.f32 %v709, 0.0
      %v795 = vmax.f32 %v758, 0.0
      %v796 = vmax.f32 %v712, 0.0
      %v797 = vmax.f32 %v761, 0.0
      %v798 = vmax.f32 %v714, 0.0
      %v799 = vmax.f32 %v763, 0.0
      %v800 = vmax.f32 %v717, 0.0
      %v801 = vmax.f32 %v766, 0.0
      %v802 = vmax.f32 %v719, 0.0
      %v803 = vmax.f32 %v768, 0.0
      %v804 = vmax.f32 %v722, 0.0
      %v805 = vmax.f32 %v771, 0.0
      %v806 = vmax.f32 %v724, 0.0
      %v807 = vmax.f32 %v773, 0.0
      %v808 = vmax.f32 %v727, 0.0
      %v809 = vmax.f32 %v776, 0.0
      %v810 = vmax.f32 %v729, 0.0
      %v811 = vmax.f32 %v778, 0.0
      %v812 = vld [vmem:[%s5] sm:$0xf]
      %v813 = vld [vmem:[%s5 + $0x4] sm:$0xf]
      %v814 = vld [vmem:[%s5 + $0x8] sm:$0xf]
      %v815 = vld [vmem:[%s5 + $0xc] sm:$0xf]
      %v816 = vld [vmem:[%s5 + $0x10] sm:$0xf]
      %v817 = vld [vmem:[%s5 + $0x14] sm:$0xf]
      %v818 = vld [vmem:[%s5 + $0x18] sm:$0xf]
      %v819 = vld [vmem:[%s5 + $0x1c] sm:$0xf]
      %v820 = vld [vmem:[%s5 + $0x20] sm:$0xf]
      %v821 = vld [vmem:[%s5 + $0x24] sm:$0xf]
      %v822 = vld [vmem:[%s5 + $0x28] sm:$0xf]
      %v823 = vld [vmem:[%s5 + $0x2c] sm:$0xf]
      %v824 = vld [vmem:[%s5 + $0x30] sm:$0xf]
      %v825 = vld [vmem:[%s5 + $0x34] sm:$0xf]
      %v826 = vld [vmem:[%s5 + $0x38] sm:$0xf]
      %v827 = vld [vmem:[%s5 + $0x3c] sm:$0xf]
      %v828 = vld [vmem:[%s5 + $0x40] sm:$0xf]
      %v829 = vld [vmem:[%s5 + $0x44] sm:$0xf]
      %v830 = vld [vmem:[%s5 + $0x48] sm:$0xf]
      %v831 = vld [vmem:[%s5 + $0x4c] sm:$0xf]
      %v832 = vld [vmem:[%s5 + $0x50] sm:$0xf]
      %v833 = vld [vmem:[%s5 + $0x54] sm:$0xf]
      %v834 = vld [vmem:[%s5 + $0x58] sm:$0xf]
      %v835 = vld [vmem:[%s5 + $0x5c] sm:$0xf]
      %v836 = vld [vmem:[%s5 + $0x60] sm:$0xf]
      %v837 = vld [vmem:[%s5 + $0x64] sm:$0xf]
      %v838 = vld [vmem:[%s5 + $0x68] sm:$0xf]
      %v839 = vld [vmem:[%s5 + $0x6c] sm:$0xf]
      %v840 = vld [vmem:[%s5 + $0x70] sm:$0xf]
      %v841 = vld [vmem:[%s5 + $0x74] sm:$0xf]
      %v842 = vld [vmem:[%s5 + $0x78] sm:$0xf]
      %v843 = vld [vmem:[%s5 + $0x7c] sm:$0xf]
      %v844 = vld [vmem:[%s5 + $0x80] sm:$0xf]
      %v845 = vld [vmem:[%s5 + $0x84] sm:$0xf]
      %v846 = vld [vmem:[%s5 + $0x88] sm:$0xf]
      %v847 = vld [vmem:[%s5 + $0x8c] sm:$0xf]
      %v848 = vld [vmem:[%s5 + $0x90] sm:$0xf]
      %v849 = vld [vmem:[%s5 + $0x94] sm:$0xf]
      %v850 = vld [vmem:[%s5 + $0x98] sm:$0xf]
      %v851 = vld [vmem:[%s5 + $0x9c] sm:$0xf]
      %v852 = vld [vmem:[%s5 + $0xa0] sm:$0xf]
      %v853 = vld [vmem:[%s5 + $0xa4] sm:$0xf]
      %v854 = vld [vmem:[%s5 + $0xa8] sm:$0xf]
      %v855 = vld [vmem:[%s5 + $0xac] sm:$0xf]
      %v856 = vld [vmem:[%s5 + $0xb0] sm:$0xf]
      %v857 = vld [vmem:[%s5 + $0xb4] sm:$0xf]
      %v858 = vld [vmem:[%s5 + $0xb8] sm:$0xf]
      %v859 = vld [vmem:[%s5 + $0xbc] sm:$0xf]
      %v860 = vld [vmem:[%s5 + $0xc0] sm:$0xf]
      %v861 = vld [vmem:[%s5 + $0xc4] sm:$0xf]
      %v862 = vld [vmem:[%s5 + $0xc8] sm:$0xf]
      %v863 = vld [vmem:[%s5 + $0xcc] sm:$0xf]
      %v864 = vld [vmem:[%s5 + $0xd0] sm:$0xf]
      %v865 = vld [vmem:[%s5 + $0xd4] sm:$0xf]
      %v866 = vld [vmem:[%s5 + $0xd8] sm:$0xf]
      %v867 = vld [vmem:[%s5 + $0xdc] sm:$0xf]
      %v868 = vld [vmem:[%s5 + $0xe0] sm:$0xf]
      %v869 = vld [vmem:[%s5 + $0xe4] sm:$0xf]
      %v870 = vld [vmem:[%s5 + $0xe8] sm:$0xf]
      %v871 = vld [vmem:[%s5 + $0xec] sm:$0xf]
      %v872 = vld [vmem:[%s5 + $0xf0] sm:$0xf]
      %v873 = vld [vmem:[%s5 + $0xf4] sm:$0xf]
      %v874 = vld [vmem:[%s5 + $0xf8] sm:$0xf]
      %v875 = vld [vmem:[%s5 + $0xfc] sm:$0xf]
      %v876 = vld [vmem:[%s5 + $0x100] sm:$0xf]
      %v877 = vld [vmem:[%s5 + $0x104] sm:$0xf]
      %v878 = vld [vmem:[%s5 + $0x108] sm:$0xf]
      %v879 = vld [vmem:[%s5 + $0x10c] sm:$0xf]
      %v880 = vld [vmem:[%s5 + $0x110] sm:$0xf]
      %v881 = vld [vmem:[%s5 + $0x114] sm:$0xf]
      %v882 = vld [vmem:[%s5 + $0x118] sm:$0xf]
      %v883 = vld [vmem:[%s5 + $0x11c] sm:$0xf]
      %v884 = vld [vmem:[%s5 + $0x120] sm:$0xf]
      %v885 = vld [vmem:[%s5 + $0x124] sm:$0xf]
      %v886 = vld [vmem:[%s5 + $0x128] sm:$0xf]
      %v887 = vld [vmem:[%s5 + $0x12c] sm:$0xf]
      %v888 = vld [vmem:[%s5 + $0x130] sm:$0xf]
      %v889 = vld [vmem:[%s5 + $0x134] sm:$0xf]
      %v890 = vld [vmem:[%s5 + $0x138] sm:$0xf]
      %v891 = vld [vmem:[%s5 + $0x13c] sm:$0xf]
      %v892 = vld [vmem:[%s5 + $0x140] sm:$0xf]
      %v893 = vld [vmem:[%s5 + $0x144] sm:$0xf]
      %v894 = vld [vmem:[%s5 + $0x148] sm:$0xf]
      %v895 = vld [vmem:[%s5 + $0x14c] sm:$0xf]
      %v896 = vld [vmem:[%s5 + $0x150] sm:$0xf]
      %v897 = vld [vmem:[%s5 + $0x154] sm:$0xf]
      %v898 = vld [vmem:[%s5 + $0x158] sm:$0xf]
      %v899 = vld [vmem:[%s5 + $0x15c] sm:$0xf]
      %v900 = vld [vmem:[%s5 + $0x160] sm:$0xf]
      %v901 = vld [vmem:[%s5 + $0x164] sm:$0xf]
      %v902 = vld [vmem:[%s5 + $0x168] sm:$0xf]
      %v903 = vld [vmem:[%s5 + $0x16c] sm:$0xf]
      %v904 = vld [vmem:[%s5 + $0x170] sm:$0xf]
      %v905 = vld [vmem:[%s5 + $0x174] sm:$0xf]
      %v906 = vld [vmem:[%s5 + $0x178] sm:$0xf]
      %v907 = vld [vmem:[%s5 + $0x17c] sm:$0xf]
      %v908 = vld [vmem:[%s5 + $0x180] sm:$0xf]
      %v909 = vld [vmem:[%s5 + $0x184] sm:$0xf]
      %v910 = vld [vmem:[%s5 + $0x188] sm:$0xf]
      %v911 = vld [vmem:[%s5 + $0x18c] sm:$0xf]
      %v912 = vld [vmem:[%s5 + $0x190] sm:$0xf]
      %v913 = vld [vmem:[%s5 + $0x194] sm:$0xf]
      %v914 = vld [vmem:[%s5 + $0x198] sm:$0xf]
      %v915 = vld [vmem:[%s5 + $0x19c] sm:$0xf]
      %v916 = vld [vmem:[%s5 + $0x1a0] sm:$0xf]
      %v917 = vld [vmem:[%s5 + $0x1a4] sm:$0xf]
      %v918 = vld [vmem:[%s5 + $0x1a8] sm:$0xf]
      %v919 = vld [vmem:[%s5 + $0x1ac] sm:$0xf]
      %v920 = vld [vmem:[%s5 + $0x1b0] sm:$0xf]
      %v921 = vld [vmem:[%s5 + $0x1b4] sm:$0xf]
      %v922 = vld [vmem:[%s5 + $0x1b8] sm:$0xf]
      %v923 = vld [vmem:[%s5 + $0x1bc] sm:$0xf]
      %v924 = vld [vmem:[%s5 + $0x1c0] sm:$0xf]
      %v925 = vld [vmem:[%s5 + $0x1c4] sm:$0xf]
      %v926 = vld [vmem:[%s5 + $0x1c8] sm:$0xf]
      %v927 = vld [vmem:[%s5 + $0x1cc] sm:$0xf]
      %v928 = vld [vmem:[%s5 + $0x1d0] sm:$0xf]
      %v929 = vld [vmem:[%s5 + $0x1d4] sm:$0xf]
      %v930 = vld [vmem:[%s5 + $0x1d8] sm:$0xf]
      %v931 = vld [vmem:[%s5 + $0x1dc] sm:$0xf]
      %v932 = vld [vmem:[%s5 + $0x1e0] sm:$0xf]
      %v933 = vld [vmem:[%s5 + $0x1e4] sm:$0xf]
      %v934 = vld [vmem:[%s5 + $0x1e8] sm:$0xf]
      %v935 = vld [vmem:[%s5 + $0x1ec] sm:$0xf]
      %v936 = vld [vmem:[%s5 + $0x1f0] sm:$0xf]
      %v937 = vld [vmem:[%s5 + $0x1f4] sm:$0xf]
      %v938 = vld [vmem:[%s5 + $0x1f8] sm:$0xf]
      %v939 = vld [vmem:[%s5 + $0x1fc] sm:$0xf]
      %v940 = vpack.c.bf16 %v782, %v780
      %v941 = vpack.c.bf16 %v783, %v781
      %v942 = vpack.c.bf16 %v786, %v784
      %v943 = vpack.c.bf16 %v787, %v785
      %v944 = vpack.c.bf16 %v790, %v788
      %v945 = vpack.c.bf16 %v791, %v789
      %v946 = vpack.c.bf16 %v794, %v792
      %v947 = vpack.c.bf16 %v795, %v793
      %v948 = vpack.c.bf16 %v798, %v796
      %v949 = vpack.c.bf16 %v799, %v797
      %v950 = vpack.c.bf16 %v802, %v800
      %v951 = vpack.c.bf16 %v803, %v801
      %v952 = vpack.c.bf16 %v806, %v804
      %v953 = vpack.c.bf16 %v807, %v805
      %v954 = vpack.c.bf16 %v810, %v808
      %v955 = vpack.c.bf16 %v811, %v809
      %v956 = vld [vmem:[%s6] sm:$0xff]
      %v957 = vld [vmem:[%s6 + $0x8] sm:$0xff]
      %v958 = vld [vmem:[%s6 + $0x10] sm:$0xff]
      %v959 = vld [vmem:[%s6 + $0x18] sm:$0xff]
      %v960 = vld [vmem:[%s6 + $0x20] sm:$0xff]
      %v961 = vld [vmem:[%s6 + $0x28] sm:$0xff]
      %v962 = vld [vmem:[%s6 + $0x30] sm:$0xff]
      %v963 = vld [vmem:[%s6 + $0x38] sm:$0xff]
      %v964 = vld [vmem:[%s6 + $0x40] sm:$0xff]
      %v965 = vld [vmem:[%s6 + $0x48] sm:$0xff]
      %v966 = vld [vmem:[%s6 + $0x50] sm:$0xff]
      %v967 = vld [vmem:[%s6 + $0x58] sm:$0xff]
      %v968 = vld [vmem:[%s6 + $0x60] sm:$0xff]
      %v969 = vld [vmem:[%s6 + $0x68] sm:$0xff]
      %v970 = vld [vmem:[%s6 + $0x70] sm:$0xff]
      %v971 = vld [vmem:[%s6 + $0x78] sm:$0xff]
      %v972 = vld [vmem:[%s6 + $0x80] sm:$0xff]
      %v973 = vld [vmem:[%s6 + $0x88] sm:$0xff]
      %v974 = vld [vmem:[%s6 + $0x90] sm:$0xff]
      %v975 = vld [vmem:[%s6 + $0x98] sm:$0xff]
      %v976 = vld [vmem:[%s6 + $0xa0] sm:$0xff]
      %v977 = vld [vmem:[%s6 + $0xa8] sm:$0xff]
      %v978 = vld [vmem:[%s6 + $0xb0] sm:$0xff]
      %v979 = vld [vmem:[%s6 + $0xb8] sm:$0xff]
      %v980 = vld [vmem:[%s6 + $0xc0] sm:$0xff]
      %v981 = vld [vmem:[%s6 + $0xc8] sm:$0xff]
      %v982 = vld [vmem:[%s6 + $0xd0] sm:$0xff]
      %v983 = vld [vmem:[%s6 + $0xd8] sm:$0xff]
      %v984 = vld [vmem:[%s6 + $0xe0] sm:$0xff]
      %v985 = vld [vmem:[%s6 + $0xe8] sm:$0xff]
      %v986 = vld [vmem:[%s6 + $0xf0] sm:$0xff]
      %v987 = vld [vmem:[%s6 + $0xf8] sm:$0xff]
      %v988 = vld [vmem:[%s6 + $0x100] sm:$0xff]
      %v989 = vld [vmem:[%s6 + $0x108] sm:$0xff]
      %v990 = vld [vmem:[%s6 + $0x110] sm:$0xff]
      %v991 = vld [vmem:[%s6 + $0x118] sm:$0xff]
      %v992 = vld [vmem:[%s6 + $0x120] sm:$0xff]
      %v993 = vld [vmem:[%s6 + $0x128] sm:$0xff]
      %v994 = vld [vmem:[%s6 + $0x130] sm:$0xff]
      %v995 = vld [vmem:[%s6 + $0x138] sm:$0xff]
      %v996 = vld [vmem:[%s6 + $0x140] sm:$0xff]
      %v997 = vld [vmem:[%s6 + $0x148] sm:$0xff]
      %v998 = vld [vmem:[%s6 + $0x150] sm:$0xff]
      %v999 = vld [vmem:[%s6 + $0x158] sm:$0xff]
      %v1000 = vld [vmem:[%s6 + $0x160] sm:$0xff]
      %v1001 = vld [vmem:[%s6 + $0x168] sm:$0xff]
      %v1002 = vld [vmem:[%s6 + $0x170] sm:$0xff]
      %v1003 = vld [vmem:[%s6 + $0x178] sm:$0xff]
      %v1004 = vld [vmem:[%s6 + $0x180] sm:$0xff]
      %v1005 = vld [vmem:[%s6 + $0x188] sm:$0xff]
      %v1006 = vld [vmem:[%s6 + $0x190] sm:$0xff]
      %v1007 = vld [vmem:[%s6 + $0x198] sm:$0xff]
      %v1008 = vld [vmem:[%s6 + $0x1a0] sm:$0xff]
      %v1009 = vld [vmem:[%s6 + $0x1a8] sm:$0xff]
      %v1010 = vld [vmem:[%s6 + $0x1b0] sm:$0xff]
      %v1011 = vld [vmem:[%s6 + $0x1b8] sm:$0xff]
      %v1012 = vld [vmem:[%s6 + $0x1c0] sm:$0xff]
      %v1013 = vld [vmem:[%s6 + $0x1c8] sm:$0xff]
      %v1014 = vld [vmem:[%s6 + $0x1d0] sm:$0xff]
      %v1015 = vld [vmem:[%s6 + $0x1d8] sm:$0xff]
      %v1016 = vld [vmem:[%s6 + $0x1e0] sm:$0xff]
      %v1017 = vld [vmem:[%s6 + $0x1e8] sm:$0xff]
      %v1018 = vld [vmem:[%s6 + $0x1f0] sm:$0xff]
      %v1019 = vld [vmem:[%s6 + $0x1f8] sm:$0xff]
      %v1020 = vld [vmem:[%s6 + $0x200] sm:$0xff]
      %v1021 = vld [vmem:[%s6 + $0x208] sm:$0xff]
      %v1022 = vld [vmem:[%s6 + $0x210] sm:$0xff]
      %v1023 = vld [vmem:[%s6 + $0x218] sm:$0xff]
      %v1024 = vld [vmem:[%s6 + $0x220] sm:$0xff]
      %v1025 = vld [vmem:[%s6 + $0x228] sm:$0xff]
      %v1026 = vld [vmem:[%s6 + $0x230] sm:$0xff]
      %v1027 = vld [vmem:[%s6 + $0x238] sm:$0xff]
      %v1028 = vld [vmem:[%s6 + $0x240] sm:$0xff]
      %v1029 = vld [vmem:[%s6 + $0x248] sm:$0xff]
      %v1030 = vld [vmem:[%s6 + $0x250] sm:$0xff]
      %v1031 = vld [vmem:[%s6 + $0x258] sm:$0xff]
      %v1032 = vld [vmem:[%s6 + $0x260] sm:$0xff]
      %v1033 = vld [vmem:[%s6 + $0x268] sm:$0xff]
      %v1034 = vld [vmem:[%s6 + $0x270] sm:$0xff]
      %v1035 = vld [vmem:[%s6 + $0x278] sm:$0xff]
      %v1036 = vld [vmem:[%s6 + $0x280] sm:$0xff]
      %v1037 = vld [vmem:[%s6 + $0x288] sm:$0xff]
      %v1038 = vld [vmem:[%s6 + $0x290] sm:$0xff]
      %v1039 = vld [vmem:[%s6 + $0x298] sm:$0xff]
      %v1040 = vld [vmem:[%s6 + $0x2a0] sm:$0xff]
      %v1041 = vld [vmem:[%s6 + $0x2a8] sm:$0xff]
      %v1042 = vld [vmem:[%s6 + $0x2b0] sm:$0xff]
      %v1043 = vld [vmem:[%s6 + $0x2b8] sm:$0xff]
      %v1044 = vld [vmem:[%s6 + $0x2c0] sm:$0xff]
      %v1045 = vld [vmem:[%s6 + $0x2c8] sm:$0xff]
      %v1046 = vld [vmem:[%s6 + $0x2d0] sm:$0xff]
      %v1047 = vld [vmem:[%s6 + $0x2d8] sm:$0xff]
      %v1048 = vld [vmem:[%s6 + $0x2e0] sm:$0xff]
      %v1049 = vld [vmem:[%s6 + $0x2e8] sm:$0xff]
      %v1050 = vld [vmem:[%s6 + $0x2f0] sm:$0xff]
      %v1051 = vld [vmem:[%s6 + $0x2f8] sm:$0xff]
      %v1052 = vld [vmem:[%s6 + $0x300] sm:$0xff]
      %v1053 = vld [vmem:[%s6 + $0x308] sm:$0xff]
      %v1054 = vld [vmem:[%s6 + $0x310] sm:$0xff]
      %v1055 = vld [vmem:[%s6 + $0x318] sm:$0xff]
      %v1056 = vld [vmem:[%s6 + $0x320] sm:$0xff]
      %v1057 = vld [vmem:[%s6 + $0x328] sm:$0xff]
      %v1058 = vld [vmem:[%s6 + $0x330] sm:$0xff]
      %v1059 = vld [vmem:[%s6 + $0x338] sm:$0xff]
      %v1060 = vld [vmem:[%s6 + $0x340] sm:$0xff]
      %v1061 = vld [vmem:[%s6 + $0x348] sm:$0xff]
      %v1062 = vld [vmem:[%s6 + $0x350] sm:$0xff]
      %v1063 = vld [vmem:[%s6 + $0x358] sm:$0xff]
      %v1064 = vld [vmem:[%s6 + $0x360] sm:$0xff]
      %v1065 = vld [vmem:[%s6 + $0x368] sm:$0xff]
      %v1066 = vld [vmem:[%s6 + $0x370] sm:$0xff]
      %v1067 = vld [vmem:[%s6 + $0x378] sm:$0xff]
      %v1068 = vld [vmem:[%s6 + $0x380] sm:$0xff]
      %v1069 = vld [vmem:[%s6 + $0x388] sm:$0xff]
      %v1070 = vld [vmem:[%s6 + $0x390] sm:$0xff]
      %v1071 = vld [vmem:[%s6 + $0x398] sm:$0xff]
      %v1072 = vld [vmem:[%s6 + $0x3a0] sm:$0xff]
      %v1073 = vld [vmem:[%s6 + $0x3a8] sm:$0xff]
      %v1074 = vld [vmem:[%s6 + $0x3b0] sm:$0xff]
      %v1075 = vld [vmem:[%s6 + $0x3b8] sm:$0xff]
      %v1076 = vld [vmem:[%s6 + $0x3c0] sm:$0xff]
      %v1077 = vld [vmem:[%s6 + $0x3c8] sm:$0xff]
      %v1078 = vld [vmem:[%s6 + $0x3d0] sm:$0xff]
      %v1079 = vld [vmem:[%s6 + $0x3d8] sm:$0xff]
      %v1080 = vld [vmem:[%s6 + $0x3e0] sm:$0xff]
      %v1081 = vld [vmem:[%s6 + $0x3e8] sm:$0xff]
      %v1082 = vld [vmem:[%s6 + $0x3f0] sm:$0xff]
      %v1083 = vld [vmem:[%s6 + $0x3f8] sm:$0xff]
      %1085 = vset.pattern.permute.xlu0 0
      %1086 = vperm.xlu0 %1085, %v956
      %v1087 = vpop.permute.xlu0 %1086
      %1090 = vset.pattern.permute.xlu0 0
      %1091 = vperm.xlu0 %1090, %v957
      %v1092 = vpop.permute.xlu0 %1091
      %1095 = vset.pattern.permute.xlu0 0
      %1096 = vperm.xlu0 %1095, %v958
      %v1097 = vpop.permute.xlu0 %1096
      %1100 = vset.pattern.permute.xlu0 0
      %1101 = vperm.xlu0 %1100, %v959
      %v1102 = vpop.permute.xlu0 %1101
      %1105 = vset.pattern.permute.xlu0 0
      %1106 = vperm.xlu0 %1105, %v960
      %v1107 = vpop.permute.xlu0 %1106
      %1110 = vset.pattern.permute.xlu0 0
      %1111 = vperm.xlu0 %1110, %v961
      %v1112 = vpop.permute.xlu0 %1111
      %1115 = vset.pattern.permute.xlu0 0
      %1116 = vperm.xlu0 %1115, %v962
      %v1117 = vpop.permute.xlu0 %1116
      %1120 = vset.pattern.permute.xlu0 0
      %1121 = vperm.xlu0 %1120, %v963
      %v1122 = vpop.permute.xlu0 %1121
      %1125 = vset.pattern.permute.xlu0 0
      %1126 = vperm.xlu0 %1125, %v964
      %v1127 = vpop.permute.xlu0 %1126
      %1130 = vset.pattern.permute.xlu0 0
      %1131 = vperm.xlu0 %1130, %v965
      %v1132 = vpop.permute.xlu0 %1131
      %1135 = vset.pattern.permute.xlu0 0
      %1136 = vperm.xlu0 %1135, %v966
      %v1137 = vpop.permute.xlu0 %1136
      %1140 = vset.pattern.permute.xlu0 0
      %1141 = vperm.xlu0 %1140, %v967
      %v1142 = vpop.permute.xlu0 %1141
      %1145 = vset.pattern.permute.xlu0 0
      %1146 = vperm.xlu0 %1145, %v968
      %v1147 = vpop.permute.xlu0 %1146
      %1150 = vset.pattern.permute.xlu0 0
      %1151 = vperm.xlu0 %1150, %v969
      %v1152 = vpop.permute.xlu0 %1151
      %1155 = vset.pattern.permute.xlu0 0
      %1156 = vperm.xlu0 %1155, %v970
      %v1157 = vpop.permute.xlu0 %1156
      %1160 = vset.pattern.permute.xlu0 0
      %1161 = vperm.xlu0 %1160, %v971
      %v1162 = vpop.permute.xlu0 %1161
      %1165 = vset.pattern.permute.xlu0 0
      %1166 = vperm.xlu0 %1165, %v972
      %v1167 = vpop.permute.xlu0 %1166
      %1170 = vset.pattern.permute.xlu0 0
      %1171 = vperm.xlu0 %1170, %v973
      %v1172 = vpop.permute.xlu0 %1171
      %1175 = vset.pattern.permute.xlu0 0
      %1176 = vperm.xlu0 %1175, %v974
      %v1177 = vpop.permute.xlu0 %1176
      %1180 = vset.pattern.permute.xlu0 0
      %1181 = vperm.xlu0 %1180, %v975
      %v1182 = vpop.permute.xlu0 %1181
      %1185 = vset.pattern.permute.xlu0 0
      %1186 = vperm.xlu0 %1185, %v976
      %v1187 = vpop.permute.xlu0 %1186
      %1190 = vset.pattern.permute.xlu0 0
      %1191 = vperm.xlu0 %1190, %v977
      %v1192 = vpop.permute.xlu0 %1191
      %1195 = vset.pattern.permute.xlu0 0
      %1196 = vperm.xlu0 %1195, %v978
      %v1197 = vpop.permute.xlu0 %1196
      %1200 = vset.pattern.permute.xlu0 0
      %1201 = vperm.xlu0 %1200, %v979
      %v1202 = vpop.permute.xlu0 %1201
      %1205 = vset.pattern.permute.xlu0 0
      %1206 = vperm.xlu0 %1205, %v980
      %v1207 = vpop.permute.xlu0 %1206
      %1210 = vset.pattern.permute.xlu0 0
      %1211 = vperm.xlu0 %1210, %v981
      %v1212 = vpop.permute.xlu0 %1211
      %1215 = vset.pattern.permute.xlu0 0
      %1216 = vperm.xlu0 %1215, %v982
      %v1217 = vpop.permute.xlu0 %1216
      %1220 = vset.pattern.permute.xlu0 0
      %1221 = vperm.xlu0 %1220, %v983
      %v1222 = vpop.permute.xlu0 %1221
      %1225 = vset.pattern.permute.xlu0 0
      %1226 = vperm.xlu0 %1225, %v984
      %v1227 = vpop.permute.xlu0 %1226
      %1230 = vset.pattern.permute.xlu0 0
      %1231 = vperm.xlu0 %1230, %v985
      %v1232 = vpop.permute.xlu0 %1231
      %1235 = vset.pattern.permute.xlu0 0
      %1236 = vperm.xlu0 %1235, %v986
      %v1237 = vpop.permute.xlu0 %1236
      %1240 = vset.pattern.permute.xlu0 0
      %1241 = vperm.xlu0 %1240, %v987
      %v1242 = vpop.permute.xlu0 %1241
      %1245 = vset.pattern.permute.xlu0 0
      %1246 = vperm.xlu0 %1245, %v988
      %v1247 = vpop.permute.xlu0 %1246
      %1250 = vset.pattern.permute.xlu0 0
      %1251 = vperm.xlu0 %1250, %v989
      %v1252 = vpop.permute.xlu0 %1251
      %1255 = vset.pattern.permute.xlu0 0
      %1256 = vperm.xlu0 %1255, %v990
      %v1257 = vpop.permute.xlu0 %1256
      %1260 = vset.pattern.permute.xlu0 0
      %1261 = vperm.xlu0 %1260, %v991
      %v1262 = vpop.permute.xlu0 %1261
      %1265 = vset.pattern.permute.xlu0 0
      %1266 = vperm.xlu0 %1265, %v992
      %v1267 = vpop.permute.xlu0 %1266
      %1270 = vset.pattern.permute.xlu0 0
      %1271 = vperm.xlu0 %1270, %v993
      %v1272 = vpop.permute.xlu0 %1271
      %1275 = vset.pattern.permute.xlu0 0
      %1276 = vperm.xlu0 %1275, %v994
      %v1277 = vpop.permute.xlu0 %1276
      %1280 = vset.pattern.permute.xlu0 0
      %1281 = vperm.xlu0 %1280, %v995
      %v1282 = vpop.permute.xlu0 %1281
      %1285 = vset.pattern.permute.xlu0 0
      %1286 = vperm.xlu0 %1285, %v996
      %v1287 = vpop.permute.xlu0 %1286
      %1290 = vset.pattern.permute.xlu0 0
      %1291 = vperm.xlu0 %1290, %v997
      %v1292 = vpop.permute.xlu0 %1291
      %1295 = vset.pattern.permute.xlu0 0
      %1296 = vperm.xlu0 %1295, %v998
      %v1297 = vpop.permute.xlu0 %1296
      %1300 = vset.pattern.permute.xlu0 0
      %1301 = vperm.xlu0 %1300, %v999
      %v1302 = vpop.permute.xlu0 %1301
      %1305 = vset.pattern.permute.xlu0 0
      %1306 = vperm.xlu0 %1305, %v1000
      %v1307 = vpop.permute.xlu0 %1306
      %1310 = vset.pattern.permute.xlu0 0
      %1311 = vperm.xlu0 %1310, %v1001
      %v1312 = vpop.permute.xlu0 %1311
      %1315 = vset.pattern.permute.xlu0 0
      %1316 = vperm.xlu0 %1315, %v1002
      %v1317 = vpop.permute.xlu0 %1316
      %1320 = vset.pattern.permute.xlu0 0
      %1321 = vperm.xlu0 %1320, %v1003
      %v1322 = vpop.permute.xlu0 %1321
      %1325 = vset.pattern.permute.xlu0 0
      %1326 = vperm.xlu0 %1325, %v1004
      %v1327 = vpop.permute.xlu0 %1326
      %1330 = vset.pattern.permute.xlu0 0
      %1331 = vperm.xlu0 %1330, %v1005
      %v1332 = vpop.permute.xlu0 %1331
      %1335 = vset.pattern.permute.xlu0 0
      %1336 = vperm.xlu0 %1335, %v1006
      %v1337 = vpop.permute.xlu0 %1336
      %1340 = vset.pattern.permute.xlu0 0
      %1341 = vperm.xlu0 %1340, %v1007
      %v1342 = vpop.permute.xlu0 %1341
      %1345 = vset.pattern.permute.xlu0 0
      %1346 = vperm.xlu0 %1345, %v1008
      %v1347 = vpop.permute.xlu0 %1346
      %1350 = vset.pattern.permute.xlu0 0
      %1351 = vperm.xlu0 %1350, %v1009
      %v1352 = vpop.permute.xlu0 %1351
      %1355 = vset.pattern.permute.xlu0 0
      %1356 = vperm.xlu0 %1355, %v1010
      %v1357 = vpop.permute.xlu0 %1356
      %1360 = vset.pattern.permute.xlu0 0
      %1361 = vperm.xlu0 %1360, %v1011
      %v1362 = vpop.permute.xlu0 %1361
      %1365 = vset.pattern.permute.xlu0 0
      %1366 = vperm.xlu0 %1365, %v1012
      %v1367 = vpop.permute.xlu0 %1366
      %1370 = vset.pattern.permute.xlu0 0
      %1371 = vperm.xlu0 %1370, %v1013
      %v1372 = vpop.permute.xlu0 %1371
      %1375 = vset.pattern.permute.xlu0 0
      %1376 = vperm.xlu0 %1375, %v1014
      %v1377 = vpop.permute.xlu0 %1376
      %1380 = vset.pattern.permute.xlu0 0
      %1381 = vperm.xlu0 %1380, %v1015
      %v1382 = vpop.permute.xlu0 %1381
      %1385 = vset.pattern.permute.xlu0 0
      %1386 = vperm.xlu0 %1385, %v1016
      %v1387 = vpop.permute.xlu0 %1386
      %1390 = vset.pattern.permute.xlu0 0
      %1391 = vperm.xlu0 %1390, %v1017
      %v1392 = vpop.permute.xlu0 %1391
      %1395 = vset.pattern.permute.xlu0 0
      %1396 = vperm.xlu0 %1395, %v1018
      %v1397 = vpop.permute.xlu0 %1396
      %1400 = vset.pattern.permute.xlu0 0
      %1401 = vperm.xlu0 %1400, %v1019
      %v1402 = vpop.permute.xlu0 %1401
      %1405 = vset.pattern.permute.xlu0 0
      %1406 = vperm.xlu0 %1405, %v1020
      %v1407 = vpop.permute.xlu0 %1406
      %1410 = vset.pattern.permute.xlu0 0
      %1411 = vperm.xlu0 %1410, %v1021
      %v1412 = vpop.permute.xlu0 %1411
      %1415 = vset.pattern.permute.xlu0 0
      %1416 = vperm.xlu0 %1415, %v1022
      %v1417 = vpop.permute.xlu0 %1416
      %1420 = vset.pattern.permute.xlu0 0
      %1421 = vperm.xlu0 %1420, %v1023
      %v1422 = vpop.permute.xlu0 %1421
      %1425 = vset.pattern.permute.xlu0 0
      %1426 = vperm.xlu0 %1425, %v1024
      %v1427 = vpop.permute.xlu0 %1426
      %1430 = vset.pattern.permute.xlu0 0
      %1431 = vperm.xlu0 %1430, %v1025
      %v1432 = vpop.permute.xlu0 %1431
      %1435 = vset.pattern.permute.xlu0 0
      %1436 = vperm.xlu0 %1435, %v1026
      %v1437 = vpop.permute.xlu0 %1436
      %1440 = vset.pattern.permute.xlu0 0
      %1441 = vperm.xlu0 %1440, %v1027
      %v1442 = vpop.permute.xlu0 %1441
      %1445 = vset.pattern.permute.xlu0 0
      %1446 = vperm.xlu0 %1445, %v1028
      %v1447 = vpop.permute.xlu0 %1446
      %1450 = vset.pattern.permute.xlu0 0
      %1451 = vperm.xlu0 %1450, %v1029
      %v1452 = vpop.permute.xlu0 %1451
      %1455 = vset.pattern.permute.xlu0 0
      %1456 = vperm.xlu0 %1455, %v1030
      %v1457 = vpop.permute.xlu0 %1456
      %1460 = vset.pattern.permute.xlu0 0
      %1461 = vperm.xlu0 %1460, %v1031
      %v1462 = vpop.permute.xlu0 %1461
      %1465 = vset.pattern.permute.xlu0 0
      %1466 = vperm.xlu0 %1465, %v1032
      %v1467 = vpop.permute.xlu0 %1466
      %1470 = vset.pattern.permute.xlu0 0
      %1471 = vperm.xlu0 %1470, %v1033
      %v1472 = vpop.permute.xlu0 %1471
      %1475 = vset.pattern.permute.xlu0 0
      %1476 = vperm.xlu0 %1475, %v1034
      %v1477 = vpop.permute.xlu0 %1476
      %1480 = vset.pattern.permute.xlu0 0
      %1481 = vperm.xlu0 %1480, %v1035
      %v1482 = vpop.permute.xlu0 %1481
      %1485 = vset.pattern.permute.xlu0 0
      %1486 = vperm.xlu0 %1485, %v1036
      %v1487 = vpop.permute.xlu0 %1486
      %1490 = vset.pattern.permute.xlu0 0
      %1491 = vperm.xlu0 %1490, %v1037
      %v1492 = vpop.permute.xlu0 %1491
      %1495 = vset.pattern.permute.xlu0 0
      %1496 = vperm.xlu0 %1495, %v1038
      %v1497 = vpop.permute.xlu0 %1496
      %1500 = vset.pattern.permute.xlu0 0
      %1501 = vperm.xlu0 %1500, %v1039
      %v1502 = vpop.permute.xlu0 %1501
      %1505 = vset.pattern.permute.xlu0 0
      %1506 = vperm.xlu0 %1505, %v1040
      %v1507 = vpop.permute.xlu0 %1506
      %1510 = vset.pattern.permute.xlu0 0
      %1511 = vperm.xlu0 %1510, %v1041
      %v1512 = vpop.permute.xlu0 %1511
      %1515 = vset.pattern.permute.xlu0 0
      %1516 = vperm.xlu0 %1515, %v1042
      %v1517 = vpop.permute.xlu0 %1516
      %1520 = vset.pattern.permute.xlu0 0
      %1521 = vperm.xlu0 %1520, %v1043
      %v1522 = vpop.permute.xlu0 %1521
      %1525 = vset.pattern.permute.xlu0 0
      %1526 = vperm.xlu0 %1525, %v1044
      %v1527 = vpop.permute.xlu0 %1526
      %1530 = vset.pattern.permute.xlu0 0
      %1531 = vperm.xlu0 %1530, %v1045
      %v1532 = vpop.permute.xlu0 %1531
      %1535 = vset.pattern.permute.xlu0 0
      %1536 = vperm.xlu0 %1535, %v1046
      %v1537 = vpop.permute.xlu0 %1536
      %1540 = vset.pattern.permute.xlu0 0
      %1541 = vperm.xlu0 %1540, %v1047
      %v1542 = vpop.permute.xlu0 %1541
      %1545 = vset.pattern.permute.xlu0 0
      %1546 = vperm.xlu0 %1545, %v1048
      %v1547 = vpop.permute.xlu0 %1546
      %1550 = vset.pattern.permute.xlu0 0
      %1551 = vperm.xlu0 %1550, %v1049
      %v1552 = vpop.permute.xlu0 %1551
      %1555 = vset.pattern.permute.xlu0 0
      %1556 = vperm.xlu0 %1555, %v1050
      %v1557 = vpop.permute.xlu0 %1556
      %1560 = vset.pattern.permute.xlu0 0
      %1561 = vperm.xlu0 %1560, %v1051
      %v1562 = vpop.permute.xlu0 %1561
      %1565 = vset.pattern.permute.xlu0 0
      %1566 = vperm.xlu0 %1565, %v1052
      %v1567 = vpop.permute.xlu0 %1566
      %1570 = vset.pattern.permute.xlu0 0
      %1571 = vperm.xlu0 %1570, %v1053
      %v1572 = vpop.permute.xlu0 %1571
      %1575 = vset.pattern.permute.xlu0 0
      %1576 = vperm.xlu0 %1575, %v1054
      %v1577 = vpop.permute.xlu0 %1576
      %1580 = vset.pattern.permute.xlu0 0
      %1581 = vperm.xlu0 %1580, %v1055
      %v1582 = vpop.permute.xlu0 %1581
      %1585 = vset.pattern.permute.xlu0 0
      %1586 = vperm.xlu0 %1585, %v1056
      %v1587 = vpop.permute.xlu0 %1586
      %1590 = vset.pattern.permute.xlu0 0
      %1591 = vperm.xlu0 %1590, %v1057
      %v1592 = vpop.permute.xlu0 %1591
      %1595 = vset.pattern.permute.xlu0 0
      %1596 = vperm.xlu0 %1595, %v1058
      %v1597 = vpop.permute.xlu0 %1596
      %1600 = vset.pattern.permute.xlu0 0
      %1601 = vperm.xlu0 %1600, %v1059
      %v1602 = vpop.permute.xlu0 %1601
      %1605 = vset.pattern.permute.xlu0 0
      %1606 = vperm.xlu0 %1605, %v1060
      %v1607 = vpop.permute.xlu0 %1606
      %1610 = vset.pattern.permute.xlu0 0
      %1611 = vperm.xlu0 %1610, %v1061
      %v1612 = vpop.permute.xlu0 %1611
      %1615 = vset.pattern.permute.xlu0 0
      %1616 = vperm.xlu0 %1615, %v1062
      %v1617 = vpop.permute.xlu0 %1616
      %1620 = vset.pattern.permute.xlu0 0
      %1621 = vperm.xlu0 %1620, %v1063
      %v1622 = vpop.permute.xlu0 %1621
      %1625 = vset.pattern.permute.xlu0 0
      %1626 = vperm.xlu0 %1625, %v1064
      %v1627 = vpop.permute.xlu0 %1626
      %1630 = vset.pattern.permute.xlu0 0
      %1631 = vperm.xlu0 %1630, %v1065
      %v1632 = vpop.permute.xlu0 %1631
      %1635 = vset.pattern.permute.xlu0 0
      %1636 = vperm.xlu0 %1635, %v1066
      %v1637 = vpop.permute.xlu0 %1636
      %1640 = vset.pattern.permute.xlu0 0
      %1641 = vperm.xlu0 %1640, %v1067
      %v1642 = vpop.permute.xlu0 %1641
      %1645 = vset.pattern.permute.xlu0 0
      %1646 = vperm.xlu0 %1645, %v1068
      %v1647 = vpop.permute.xlu0 %1646
      %1650 = vset.pattern.permute.xlu0 0
      %1651 = vperm.xlu0 %1650, %v1069
      %v1652 = vpop.permute.xlu0 %1651
      %1655 = vset.pattern.permute.xlu0 0
      %1656 = vperm.xlu0 %1655, %v1070
      %v1657 = vpop.permute.xlu0 %1656
      %1660 = vset.pattern.permute.xlu0 0
      %1661 = vperm.xlu0 %1660, %v1071
      %v1662 = vpop.permute.xlu0 %1661
      %1665 = vset.pattern.permute.xlu0 0
      %1666 = vperm.xlu0 %1665, %v1072
      %v1667 = vpop.permute.xlu0 %1666
      %1670 = vset.pattern.permute.xlu0 0
      %1671 = vperm.xlu0 %1670, %v1073
      %v1672 = vpop.permute.xlu0 %1671
      %1675 = vset.pattern.permute.xlu0 0
      %1676 = vperm.xlu0 %1675, %v1074
      %v1677 = vpop.permute.xlu0 %1676
      %1680 = vset.pattern.permute.xlu0 0
      %1681 = vperm.xlu0 %1680, %v1075
      %v1682 = vpop.permute.xlu0 %1681
      %1685 = vset.pattern.permute.xlu0 0
      %1686 = vperm.xlu0 %1685, %v1076
      %v1687 = vpop.permute.xlu0 %1686
      %1690 = vset.pattern.permute.xlu0 0
      %1691 = vperm.xlu0 %1690, %v1077
      %v1692 = vpop.permute.xlu0 %1691
      %1695 = vset.pattern.permute.xlu0 0
      %1696 = vperm.xlu0 %1695, %v1078
      %v1697 = vpop.permute.xlu0 %1696
      %1700 = vset.pattern.permute.xlu0 0
      %1701 = vperm.xlu0 %1700, %v1079
      %v1702 = vpop.permute.xlu0 %1701
      %1705 = vset.pattern.permute.xlu0 0
      %1706 = vperm.xlu0 %1705, %v1080
      %v1707 = vpop.permute.xlu0 %1706
      %1710 = vset.pattern.permute.xlu0 0
      %1711 = vperm.xlu0 %1710, %v1081
      %v1712 = vpop.permute.xlu0 %1711
      %1715 = vset.pattern.permute.xlu0 0
      %1716 = vperm.xlu0 %1715, %v1082
      %v1717 = vpop.permute.xlu0 %1716
      %1720 = vset.pattern.permute.xlu0 0
      %1721 = vperm.xlu0 %1720, %v1083
      %v1722 = vpop.permute.xlu0 %1721
      %v1852 = vunpack.c.l.b16 %v812
      %v1853 = vunpack.c.l.b16 %v813
      %v1854 = vunpack.c.l.b16 %v814
      %v1855 = vunpack.c.l.b16 %v815
      %v1856 = vunpack.c.l.b16 %v816
      %v1857 = vunpack.c.l.b16 %v817
      %v1858 = vunpack.c.l.b16 %v818
      %v1859 = vunpack.c.l.b16 %v819
      %v1860 = vunpack.c.l.b16 %v820
      %v1861 = vunpack.c.l.b16 %v821
      %v1862 = vunpack.c.l.b16 %v822
      %v1863 = vunpack.c.l.b16 %v823
      %v1864 = vunpack.c.l.b16 %v824
      %v1865 = vunpack.c.l.b16 %v825
      %v1866 = vunpack.c.l.b16 %v826
      %v1867 = vunpack.c.l.b16 %v827
      %v1868 = vunpack.c.l.b16 %v828
      %v1869 = vunpack.c.l.b16 %v829
      %v1870 = vunpack.c.l.b16 %v830
      %v1871 = vunpack.c.l.b16 %v831
      %v1872 = vunpack.c.l.b16 %v832
      %v1873 = vunpack.c.l.b16 %v833
      %v1874 = vunpack.c.l.b16 %v834
      %v1875 = vunpack.c.l.b16 %v835
      %v1876 = vunpack.c.l.b16 %v836
      %v1877 = vunpack.c.l.b16 %v837
      %v1878 = vunpack.c.l.b16 %v838
      %v1879 = vunpack.c.l.b16 %v839
      %v1880 = vunpack.c.l.b16 %v840
      %v1881 = vunpack.c.l.b16 %v841
      %v1882 = vunpack.c.l.b16 %v842
      %v1883 = vunpack.c.l.b16 %v843
      %v1884 = vunpack.c.l.b16 %v844
      %v1885 = vunpack.c.l.b16 %v845
      %v1886 = vunpack.c.l.b16 %v846
      %v1887 = vunpack.c.l.b16 %v847
      %v1888 = vunpack.c.l.b16 %v848
      %v1889 = vunpack.c.l.b16 %v849
      %v1890 = vunpack.c.l.b16 %v850
      %v1891 = vunpack.c.l.b16 %v851
      %v1892 = vunpack.c.l.b16 %v852
      %v1893 = vunpack.c.l.b16 %v853
      %v1894 = vunpack.c.l.b16 %v854
      %v1895 = vunpack.c.l.b16 %v855
      %v1896 = vunpack.c.l.b16 %v856
      %v1897 = vunpack.c.l.b16 %v857
      %v1898 = vunpack.c.l.b16 %v858
      %v1899 = vunpack.c.l.b16 %v859
      %v1900 = vunpack.c.l.b16 %v860
      %v1901 = vunpack.c.l.b16 %v861
      %v1902 = vunpack.c.l.b16 %v862
      %v1903 = vunpack.c.l.b16 %v863
      %v1904 = vunpack.c.l.b16 %v864
      %v1905 = vunpack.c.l.b16 %v865
      %v1906 = vunpack.c.l.b16 %v866
      %v1907 = vunpack.c.l.b16 %v867
      %v1908 = vunpack.c.l.b16 %v868
      %v1909 = vunpack.c.l.b16 %v869
      %v1910 = vunpack.c.l.b16 %v870
      %v1911 = vunpack.c.l.b16 %v871
      %v1912 = vunpack.c.l.b16 %v872
      %v1913 = vunpack.c.l.b16 %v873
      %v1914 = vunpack.c.l.b16 %v874
      %v1915 = vunpack.c.l.b16 %v875
      %v1916 = vunpack.c.l.b16 %v876
      %v1917 = vunpack.c.l.b16 %v877
      %v1918 = vunpack.c.l.b16 %v878
      %v1919 = vunpack.c.l.b16 %v879
      %v1920 = vunpack.c.l.b16 %v880
      %v1921 = vunpack.c.l.b16 %v881
      %v1922 = vunpack.c.l.b16 %v882
      %v1923 = vunpack.c.l.b16 %v883
      %v1924 = vunpack.c.l.b16 %v884
      %v1925 = vunpack.c.l.b16 %v885
      %v1926 = vunpack.c.l.b16 %v886
      %v1927 = vunpack.c.l.b16 %v887
      %v1928 = vunpack.c.l.b16 %v888
      %v1929 = vunpack.c.l.b16 %v889
      %v1930 = vunpack.c.l.b16 %v890
      %v1931 = vunpack.c.l.b16 %v891
      %v1932 = vunpack.c.l.b16 %v892
      %v1933 = vunpack.c.l.b16 %v893
      %v1934 = vunpack.c.l.b16 %v894
      %v1935 = vunpack.c.l.b16 %v895
      %v1936 = vunpack.c.l.b16 %v896
      %v1937 = vunpack.c.l.b16 %v897
      %v1938 = vunpack.c.l.b16 %v898
      %v1939 = vunpack.c.l.b16 %v899
      %v1940 = vunpack.c.l.b16 %v900
      %v1941 = vunpack.c.l.b16 %v901
      %v1942 = vunpack.c.l.b16 %v902
      %v1943 = vunpack.c.l.b16 %v903
      %v1944 = vunpack.c.l.b16 %v904
      %v1945 = vunpack.c.l.b16 %v905
      %v1946 = vunpack.c.l.b16 %v906
      %v1947 = vunpack.c.l.b16 %v907
      %v1948 = vunpack.c.l.b16 %v908
      %v1949 = vunpack.c.l.b16 %v909
      %v1950 = vunpack.c.l.b16 %v910
      %v1951 = vunpack.c.l.b16 %v911
      %v1952 = vunpack.c.l.b16 %v912
      %v1953 = vunpack.c.l.b16 %v913
      %v1954 = vunpack.c.l.b16 %v914
      %v1955 = vunpack.c.l.b16 %v915
      %v1956 = vunpack.c.l.b16 %v916
      %v1957 = vunpack.c.l.b16 %v917
      %v1958 = vunpack.c.l.b16 %v918
      %v1959 = vunpack.c.l.b16 %v919
      %v1960 = vunpack.c.l.b16 %v920
      %v1961 = vunpack.c.l.b16 %v921
      %v1962 = vunpack.c.l.b16 %v922
      %v1963 = vunpack.c.l.b16 %v923
      %v1964 = vunpack.c.l.b16 %v924
      %v1965 = vunpack.c.l.b16 %v925
      %v1966 = vunpack.c.l.b16 %v926
      %v1967 = vunpack.c.l.b16 %v927
      %v1968 = vunpack.c.l.b16 %v928
      %v1969 = vunpack.c.l.b16 %v929
      %v1970 = vunpack.c.l.b16 %v930
      %v1971 = vunpack.c.l.b16 %v931
      %v1972 = vunpack.c.l.b16 %v932
      %v1973 = vunpack.c.l.b16 %v933
      %v1974 = vunpack.c.l.b16 %v934
      %v1975 = vunpack.c.l.b16 %v935
      %v1976 = vunpack.c.l.b16 %v936
      %v1977 = vunpack.c.l.b16 %v937
      %v1978 = vunpack.c.l.b16 %v938
      %v1979 = vunpack.c.l.b16 %v939
      %v1980 = vpack.c.b16 %v1853, %v1852
      %v1981 = vpack.c.b16 %v1855, %v1854
      %v1982 = vpack.c.b16 %v1857, %v1856
      %v1983 = vpack.c.b16 %v1859, %v1858
      %v1984 = vpack.c.b16 %v1861, %v1860
      %v1985 = vpack.c.b16 %v1863, %v1862
      %v1986 = vpack.c.b16 %v1865, %v1864
      %v1987 = vpack.c.b16 %v1867, %v1866
      %v1988 = vpack.c.b16 %v1869, %v1868
      %v1989 = vpack.c.b16 %v1871, %v1870
      %v1990 = vpack.c.b16 %v1873, %v1872
      %v1991 = vpack.c.b16 %v1875, %v1874
      %v1992 = vpack.c.b16 %v1877, %v1876
      %v1993 = vpack.c.b16 %v1879, %v1878
      %v1994 = vpack.c.b16 %v1881, %v1880
      %v1995 = vpack.c.b16 %v1883, %v1882
      %v1996 = vpack.c.b16 %v1885, %v1884
      %v1997 = vpack.c.b16 %v1887, %v1886
      %v1998 = vpack.c.b16 %v1889, %v1888
      %v1999 = vpack.c.b16 %v1891, %v1890
      %v2000 = vpack.c.b16 %v1893, %v1892
      %v2001 = vpack.c.b16 %v1895, %v1894
      %v2002 = vpack.c.b16 %v1897, %v1896
      %v2003 = vpack.c.b16 %v1899, %v1898
      %v2004 = vpack.c.b16 %v1901, %v1900
      %v2005 = vpack.c.b16 %v1903, %v1902
      %v2006 = vpack.c.b16 %v1905, %v1904
      %v2007 = vpack.c.b16 %v1907, %v1906
      %v2008 = vpack.c.b16 %v1909, %v1908
      %v2009 = vpack.c.b16 %v1911, %v1910
      %v2010 = vpack.c.b16 %v1913, %v1912
      %v2011 = vpack.c.b16 %v1915, %v1914
      %v2012 = vpack.c.b16 %v1917, %v1916
      %v2013 = vpack.c.b16 %v1919, %v1918
      %v2014 = vpack.c.b16 %v1921, %v1920
      %v2015 = vpack.c.b16 %v1923, %v1922
      %v2016 = vpack.c.b16 %v1925, %v1924
      %v2017 = vpack.c.b16 %v1927, %v1926
      %v2018 = vpack.c.b16 %v1929, %v1928
      %v2019 = vpack.c.b16 %v1931, %v1930
      %v2020 = vpack.c.b16 %v1933, %v1932
      %v2021 = vpack.c.b16 %v1935, %v1934
      %v2022 = vpack.c.b16 %v1937, %v1936
      %v2023 = vpack.c.b16 %v1939, %v1938
      %v2024 = vpack.c.b16 %v1941, %v1940
      %v2025 = vpack.c.b16 %v1943, %v1942
      %v2026 = vpack.c.b16 %v1945, %v1944
      %v2027 = vpack.c.b16 %v1947, %v1946
      %v2028 = vpack.c.b16 %v1949, %v1948
      %v2029 = vpack.c.b16 %v1951, %v1950
      %v2030 = vpack.c.b16 %v1953, %v1952
      %v2031 = vpack.c.b16 %v1955, %v1954
      %v2032 = vpack.c.b16 %v1957, %v1956
      %v2033 = vpack.c.b16 %v1959, %v1958
      %v2034 = vpack.c.b16 %v1961, %v1960
      %v2035 = vpack.c.b16 %v1963, %v1962
      %v2036 = vpack.c.b16 %v1965, %v1964
      %v2037 = vpack.c.b16 %v1967, %v1966
      %v2038 = vpack.c.b16 %v1969, %v1968
      %v2039 = vpack.c.b16 %v1971, %v1970
      %v2040 = vpack.c.b16 %v1973, %v1972
      %v2041 = vpack.c.b16 %v1975, %v1974
      %v2042 = vpack.c.b16 %v1977, %v1976
      %v2043 = vpack.c.b16 %v1979, %v1978
      %2108 = vmatpush.bf16.msra.mxu0 %v954
      %2109 = vmatpush.bf16.msra.mxu0 %v952
      %2110 = vmatpush.bf16.msra.mxu0 %v950
      %2111 = vmatpush.bf16.msra.mxu0 %v948
      %2112 = vmatpush.bf16.msra.mxu0 %v946
      %2113 = vmatpush.bf16.msra.mxu0 %v944
      %2114 = vmatpush.bf16.msra.mxu0 %v942
      %2115 = vmatpush.bf16.msra.mxu0 %v940
      %2116 = vmatmul.bf16.gmra.mxu0 %v1980
      %v2117 = vpop.f32.mrf.mxu0
      %v2118 = vadd.f32 %v1087, %v2117
      %v2119 = vpop.f32.mrf.mxu0
      %v2120 = vadd.f32 %v1092, %v2119
      %2121 = vmatmul.bf16.gmra.mxu0 %v1981
      %v2122 = vpop.f32.mrf.mxu0
      %v2123 = vadd.f32 %v1097, %v2122
      %v2124 = vpop.f32.mrf.mxu0
      %v2125 = vadd.f32 %v1102, %v2124
      %2126 = vmatmul.bf16.gmra.mxu0 %v1982
      %v2127 = vpop.f32.mrf.mxu0
      %v2128 = vadd.f32 %v1107, %v2127
      %v2129 = vpop.f32.mrf.mxu0
      %v2130 = vadd.f32 %v1112, %v2129
      %2131 = vmatmul.bf16.gmra.mxu0 %v1983
      %v2132 = vpop.f32.mrf.mxu0
      %v2133 = vadd.f32 %v1117, %v2132
      %v2134 = vpop.f32.mrf.mxu0
      %v2135 = vadd.f32 %v1122, %v2134
      %2136 = vmatmul.bf16.gmra.mxu0 %v1984
      %v2137 = vpop.f32.mrf.mxu0
      %v2138 = vadd.f32 %v1127, %v2137
      %v2139 = vpop.f32.mrf.mxu0
      %v2140 = vadd.f32 %v1132, %v2139
      %2141 = vmatmul.bf16.gmra.mxu0 %v1985
      %v2142 = vpop.f32.mrf.mxu0
      %v2143 = vadd.f32 %v1137, %v2142
      %v2144 = vpop.f32.mrf.mxu0
      %v2145 = vadd.f32 %v1142, %v2144
      %2146 = vmatmul.bf16.gmra.mxu0 %v1986
      %v2147 = vpop.f32.mrf.mxu0
      %v2148 = vadd.f32 %v1147, %v2147
      %v2149 = vpop.f32.mrf.mxu0
      %v2150 = vadd.f32 %v1152, %v2149
      %2151 = vmatmul.bf16.gmra.mxu0 %v1987
      %v2152 = vpop.f32.mrf.mxu0
      %v2153 = vadd.f32 %v1157, %v2152
      %v2154 = vpop.f32.mrf.mxu0
      %v2155 = vadd.f32 %v1162, %v2154
      %2156 = vmatmul.bf16.gmra.mxu0 %v1988
      %v2157 = vpop.f32.mrf.mxu0
      %v2158 = vadd.f32 %v1167, %v2157
      %v2159 = vpop.f32.mrf.mxu0
      %v2160 = vadd.f32 %v1172, %v2159
      %2161 = vmatmul.bf16.gmra.mxu0 %v1989
      %v2162 = vpop.f32.mrf.mxu0
      %v2163 = vadd.f32 %v1177, %v2162
      %v2164 = vpop.f32.mrf.mxu0
      %v2165 = vadd.f32 %v1182, %v2164
      %2166 = vmatmul.bf16.gmra.mxu0 %v1990
      %v2167 = vpop.f32.mrf.mxu0
      %v2168 = vadd.f32 %v1187, %v2167
      %v2169 = vpop.f32.mrf.mxu0
      %v2170 = vadd.f32 %v1192, %v2169
      %2171 = vmatmul.bf16.gmra.mxu0 %v1991
      %v2172 = vpop.f32.mrf.mxu0
      %v2173 = vadd.f32 %v1197, %v2172
      %v2174 = vpop.f32.mrf.mxu0
      %v2175 = vadd.f32 %v1202, %v2174
      %2176 = vmatmul.bf16.gmra.mxu0 %v1992
      %v2177 = vpop.f32.mrf.mxu0
      %v2178 = vadd.f32 %v1207, %v2177
      %v2179 = vpop.f32.mrf.mxu0
      %v2180 = vadd.f32 %v1212, %v2179
      %2181 = vmatmul.bf16.gmra.mxu0 %v1993
      %v2182 = vpop.f32.mrf.mxu0
      %v2183 = vadd.f32 %v1217, %v2182
      %v2184 = vpop.f32.mrf.mxu0
      %v2185 = vadd.f32 %v1222, %v2184
      %2186 = vmatmul.bf16.gmra.mxu0 %v1994
      %v2187 = vpop.f32.mrf.mxu0
      %v2188 = vadd.f32 %v1227, %v2187
      %v2189 = vpop.f32.mrf.mxu0
      %v2190 = vadd.f32 %v1232, %v2189
      %2191 = vmatmul.bf16.gmra.mxu0 %v1995
      %v2192 = vpop.f32.mrf.mxu0
      %v2193 = vadd.f32 %v1237, %v2192
      %v2194 = vpop.f32.mrf.mxu0
      %v2195 = vadd.f32 %v1242, %v2194
      %2196 = vmatmul.bf16.gmra.mxu0 %v1996
      %v2197 = vpop.f32.mrf.mxu0
      %v2198 = vadd.f32 %v1247, %v2197
      %v2199 = vpop.f32.mrf.mxu0
      %v2200 = vadd.f32 %v1252, %v2199
      %2201 = vmatmul.bf16.gmra.mxu0 %v1997
      %v2202 = vpop.f32.mrf.mxu0
      %v2203 = vadd.f32 %v1257, %v2202
      %v2204 = vpop.f32.mrf.mxu0
      %v2205 = vadd.f32 %v1262, %v2204
      %2206 = vmatmul.bf16.gmra.mxu0 %v1998
      %v2207 = vpop.f32.mrf.mxu0
      %v2208 = vadd.f32 %v1267, %v2207
      %v2209 = vpop.f32.mrf.mxu0
      %v2210 = vadd.f32 %v1272, %v2209
      %2211 = vmatmul.bf16.gmra.mxu0 %v1999
      %v2212 = vpop.f32.mrf.mxu0
      %v2213 = vadd.f32 %v1277, %v2212
      %v2214 = vpop.f32.mrf.mxu0
      %v2215 = vadd.f32 %v1282, %v2214
      %2216 = vmatmul.bf16.gmra.mxu0 %v2000
      %v2217 = vpop.f32.mrf.mxu0
      %v2218 = vadd.f32 %v1287, %v2217
      %v2219 = vpop.f32.mrf.mxu0
      %v2220 = vadd.f32 %v1292, %v2219
      %2221 = vmatmul.bf16.gmra.mxu0 %v2001
      %v2222 = vpop.f32.mrf.mxu0
      %v2223 = vadd.f32 %v1297, %v2222
      %v2224 = vpop.f32.mrf.mxu0
      %v2225 = vadd.f32 %v1302, %v2224
      %2226 = vmatmul.bf16.gmra.mxu0 %v2002
      %v2227 = vpop.f32.mrf.mxu0
      %v2228 = vadd.f32 %v1307, %v2227
      %v2229 = vpop.f32.mrf.mxu0
      %v2230 = vadd.f32 %v1312, %v2229
      %2231 = vmatmul.bf16.gmra.mxu0 %v2003
      %v2232 = vpop.f32.mrf.mxu0
      %v2233 = vadd.f32 %v1317, %v2232
      %v2234 = vpop.f32.mrf.mxu0
      %v2235 = vadd.f32 %v1322, %v2234
      %2236 = vmatmul.bf16.gmra.mxu0 %v2004
      %v2237 = vpop.f32.mrf.mxu0
      %v2238 = vadd.f32 %v1327, %v2237
      %v2239 = vpop.f32.mrf.mxu0
      %v2240 = vadd.f32 %v1332, %v2239
      %2241 = vmatmul.bf16.gmra.mxu0 %v2005
      %v2242 = vpop.f32.mrf.mxu0
      %v2243 = vadd.f32 %v1337, %v2242
      %v2244 = vpop.f32.mrf.mxu0
      %v2245 = vadd.f32 %v1342, %v2244
      %2246 = vmatmul.bf16.gmra.mxu0 %v2006
      %v2247 = vpop.f32.mrf.mxu0
      %v2248 = vadd.f32 %v1347, %v2247
      %v2249 = vpop.f32.mrf.mxu0
      %v2250 = vadd.f32 %v1352, %v2249
      %2251 = vmatmul.bf16.gmra.mxu0 %v2007
      %v2252 = vpop.f32.mrf.mxu0
      %v2253 = vadd.f32 %v1357, %v2252
      %v2254 = vpop.f32.mrf.mxu0
      %v2255 = vadd.f32 %v1362, %v2254
      %2256 = vmatmul.bf16.gmra.mxu0 %v2008
      %v2257 = vpop.f32.mrf.mxu0
      %v2258 = vadd.f32 %v1367, %v2257
      %v2259 = vpop.f32.mrf.mxu0
      %v2260 = vadd.f32 %v1372, %v2259
      %2261 = vmatmul.bf16.gmra.mxu0 %v2009
      %v2262 = vpop.f32.mrf.mxu0
      %v2263 = vadd.f32 %v1377, %v2262
      %v2264 = vpop.f32.mrf.mxu0
      %v2265 = vadd.f32 %v1382, %v2264
      %2266 = vmatmul.bf16.gmra.mxu0 %v2010
      %v2267 = vpop.f32.mrf.mxu0
      %v2268 = vadd.f32 %v1387, %v2267
      %v2269 = vpop.f32.mrf.mxu0
      %v2270 = vadd.f32 %v1392, %v2269
      %2271 = vmatmul.bf16.gmra.mxu0 %v2011
      %v2272 = vpop.f32.mrf.mxu0
      %v2273 = vadd.f32 %v1397, %v2272
      %v2274 = vpop.f32.mrf.mxu0
      %v2275 = vadd.f32 %v1402, %v2274
      %2276 = vmatmul.bf16.gmra.mxu0 %v2012
      %v2277 = vpop.f32.mrf.mxu0
      %v2278 = vadd.f32 %v1407, %v2277
      %v2279 = vpop.f32.mrf.mxu0
      %v2280 = vadd.f32 %v1412, %v2279
      %2281 = vmatmul.bf16.gmra.mxu0 %v2013
      %v2282 = vpop.f32.mrf.mxu0
      %v2283 = vadd.f32 %v1417, %v2282
      %v2284 = vpop.f32.mrf.mxu0
      %v2285 = vadd.f32 %v1422, %v2284
      %2286 = vmatmul.bf16.gmra.mxu0 %v2014
      %v2287 = vpop.f32.mrf.mxu0
      %v2288 = vadd.f32 %v1427, %v2287
      %v2289 = vpop.f32.mrf.mxu0
      %v2290 = vadd.f32 %v1432, %v2289
      %2291 = vmatmul.bf16.gmra.mxu0 %v2015
      %v2292 = vpop.f32.mrf.mxu0
      %v2293 = vadd.f32 %v1437, %v2292
      %v2294 = vpop.f32.mrf.mxu0
      %v2295 = vadd.f32 %v1442, %v2294
      %2296 = vmatmul.bf16.gmra.mxu0 %v2016
      %v2297 = vpop.f32.mrf.mxu0
      %v2298 = vadd.f32 %v1447, %v2297
      %v2299 = vpop.f32.mrf.mxu0
      %v2300 = vadd.f32 %v1452, %v2299
      %2301 = vmatmul.bf16.gmra.mxu0 %v2017
      %v2302 = vpop.f32.mrf.mxu0
      %v2303 = vadd.f32 %v1457, %v2302
      %v2304 = vpop.f32.mrf.mxu0
      %v2305 = vadd.f32 %v1462, %v2304
      %2306 = vmatmul.bf16.gmra.mxu0 %v2018
      %v2307 = vpop.f32.mrf.mxu0
      %v2308 = vadd.f32 %v1467, %v2307
      %v2309 = vpop.f32.mrf.mxu0
      %v2310 = vadd.f32 %v1472, %v2309
      %2311 = vmatmul.bf16.gmra.mxu0 %v2019
      %v2312 = vpop.f32.mrf.mxu0
      %v2313 = vadd.f32 %v1477, %v2312
      %v2314 = vpop.f32.mrf.mxu0
      %v2315 = vadd.f32 %v1482, %v2314
      %2316 = vmatmul.bf16.gmra.mxu0 %v2020
      %v2317 = vpop.f32.mrf.mxu0
      %v2318 = vadd.f32 %v1487, %v2317
      %v2319 = vpop.f32.mrf.mxu0
      %v2320 = vadd.f32 %v1492, %v2319
      %2321 = vmatmul.bf16.gmra.mxu0 %v2021
      %v2322 = vpop.f32.mrf.mxu0
      %v2323 = vadd.f32 %v1497, %v2322
      %v2324 = vpop.f32.mrf.mxu0
      %v2325 = vadd.f32 %v1502, %v2324
      %2326 = vmatmul.bf16.gmra.mxu0 %v2022
      %v2327 = vpop.f32.mrf.mxu0
      %v2328 = vadd.f32 %v1507, %v2327
      %v2329 = vpop.f32.mrf.mxu0
      %v2330 = vadd.f32 %v1512, %v2329
      %2331 = vmatmul.bf16.gmra.mxu0 %v2023
      %v2332 = vpop.f32.mrf.mxu0
      %v2333 = vadd.f32 %v1517, %v2332
      %v2334 = vpop.f32.mrf.mxu0
      %v2335 = vadd.f32 %v1522, %v2334
      %2336 = vmatmul.bf16.gmra.mxu0 %v2024
      %v2337 = vpop.f32.mrf.mxu0
      %v2338 = vadd.f32 %v1527, %v2337
      %v2339 = vpop.f32.mrf.mxu0
      %v2340 = vadd.f32 %v1532, %v2339
      %2341 = vmatmul.bf16.gmra.mxu0 %v2025
      %v2342 = vpop.f32.mrf.mxu0
      %v2343 = vadd.f32 %v1537, %v2342
      %v2344 = vpop.f32.mrf.mxu0
      %v2345 = vadd.f32 %v1542, %v2344
      %2346 = vmatmul.bf16.gmra.mxu0 %v2026
      %v2347 = vpop.f32.mrf.mxu0
      %v2348 = vadd.f32 %v1547, %v2347
      %v2349 = vpop.f32.mrf.mxu0
      %v2350 = vadd.f32 %v1552, %v2349
      %2351 = vmatmul.bf16.gmra.mxu0 %v2027
      %v2352 = vpop.f32.mrf.mxu0
      %v2353 = vadd.f32 %v1557, %v2352
      %v2354 = vpop.f32.mrf.mxu0
      %v2355 = vadd.f32 %v1562, %v2354
      %2356 = vmatmul.bf16.gmra.mxu0 %v2028
      %v2357 = vpop.f32.mrf.mxu0
      %v2358 = vadd.f32 %v1567, %v2357
      %v2359 = vpop.f32.mrf.mxu0
      %v2360 = vadd.f32 %v1572, %v2359
      %2361 = vmatmul.bf16.gmra.mxu0 %v2029
      %v2362 = vpop.f32.mrf.mxu0
      %v2363 = vadd.f32 %v1577, %v2362
      %v2364 = vpop.f32.mrf.mxu0
      %v2365 = vadd.f32 %v1582, %v2364
      %2366 = vmatmul.bf16.gmra.mxu0 %v2030
      %v2367 = vpop.f32.mrf.mxu0
      %v2368 = vadd.f32 %v1587, %v2367
      %v2369 = vpop.f32.mrf.mxu0
      %v2370 = vadd.f32 %v1592, %v2369
      %2371 = vmatmul.bf16.gmra.mxu0 %v2031
      %v2372 = vpop.f32.mrf.mxu0
      %v2373 = vadd.f32 %v1597, %v2372
      %v2374 = vpop.f32.mrf.mxu0
      %v2375 = vadd.f32 %v1602, %v2374
      %2376 = vmatmul.bf16.gmra.mxu0 %v2032
      %v2377 = vpop.f32.mrf.mxu0
      %v2378 = vadd.f32 %v1607, %v2377
      %v2379 = vpop.f32.mrf.mxu0
      %v2380 = vadd.f32 %v1612, %v2379
      %2381 = vmatmul.bf16.gmra.mxu0 %v2033
      %v2382 = vpop.f32.mrf.mxu0
      %v2383 = vadd.f32 %v1617, %v2382
      %v2384 = vpop.f32.mrf.mxu0
      %v2385 = vadd.f32 %v1622, %v2384
      %2386 = vmatmul.bf16.gmra.mxu0 %v2034
      %v2387 = vpop.f32.mrf.mxu0
      %v2388 = vadd.f32 %v1627, %v2387
      %v2389 = vpop.f32.mrf.mxu0
      %v2390 = vadd.f32 %v1632, %v2389
      %2391 = vmatmul.bf16.gmra.mxu0 %v2035
      %v2392 = vpop.f32.mrf.mxu0
      %v2393 = vadd.f32 %v1637, %v2392
      %v2394 = vpop.f32.mrf.mxu0
      %v2395 = vadd.f32 %v1642, %v2394
      %2396 = vmatmul.bf16.gmra.mxu0 %v2036
      %v2397 = vpop.f32.mrf.mxu0
      %v2398 = vadd.f32 %v1647, %v2397
      %v2399 = vpop.f32.mrf.mxu0
      %v2400 = vadd.f32 %v1652, %v2399
      %2401 = vmatmul.bf16.gmra.mxu0 %v2037
      %v2402 = vpop.f32.mrf.mxu0
      %v2403 = vadd.f32 %v1657, %v2402
      %v2404 = vpop.f32.mrf.mxu0
      %v2405 = vadd.f32 %v1662, %v2404
      %2406 = vmatmul.bf16.gmra.mxu0 %v2038
      %v2407 = vpop.f32.mrf.mxu0
      %v2408 = vadd.f32 %v1667, %v2407
      %v2409 = vpop.f32.mrf.mxu0
      %v2410 = vadd.f32 %v1672, %v2409
      %2411 = vmatmul.bf16.gmra.mxu0 %v2039
      %v2412 = vpop.f32.mrf.mxu0
      %v2413 = vadd.f32 %v1677, %v2412
      %v2414 = vpop.f32.mrf.mxu0
      %v2415 = vadd.f32 %v1682, %v2414
      %2416 = vmatmul.bf16.gmra.mxu0 %v2040
      %v2417 = vpop.f32.mrf.mxu0
      %v2418 = vadd.f32 %v1687, %v2417
      %v2419 = vpop.f32.mrf.mxu0
      %v2420 = vadd.f32 %v1692, %v2419
      %2421 = vmatmul.bf16.gmra.mxu0 %v2041
      %v2422 = vpop.f32.mrf.mxu0
      %v2423 = vadd.f32 %v1697, %v2422
      %v2424 = vpop.f32.mrf.mxu0
      %v2425 = vadd.f32 %v1702, %v2424
      %2426 = vmatmul.bf16.gmra.mxu0 %v2042
      %v2427 = vpop.f32.mrf.mxu0
      %v2428 = vadd.f32 %v1707, %v2427
      %v2429 = vpop.f32.mrf.mxu0
      %v2430 = vadd.f32 %v1712, %v2429
      %2431 = vmatmul.bf16.gmra.mxu0 %v2043
      %v2432 = vpop.f32.mrf.mxu0
      %v2433 = vadd.f32 %v1717, %v2432
      %v2434 = vpop.f32.mrf.mxu0
      %v2435 = vadd.f32 %v1722, %v2434
      %2436 = vdwg.mxu0
      %2437 = vmatpush.bf16.msra.mxu0 %v955
      %2438 = vmatpush.bf16.msra.mxu0 %v953
      %2439 = vmatpush.bf16.msra.mxu0 %v951
      %2440 = vmatpush.bf16.msra.mxu0 %v949
      %2441 = vmatpush.bf16.msra.mxu0 %v947
      %2442 = vmatpush.bf16.msra.mxu0 %v945
      %2443 = vmatpush.bf16.msra.mxu0 %v943
      %2444 = vmatpush.bf16.msra.mxu0 %v941
      %2445 = vmatmul.bf16.gmra.mxu0 %v1980
      %v2446 = vpop.f32.mrf.mxu0
      %v2447 = vadd.f32 %v1087, %v2446
      %v2448 = vpop.f32.mrf.mxu0
      %v2449 = vadd.f32 %v1092, %v2448
      %2450 = vmatmul.bf16.gmra.mxu0 %v1981
      %v2451 = vpop.f32.mrf.mxu0
      %v2452 = vadd.f32 %v1097, %v2451
      %v2453 = vpop.f32.mrf.mxu0
      %v2454 = vadd.f32 %v1102, %v2453
      %2455 = vmatmul.bf16.gmra.mxu0 %v1982
      %v2456 = vpop.f32.mrf.mxu0
      %v2457 = vadd.f32 %v1107, %v2456
      %v2458 = vpop.f32.mrf.mxu0
      %v2459 = vadd.f32 %v1112, %v2458
      %2460 = vmatmul.bf16.gmra.mxu0 %v1983
      %v2461 = vpop.f32.mrf.mxu0
      %v2462 = vadd.f32 %v1117, %v2461
      %v2463 = vpop.f32.mrf.mxu0
      %v2464 = vadd.f32 %v1122, %v2463
      %2465 = vmatmul.bf16.gmra.mxu0 %v1984
      %v2466 = vpop.f32.mrf.mxu0
      %v2467 = vadd.f32 %v1127, %v2466
      %v2468 = vpop.f32.mrf.mxu0
      %v2469 = vadd.f32 %v1132, %v2468
      %2470 = vmatmul.bf16.gmra.mxu0 %v1985
      %v2471 = vpop.f32.mrf.mxu0
      %v2472 = vadd.f32 %v1137, %v2471
      %v2473 = vpop.f32.mrf.mxu0
      %v2474 = vadd.f32 %v1142, %v2473
      %2475 = vmatmul.bf16.gmra.mxu0 %v1986
      %v2476 = vpop.f32.mrf.mxu0
      %v2477 = vadd.f32 %v1147, %v2476
      %v2478 = vpop.f32.mrf.mxu0
      %v2479 = vadd.f32 %v1152, %v2478
      %2480 = vmatmul.bf16.gmra.mxu0 %v1987
      %v2481 = vpop.f32.mrf.mxu0
      %v2482 = vadd.f32 %v1157, %v2481
      %v2483 = vpop.f32.mrf.mxu0
      %v2484 = vadd.f32 %v1162, %v2483
      %2485 = vmatmul.bf16.gmra.mxu0 %v1988
      %v2486 = vpop.f32.mrf.mxu0
      %v2487 = vadd.f32 %v1167, %v2486
      %v2488 = vpop.f32.mrf.mxu0
      %v2489 = vadd.f32 %v1172, %v2488
      %2490 = vmatmul.bf16.gmra.mxu0 %v1989
      %v2491 = vpop.f32.mrf.mxu0
      %v2492 = vadd.f32 %v1177, %v2491
      %v2493 = vpop.f32.mrf.mxu0
      %v2494 = vadd.f32 %v1182, %v2493
      %2495 = vmatmul.bf16.gmra.mxu0 %v1990
      %v2496 = vpop.f32.mrf.mxu0
      %v2497 = vadd.f32 %v1187, %v2496
      %v2498 = vpop.f32.mrf.mxu0
      %v2499 = vadd.f32 %v1192, %v2498
      %2500 = vmatmul.bf16.gmra.mxu0 %v1991
      %v2501 = vpop.f32.mrf.mxu0
      %v2502 = vadd.f32 %v1197, %v2501
      %v2503 = vpop.f32.mrf.mxu0
      %v2504 = vadd.f32 %v1202, %v2503
      %2505 = vmatmul.bf16.gmra.mxu0 %v1992
      %v2506 = vpop.f32.mrf.mxu0
      %v2507 = vadd.f32 %v1207, %v2506
      %v2508 = vpop.f32.mrf.mxu0
      %v2509 = vadd.f32 %v1212, %v2508
      %2510 = vmatmul.bf16.gmra.mxu0 %v1993
      %v2511 = vpop.f32.mrf.mxu0
      %v2512 = vadd.f32 %v1217, %v2511
      %v2513 = vpop.f32.mrf.mxu0
      %v2514 = vadd.f32 %v1222, %v2513
      %2515 = vmatmul.bf16.gmra.mxu0 %v1994
      %v2516 = vpop.f32.mrf.mxu0
      %v2517 = vadd.f32 %v1227, %v2516
      %v2518 = vpop.f32.mrf.mxu0
      %v2519 = vadd.f32 %v1232, %v2518
      %2520 = vmatmul.bf16.gmra.mxu0 %v1995
      %v2521 = vpop.f32.mrf.mxu0
      %v2522 = vadd.f32 %v1237, %v2521
      %v2523 = vpop.f32.mrf.mxu0
      %v2524 = vadd.f32 %v1242, %v2523
      %2525 = vmatmul.bf16.gmra.mxu0 %v1996
      %v2526 = vpop.f32.mrf.mxu0
      %v2527 = vadd.f32 %v1247, %v2526
      %v2528 = vpop.f32.mrf.mxu0
      %v2529 = vadd.f32 %v1252, %v2528
      %2530 = vmatmul.bf16.gmra.mxu0 %v1997
      %v2531 = vpop.f32.mrf.mxu0
      %v2532 = vadd.f32 %v1257, %v2531
      %v2533 = vpop.f32.mrf.mxu0
      %v2534 = vadd.f32 %v1262, %v2533
      %2535 = vmatmul.bf16.gmra.mxu0 %v1998
      %v2536 = vpop.f32.mrf.mxu0
      %v2537 = vadd.f32 %v1267, %v2536
      %v2538 = vpop.f32.mrf.mxu0
      %v2539 = vadd.f32 %v1272, %v2538
      %2540 = vmatmul.bf16.gmra.mxu0 %v1999
      %v2541 = vpop.f32.mrf.mxu0
      %v2542 = vadd.f32 %v1277, %v2541
      %v2543 = vpop.f32.mrf.mxu0
      %v2544 = vadd.f32 %v1282, %v2543
      %2545 = vmatmul.bf16.gmra.mxu0 %v2000
      %v2546 = vpop.f32.mrf.mxu0
      %v2547 = vadd.f32 %v1287, %v2546
      %v2548 = vpop.f32.mrf.mxu0
      %v2549 = vadd.f32 %v1292, %v2548
      %2550 = vmatmul.bf16.gmra.mxu0 %v2001
      %v2551 = vpop.f32.mrf.mxu0
      %v2552 = vadd.f32 %v1297, %v2551
      %v2553 = vpop.f32.mrf.mxu0
      %v2554 = vadd.f32 %v1302, %v2553
      %2555 = vmatmul.bf16.gmra.mxu0 %v2002
      %v2556 = vpop.f32.mrf.mxu0
      %v2557 = vadd.f32 %v1307, %v2556
      %v2558 = vpop.f32.mrf.mxu0
      %v2559 = vadd.f32 %v1312, %v2558
      %2560 = vmatmul.bf16.gmra.mxu0 %v2003
      %v2561 = vpop.f32.mrf.mxu0
      %v2562 = vadd.f32 %v1317, %v2561
      %v2563 = vpop.f32.mrf.mxu0
      %v2564 = vadd.f32 %v1322, %v2563
      %2565 = vmatmul.bf16.gmra.mxu0 %v2004
      %v2566 = vpop.f32.mrf.mxu0
      %v2567 = vadd.f32 %v1327, %v2566
      %v2568 = vpop.f32.mrf.mxu0
      %v2569 = vadd.f32 %v1332, %v2568
      %2570 = vmatmul.bf16.gmra.mxu0 %v2005
      %v2571 = vpop.f32.mrf.mxu0
      %v2572 = vadd.f32 %v1337, %v2571
      %v2573 = vpop.f32.mrf.mxu0
      %v2574 = vadd.f32 %v1342, %v2573
      %2575 = vmatmul.bf16.gmra.mxu0 %v2006
      %v2576 = vpop.f32.mrf.mxu0
      %v2577 = vadd.f32 %v1347, %v2576
      %v2578 = vpop.f32.mrf.mxu0
      %v2579 = vadd.f32 %v1352, %v2578
      %2580 = vmatmul.bf16.gmra.mxu0 %v2007
      %v2581 = vpop.f32.mrf.mxu0
      %v2582 = vadd.f32 %v1357, %v2581
      %v2583 = vpop.f32.mrf.mxu0
      %v2584 = vadd.f32 %v1362, %v2583
      %2585 = vmatmul.bf16.gmra.mxu0 %v2008
      %v2586 = vpop.f32.mrf.mxu0
      %v2587 = vadd.f32 %v1367, %v2586
      %v2588 = vpop.f32.mrf.mxu0
      %v2589 = vadd.f32 %v1372, %v2588
      %2590 = vmatmul.bf16.gmra.mxu0 %v2009
      %v2591 = vpop.f32.mrf.mxu0
      %v2592 = vadd.f32 %v1377, %v2591
      %v2593 = vpop.f32.mrf.mxu0
      %v2594 = vadd.f32 %v1382, %v2593
      %2595 = vmatmul.bf16.gmra.mxu0 %v2010
      %v2596 = vpop.f32.mrf.mxu0
      %v2597 = vadd.f32 %v1387, %v2596
      %v2598 = vpop.f32.mrf.mxu0
      %v2599 = vadd.f32 %v1392, %v2598
      %2600 = vmatmul.bf16.gmra.mxu0 %v2011
      %v2601 = vpop.f32.mrf.mxu0
      %v2602 = vadd.f32 %v1397, %v2601
      %v2603 = vpop.f32.mrf.mxu0
      %v2604 = vadd.f32 %v1402, %v2603
      %2605 = vmatmul.bf16.gmra.mxu0 %v2012
      %v2606 = vpop.f32.mrf.mxu0
      %v2607 = vadd.f32 %v1407, %v2606
      %v2608 = vpop.f32.mrf.mxu0
      %v2609 = vadd.f32 %v1412, %v2608
      %2610 = vmatmul.bf16.gmra.mxu0 %v2013
      %v2611 = vpop.f32.mrf.mxu0
      %v2612 = vadd.f32 %v1417, %v2611
      %v2613 = vpop.f32.mrf.mxu0
      %v2614 = vadd.f32 %v1422, %v2613
      %2615 = vmatmul.bf16.gmra.mxu0 %v2014
      %v2616 = vpop.f32.mrf.mxu0
      %v2617 = vadd.f32 %v1427, %v2616
      %v2618 = vpop.f32.mrf.mxu0
      %v2619 = vadd.f32 %v1432, %v2618
      %2620 = vmatmul.bf16.gmra.mxu0 %v2015
      %v2621 = vpop.f32.mrf.mxu0
      %v2622 = vadd.f32 %v1437, %v2621
      %v2623 = vpop.f32.mrf.mxu0
      %v2624 = vadd.f32 %v1442, %v2623
      %2625 = vmatmul.bf16.gmra.mxu0 %v2016
      %v2626 = vpop.f32.mrf.mxu0
      %v2627 = vadd.f32 %v1447, %v2626
      %v2628 = vpop.f32.mrf.mxu0
      %v2629 = vadd.f32 %v1452, %v2628
      %2630 = vmatmul.bf16.gmra.mxu0 %v2017
      %v2631 = vpop.f32.mrf.mxu0
      %v2632 = vadd.f32 %v1457, %v2631
      %v2633 = vpop.f32.mrf.mxu0
      %v2634 = vadd.f32 %v1462, %v2633
      %2635 = vmatmul.bf16.gmra.mxu0 %v2018
      %v2636 = vpop.f32.mrf.mxu0
      %v2637 = vadd.f32 %v1467, %v2636
      %v2638 = vpop.f32.mrf.mxu0
      %v2639 = vadd.f32 %v1472, %v2638
      %2640 = vmatmul.bf16.gmra.mxu0 %v2019
      %v2641 = vpop.f32.mrf.mxu0
      %v2642 = vadd.f32 %v1477, %v2641
      %v2643 = vpop.f32.mrf.mxu0
      %v2644 = vadd.f32 %v1482, %v2643
      %2645 = vmatmul.bf16.gmra.mxu0 %v2020
      %v2646 = vpop.f32.mrf.mxu0
      %v2647 = vadd.f32 %v1487, %v2646
      %v2648 = vpop.f32.mrf.mxu0
      %v2649 = vadd.f32 %v1492, %v2648
      %2650 = vmatmul.bf16.gmra.mxu0 %v2021
      %v2651 = vpop.f32.mrf.mxu0
      %v2652 = vadd.f32 %v1497, %v2651
      %v2653 = vpop.f32.mrf.mxu0
      %v2654 = vadd.f32 %v1502, %v2653
      %2655 = vmatmul.bf16.gmra.mxu0 %v2022
      %v2656 = vpop.f32.mrf.mxu0
      %v2657 = vadd.f32 %v1507, %v2656
      %v2658 = vpop.f32.mrf.mxu0
      %v2659 = vadd.f32 %v1512, %v2658
      %2660 = vmatmul.bf16.gmra.mxu0 %v2023
      %v2661 = vpop.f32.mrf.mxu0
      %v2662 = vadd.f32 %v1517, %v2661
      %v2663 = vpop.f32.mrf.mxu0
      %v2664 = vadd.f32 %v1522, %v2663
      %2665 = vmatmul.bf16.gmra.mxu0 %v2024
      %v2666 = vpop.f32.mrf.mxu0
      %v2667 = vadd.f32 %v1527, %v2666
      %v2668 = vpop.f32.mrf.mxu0
      %v2669 = vadd.f32 %v1532, %v2668
      %2670 = vmatmul.bf16.gmra.mxu0 %v2025
      %v2671 = vpop.f32.mrf.mxu0
      %v2672 = vadd.f32 %v1537, %v2671
      %v2673 = vpop.f32.mrf.mxu0
      %v2674 = vadd.f32 %v1542, %v2673
      %2675 = vmatmul.bf16.gmra.mxu0 %v2026
      %v2676 = vpop.f32.mrf.mxu0
      %v2677 = vadd.f32 %v1547, %v2676
      %v2678 = vpop.f32.mrf.mxu0
      %v2679 = vadd.f32 %v1552, %v2678
      %2680 = vmatmul.bf16.gmra.mxu0 %v2027
      %v2681 = vpop.f32.mrf.mxu0
      %v2682 = vadd.f32 %v1557, %v2681
      %v2683 = vpop.f32.mrf.mxu0
      %v2684 = vadd.f32 %v1562, %v2683
      %2685 = vmatmul.bf16.gmra.mxu0 %v2028
      %v2686 = vpop.f32.mrf.mxu0
      %v2687 = vadd.f32 %v1567, %v2686
      %v2688 = vpop.f32.mrf.mxu0
      %v2689 = vadd.f32 %v1572, %v2688
      %2690 = vmatmul.bf16.gmra.mxu0 %v2029
      %v2691 = vpop.f32.mrf.mxu0
      %v2692 = vadd.f32 %v1577, %v2691
      %v2693 = vpop.f32.mrf.mxu0
      %v2694 = vadd.f32 %v1582, %v2693
      %2695 = vmatmul.bf16.gmra.mxu0 %v2030
      %v2696 = vpop.f32.mrf.mxu0
      %v2697 = vadd.f32 %v1587, %v2696
      %v2698 = vpop.f32.mrf.mxu0
      %v2699 = vadd.f32 %v1592, %v2698
      %2700 = vmatmul.bf16.gmra.mxu0 %v2031
      %v2701 = vpop.f32.mrf.mxu0
      %v2702 = vadd.f32 %v1597, %v2701
      %v2703 = vpop.f32.mrf.mxu0
      %v2704 = vadd.f32 %v1602, %v2703
      %2705 = vmatmul.bf16.gmra.mxu0 %v2032
      %v2706 = vpop.f32.mrf.mxu0
      %v2707 = vadd.f32 %v1607, %v2706
      %v2708 = vpop.f32.mrf.mxu0
      %v2709 = vadd.f32 %v1612, %v2708
      %2710 = vmatmul.bf16.gmra.mxu0 %v2033
      %v2711 = vpop.f32.mrf.mxu0
      %v2712 = vadd.f32 %v1617, %v2711
      %v2713 = vpop.f32.mrf.mxu0
      %v2714 = vadd.f32 %v1622, %v2713
      %2715 = vmatmul.bf16.gmra.mxu0 %v2034
      %v2716 = vpop.f32.mrf.mxu0
      %v2717 = vadd.f32 %v1627, %v2716
      %v2718 = vpop.f32.mrf.mxu0
      %v2719 = vadd.f32 %v1632, %v2718
      %2720 = vmatmul.bf16.gmra.mxu0 %v2035
      %v2721 = vpop.f32.mrf.mxu0
      %v2722 = vadd.f32 %v1637, %v2721
      %v2723 = vpop.f32.mrf.mxu0
      %v2724 = vadd.f32 %v1642, %v2723
      %2725 = vmatmul.bf16.gmra.mxu0 %v2036
      %v2726 = vpop.f32.mrf.mxu0
      %v2727 = vadd.f32 %v1647, %v2726
      %v2728 = vpop.f32.mrf.mxu0
      %v2729 = vadd.f32 %v1652, %v2728
      %2730 = vmatmul.bf16.gmra.mxu0 %v2037
      %v2731 = vpop.f32.mrf.mxu0
      %v2732 = vadd.f32 %v1657, %v2731
      %v2733 = vpop.f32.mrf.mxu0
      %v2734 = vadd.f32 %v1662, %v2733
      %2735 = vmatmul.bf16.gmra.mxu0 %v2038
      %v2736 = vpop.f32.mrf.mxu0
      %v2737 = vadd.f32 %v1667, %v2736
      %v2738 = vpop.f32.mrf.mxu0
      %v2739 = vadd.f32 %v1672, %v2738
      %2740 = vmatmul.bf16.gmra.mxu0 %v2039
      %v2741 = vpop.f32.mrf.mxu0
      %v2742 = vadd.f32 %v1677, %v2741
      %v2743 = vpop.f32.mrf.mxu0
      %v2744 = vadd.f32 %v1682, %v2743
      %2745 = vmatmul.bf16.gmra.mxu0 %v2040
      %v2746 = vpop.f32.mrf.mxu0
      %v2747 = vadd.f32 %v1687, %v2746
      %v2748 = vpop.f32.mrf.mxu0
      %v2749 = vadd.f32 %v1692, %v2748
      %2750 = vmatmul.bf16.gmra.mxu0 %v2041
      %v2751 = vpop.f32.mrf.mxu0
      %v2752 = vadd.f32 %v1697, %v2751
      %v2753 = vpop.f32.mrf.mxu0
      %v2754 = vadd.f32 %v1702, %v2753
      %2755 = vmatmul.bf16.gmra.mxu0 %v2042
      %v2756 = vpop.f32.mrf.mxu0
      %v2757 = vadd.f32 %v1707, %v2756
      %v2758 = vpop.f32.mrf.mxu0
      %v2759 = vadd.f32 %v1712, %v2758
      %2760 = vmatmul.bf16.gmra.mxu0 %v2043
      %v2761 = vpop.f32.mrf.mxu0
      %v2762 = vadd.f32 %v1717, %v2761
      %v2763 = vpop.f32.mrf.mxu0
      %v2764 = vadd.f32 %v1722, %v2763
      %2765 = vdwg.mxu0
      %v2766 = vmax.f32 %v2118, 0.0
      %v2767 = vmax.f32 %v2447, 0.0
      %v2768 = vmax.f32 %v2120, 0.0
      %v2769 = vmax.f32 %v2449, 0.0
      %v2770 = vmax.f32 %v2123, 0.0
      %v2771 = vmax.f32 %v2452, 0.0
      %v2772 = vmax.f32 %v2125, 0.0
      %v2773 = vmax.f32 %v2454, 0.0
      %v2774 = vmax.f32 %v2128, 0.0
      %v2775 = vmax.f32 %v2457, 0.0
      %v2776 = vmax.f32 %v2130, 0.0
      %v2777 = vmax.f32 %v2459, 0.0
      %v2778 = vmax.f32 %v2133, 0.0
      %v2779 = vmax.f32 %v2462, 0.0
      %v2780 = vmax.f32 %v2135, 0.0
      %v2781 = vmax.f32 %v2464, 0.0
      %v2782 = vmax.f32 %v2138, 0.0
      %v2783 = vmax.f32 %v2467, 0.0
      %v2784 = vmax.f32 %v2140, 0.0
      %v2785 = vmax.f32 %v2469, 0.0
      %v2786 = vmax.f32 %v2143, 0.0
      %v2787 = vmax.f32 %v2472, 0.0
      %v2788 = vmax.f32 %v2145, 0.0
      %v2789 = vmax.f32 %v2474, 0.0
      %v2790 = vmax.f32 %v2148, 0.0
      %v2791 = vmax.f32 %v2477, 0.0
      %v2792 = vmax.f32 %v2150, 0.0
      %v2793 = vmax.f32 %v2479, 0.0
      %v2794 = vmax.f32 %v2153, 0.0
      %v2795 = vmax.f32 %v2482, 0.0
      %v2796 = vmax.f32 %v2155, 0.0
      %v2797 = vmax.f32 %v2484, 0.0
      %v2798 = vmax.f32 %v2158, 0.0
      %v2799 = vmax.f32 %v2487, 0.0
      %v2800 = vmax.f32 %v2160, 0.0
      %v2801 = vmax.f32 %v2489, 0.0
      %v2802 = vmax.f32 %v2163, 0.0
      %v2803 = vmax.f32 %v2492, 0.0
      %v2804 = vmax.f32 %v2165, 0.0
      %v2805 = vmax.f32 %v2494, 0.0
      %v2806 = vmax.f32 %v2168, 0.0
      %v2807 = vmax.f32 %v2497, 0.0
      %v2808 = vmax.f32 %v2170, 0.0
      %v2809 = vmax.f32 %v2499, 0.0
      %v2810 = vmax.f32 %v2173, 0.0
      %v2811 = vmax.f32 %v2502, 0.0
      %v2812 = vmax.f32 %v2175, 0.0
      %v2813 = vmax.f32 %v2504, 0.0
      %v2814 = vmax.f32 %v2178, 0.0
      %v2815 = vmax.f32 %v2507, 0.0
      %v2816 = vmax.f32 %v2180, 0.0
      %v2817 = vmax.f32 %v2509, 0.0
      %v2818 = vmax.f32 %v2183, 0.0
      %v2819 = vmax.f32 %v2512, 0.0
      %v2820 = vmax.f32 %v2185, 0.0
      %v2821 = vmax.f32 %v2514, 0.0
      %v2822 = vmax.f32 %v2188, 0.0
      %v2823 = vmax.f32 %v2517, 0.0
      %v2824 = vmax.f32 %v2190, 0.0
      %v2825 = vmax.f32 %v2519, 0.0
      %v2826 = vmax.f32 %v2193, 0.0
      %v2827 = vmax.f32 %v2522, 0.0
      %v2828 = vmax.f32 %v2195, 0.0
      %v2829 = vmax.f32 %v2524, 0.0
      %v2830 = vmax.f32 %v2198, 0.0
      %v2831 = vmax.f32 %v2527, 0.0
      %v2832 = vmax.f32 %v2200, 0.0
      %v2833 = vmax.f32 %v2529, 0.0
      %v2834 = vmax.f32 %v2203, 0.0
      %v2835 = vmax.f32 %v2532, 0.0
      %v2836 = vmax.f32 %v2205, 0.0
      %v2837 = vmax.f32 %v2534, 0.0
      %v2838 = vmax.f32 %v2208, 0.0
      %v2839 = vmax.f32 %v2537, 0.0
      %v2840 = vmax.f32 %v2210, 0.0
      %v2841 = vmax.f32 %v2539, 0.0
      %v2842 = vmax.f32 %v2213, 0.0
      %v2843 = vmax.f32 %v2542, 0.0
      %v2844 = vmax.f32 %v2215, 0.0
      %v2845 = vmax.f32 %v2544, 0.0
      %v2846 = vmax.f32 %v2218, 0.0
      %v2847 = vmax.f32 %v2547, 0.0
      %v2848 = vmax.f32 %v2220, 0.0
      %v2849 = vmax.f32 %v2549, 0.0
      %v2850 = vmax.f32 %v2223, 0.0
      %v2851 = vmax.f32 %v2552, 0.0
      %v2852 = vmax.f32 %v2225, 0.0
      %v2853 = vmax.f32 %v2554, 0.0
      %v2854 = vmax.f32 %v2228, 0.0
      %v2855 = vmax.f32 %v2557, 0.0
      %v2856 = vmax.f32 %v2230, 0.0
      %v2857 = vmax.f32 %v2559, 0.0
      %v2858 = vmax.f32 %v2233, 0.0
      %v2859 = vmax.f32 %v2562, 0.0
      %v2860 = vmax.f32 %v2235, 0.0
      %v2861 = vmax.f32 %v2564, 0.0
      %v2862 = vmax.f32 %v2238, 0.0
      %v2863 = vmax.f32 %v2567, 0.0
      %v2864 = vmax.f32 %v2240, 0.0
      %v2865 = vmax.f32 %v2569, 0.0
      %v2866 = vmax.f32 %v2243, 0.0
      %v2867 = vmax.f32 %v2572, 0.0
      %v2868 = vmax.f32 %v2245, 0.0
      %v2869 = vmax.f32 %v2574, 0.0
      %v2870 = vmax.f32 %v2248, 0.0
      %v2871 = vmax.f32 %v2577, 0.0
      %v2872 = vmax.f32 %v2250, 0.0
      %v2873 = vmax.f32 %v2579, 0.0
      %v2874 = vmax.f32 %v2253, 0.0
      %v2875 = vmax.f32 %v2582, 0.0
      %v2876 = vmax.f32 %v2255, 0.0
      %v2877 = vmax.f32 %v2584, 0.0
      %v2878 = vmax.f32 %v2258, 0.0
      %v2879 = vmax.f32 %v2587, 0.0
      %v2880 = vmax.f32 %v2260, 0.0
      %v2881 = vmax.f32 %v2589, 0.0
      %v2882 = vmax.f32 %v2263, 0.0
      %v2883 = vmax.f32 %v2592, 0.0
      %v2884 = vmax.f32 %v2265, 0.0
      %v2885 = vmax.f32 %v2594, 0.0
      %v2886 = vmax.f32 %v2268, 0.0
      %v2887 = vmax.f32 %v2597, 0.0
      %v2888 = vmax.f32 %v2270, 0.0
      %v2889 = vmax.f32 %v2599, 0.0
      %v2890 = vmax.f32 %v2273, 0.0
      %v2891 = vmax.f32 %v2602, 0.0
      %v2892 = vmax.f32 %v2275, 0.0
      %v2893 = vmax.f32 %v2604, 0.0
      %v2894 = vmax.f32 %v2278, 0.0
      %v2895 = vmax.f32 %v2607, 0.0
      %v2896 = vmax.f32 %v2280, 0.0
      %v2897 = vmax.f32 %v2609, 0.0
      %v2898 = vmax.f32 %v2283, 0.0
      %v2899 = vmax.f32 %v2612, 0.0
      %v2900 = vmax.f32 %v2285, 0.0
      %v2901 = vmax.f32 %v2614, 0.0
      %v2902 = vmax.f32 %v2288, 0.0
      %v2903 = vmax.f32 %v2617, 0.0
      %v2904 = vmax.f32 %v2290, 0.0
      %v2905 = vmax.f32 %v2619, 0.0
      %v2906 = vmax.f32 %v2293, 0.0
      %v2907 = vmax.f32 %v2622, 0.0
      %v2908 = vmax.f32 %v2295, 0.0
      %v2909 = vmax.f32 %v2624, 0.0
      %v2910 = vmax.f32 %v2298, 0.0
      %v2911 = vmax.f32 %v2627, 0.0
      %v2912 = vmax.f32 %v2300, 0.0
      %v2913 = vmax.f32 %v2629, 0.0
      %v2914 = vmax.f32 %v2303, 0.0
      %v2915 = vmax.f32 %v2632, 0.0
      %v2916 = vmax.f32 %v2305, 0.0
      %v2917 = vmax.f32 %v2634, 0.0
      %v2918 = vmax.f32 %v2308, 0.0
      %v2919 = vmax.f32 %v2637, 0.0
      %v2920 = vmax.f32 %v2310, 0.0
      %v2921 = vmax.f32 %v2639, 0.0
      %v2922 = vmax.f32 %v2313, 0.0
      %v2923 = vmax.f32 %v2642, 0.0
      %v2924 = vmax.f32 %v2315, 0.0
      %v2925 = vmax.f32 %v2644, 0.0
      %v2926 = vmax.f32 %v2318, 0.0
      %v2927 = vmax.f32 %v2647, 0.0
      %v2928 = vmax.f32 %v2320, 0.0
      %v2929 = vmax.f32 %v2649, 0.0
      %v2930 = vmax.f32 %v2323, 0.0
      %v2931 = vmax.f32 %v2652, 0.0
      %v2932 = vmax.f32 %v2325, 0.0
      %v2933 = vmax.f32 %v2654, 0.0
      %v2934 = vmax.f32 %v2328, 0.0
      %v2935 = vmax.f32 %v2657, 0.0
      %v2936 = vmax.f32 %v2330, 0.0
      %v2937 = vmax.f32 %v2659, 0.0
      %v2938 = vmax.f32 %v2333, 0.0
      %v2939 = vmax.f32 %v2662, 0.0
      %v2940 = vmax.f32 %v2335, 0.0
      %v2941 = vmax.f32 %v2664, 0.0
      %v2942 = vmax.f32 %v2338, 0.0
      %v2943 = vmax.f32 %v2667, 0.0
      %v2944 = vmax.f32 %v2340, 0.0
      %v2945 = vmax.f32 %v2669, 0.0
      %v2946 = vmax.f32 %v2343, 0.0
      %v2947 = vmax.f32 %v2672, 0.0
      %v2948 = vmax.f32 %v2345, 0.0
      %v2949 = vmax.f32 %v2674, 0.0
      %v2950 = vmax.f32 %v2348, 0.0
      %v2951 = vmax.f32 %v2677, 0.0
      %v2952 = vmax.f32 %v2350, 0.0
      %v2953 = vmax.f32 %v2679, 0.0
      %v2954 = vmax.f32 %v2353, 0.0
      %v2955 = vmax.f32 %v2682, 0.0
      %v2956 = vmax.f32 %v2355, 0.0
      %v2957 = vmax.f32 %v2684, 0.0
      %v2958 = vmax.f32 %v2358, 0.0
      %v2959 = vmax.f32 %v2687, 0.0
      %v2960 = vmax.f32 %v2360, 0.0
      %v2961 = vmax.f32 %v2689, 0.0
      %v2962 = vmax.f32 %v2363, 0.0
      %v2963 = vmax.f32 %v2692, 0.0
      %v2964 = vmax.f32 %v2365, 0.0
      %v2965 = vmax.f32 %v2694, 0.0
      %v2966 = vmax.f32 %v2368, 0.0
      %v2967 = vmax.f32 %v2697, 0.0
      %v2968 = vmax.f32 %v2370, 0.0
      %v2969 = vmax.f32 %v2699, 0.0
      %v2970 = vmax.f32 %v2373, 0.0
      %v2971 = vmax.f32 %v2702, 0.0
      %v2972 = vmax.f32 %v2375, 0.0
      %v2973 = vmax.f32 %v2704, 0.0
      %v2974 = vmax.f32 %v2378, 0.0
      %v2975 = vmax.f32 %v2707, 0.0
      %v2976 = vmax.f32 %v2380, 0.0
      %v2977 = vmax.f32 %v2709, 0.0
      %v2978 = vmax.f32 %v2383, 0.0
      %v2979 = vmax.f32 %v2712, 0.0
      %v2980 = vmax.f32 %v2385, 0.0
      %v2981 = vmax.f32 %v2714, 0.0
      %v2982 = vmax.f32 %v2388, 0.0
      %v2983 = vmax.f32 %v2717, 0.0
      %v2984 = vmax.f32 %v2390, 0.0
      %v2985 = vmax.f32 %v2719, 0.0
      %v2986 = vmax.f32 %v2393, 0.0
      %v2987 = vmax.f32 %v2722, 0.0
      %v2988 = vmax.f32 %v2395, 0.0
      %v2989 = vmax.f32 %v2724, 0.0
      %v2990 = vmax.f32 %v2398, 0.0
      %v2991 = vmax.f32 %v2727, 0.0
      %v2992 = vmax.f32 %v2400, 0.0
      %v2993 = vmax.f32 %v2729, 0.0
      %v2994 = vmax.f32 %v2403, 0.0
      %v2995 = vmax.f32 %v2732, 0.0
      %v2996 = vmax.f32 %v2405, 0.0
      %v2997 = vmax.f32 %v2734, 0.0
      %v2998 = vmax.f32 %v2408, 0.0
      %v2999 = vmax.f32 %v2737, 0.0
      %v3000 = vmax.f32 %v2410, 0.0
      %v3001 = vmax.f32 %v2739, 0.0
      %v3002 = vmax.f32 %v2413, 0.0
      %v3003 = vmax.f32 %v2742, 0.0
      %v3004 = vmax.f32 %v2415, 0.0
      %v3005 = vmax.f32 %v2744, 0.0
      %v3006 = vmax.f32 %v2418, 0.0
      %v3007 = vmax.f32 %v2747, 0.0
      %v3008 = vmax.f32 %v2420, 0.0
      %v3009 = vmax.f32 %v2749, 0.0
      %v3010 = vmax.f32 %v2423, 0.0
      %v3011 = vmax.f32 %v2752, 0.0
      %v3012 = vmax.f32 %v2425, 0.0
      %v3013 = vmax.f32 %v2754, 0.0
      %v3014 = vmax.f32 %v2428, 0.0
      %v3015 = vmax.f32 %v2757, 0.0
      %v3016 = vmax.f32 %v2430, 0.0
      %v3017 = vmax.f32 %v2759, 0.0
      %v3018 = vmax.f32 %v2433, 0.0
      %v3019 = vmax.f32 %v2762, 0.0
      %v3020 = vmax.f32 %v2435, 0.0
      %v3021 = vmax.f32 %v2764, 0.0
      %v3022 = vmax.f32 %v2766, %v2767
      %3023 = vmax.xlane.f32.xlu0 %v3022
      %v3024 = vpop.xlane.xlu0 %3023
      %v3025 = vmax.f32 %v2768, %v2769
      %3026 = vmax.xlane.f32.xlu0 %v3025
      %v3027 = vpop.xlane.xlu0 %3026
      %v3028 = vmax.f32 %v2770, %v2771
      %3029 = vmax.xlane.f32.xlu0 %v3028
      %v3030 = vpop.xlane.xlu0 %3029
      %v3031 = vmax.f32 %v2772, %v2773
      %3032 = vmax.xlane.f32.xlu0 %v3031
      %v3033 = vpop.xlane.xlu0 %3032
      %v3034 = vmax.f32 %v2774, %v2775
      %3035 = vmax.xlane.f32.xlu0 %v3034
      %v3036 = vpop.xlane.xlu0 %3035
      %v3037 = vmax.f32 %v2776, %v2777
      %3038 = vmax.xlane.f32.xlu0 %v3037
      %v3039 = vpop.xlane.xlu0 %3038
      %v3040 = vmax.f32 %v2778, %v2779
      %3041 = vmax.xlane.f32.xlu0 %v3040
      %v3042 = vpop.xlane.xlu0 %3041
      %v3043 = vmax.f32 %v2780, %v2781
      %3044 = vmax.xlane.f32.xlu0 %v3043
      %v3045 = vpop.xlane.xlu0 %3044
      %v3046 = vmax.f32 %v2782, %v2783
      %3047 = vmax.xlane.f32.xlu0 %v3046
      %v3048 = vpop.xlane.xlu0 %3047
      %v3049 = vmax.f32 %v2784, %v2785
      %3050 = vmax.xlane.f32.xlu0 %v3049
      %v3051 = vpop.xlane.xlu0 %3050
      %v3052 = vmax.f32 %v2786, %v2787
      %3053 = vmax.xlane.f32.xlu0 %v3052
      %v3054 = vpop.xlane.xlu0 %3053
      %v3055 = vmax.f32 %v2788, %v2789
      %3056 = vmax.xlane.f32.xlu0 %v3055
      %v3057 = vpop.xlane.xlu0 %3056
      %v3058 = vmax.f32 %v2790, %v2791
      %3059 = vmax.xlane.f32.xlu0 %v3058
      %v3060 = vpop.xlane.xlu0 %3059
      %v3061 = vmax.f32 %v2792, %v2793
      %3062 = vmax.xlane.f32.xlu0 %v3061
      %v3063 = vpop.xlane.xlu0 %3062
      %v3064 = vmax.f32 %v2794, %v2795
      %3065 = vmax.xlane.f32.xlu0 %v3064
      %v3066 = vpop.xlane.xlu0 %3065
      %v3067 = vmax.f32 %v2796, %v2797
      %3068 = vmax.xlane.f32.xlu0 %v3067
      %v3069 = vpop.xlane.xlu0 %3068
      %v3070 = vmax.f32 %v2798, %v2799
      %3071 = vmax.xlane.f32.xlu0 %v3070
      %v3072 = vpop.xlane.xlu0 %3071
      %v3073 = vmax.f32 %v2800, %v2801
      %3074 = vmax.xlane.f32.xlu0 %v3073
      %v3075 = vpop.xlane.xlu0 %3074
      %v3076 = vmax.f32 %v2802, %v2803
      %3077 = vmax.xlane.f32.xlu0 %v3076
      %v3078 = vpop.xlane.xlu0 %3077
      %v3079 = vmax.f32 %v2804, %v2805
      %3080 = vmax.xlane.f32.xlu0 %v3079
      %v3081 = vpop.xlane.xlu0 %3080
      %v3082 = vmax.f32 %v2806, %v2807
      %3083 = vmax.xlane.f32.xlu0 %v3082
      %v3084 = vpop.xlane.xlu0 %3083
      %v3085 = vmax.f32 %v2808, %v2809
      %3086 = vmax.xlane.f32.xlu0 %v3085
      %v3087 = vpop.xlane.xlu0 %3086
      %v3088 = vmax.f32 %v2810, %v2811
      %3089 = vmax.xlane.f32.xlu0 %v3088
      %v3090 = vpop.xlane.xlu0 %3089
      %v3091 = vmax.f32 %v2812, %v2813
      %3092 = vmax.xlane.f32.xlu0 %v3091
      %v3093 = vpop.xlane.xlu0 %3092
      %v3094 = vmax.f32 %v2814, %v2815
      %3095 = vmax.xlane.f32.xlu0 %v3094
      %v3096 = vpop.xlane.xlu0 %3095
      %v3097 = vmax.f32 %v2816, %v2817
      %3098 = vmax.xlane.f32.xlu0 %v3097
      %v3099 = vpop.xlane.xlu0 %3098
      %v3100 = vmax.f32 %v2818, %v2819
      %3101 = vmax.xlane.f32.xlu0 %v3100
      %v3102 = vpop.xlane.xlu0 %3101
      %v3103 = vmax.f32 %v2820, %v2821
      %3104 = vmax.xlane.f32.xlu0 %v3103
      %v3105 = vpop.xlane.xlu0 %3104
      %v3106 = vmax.f32 %v2822, %v2823
      %3107 = vmax.xlane.f32.xlu0 %v3106
      %v3108 = vpop.xlane.xlu0 %3107
      %v3109 = vmax.f32 %v2824, %v2825
      %3110 = vmax.xlane.f32.xlu0 %v3109
      %v3111 = vpop.xlane.xlu0 %3110
      %v3112 = vmax.f32 %v2826, %v2827
      %3113 = vmax.xlane.f32.xlu0 %v3112
      %v3114 = vpop.xlane.xlu0 %3113
      %v3115 = vmax.f32 %v2828, %v2829
      %3116 = vmax.xlane.f32.xlu0 %v3115
      %v3117 = vpop.xlane.xlu0 %3116
      %v3118 = vmax.f32 %v2830, %v2831
      %3119 = vmax.xlane.f32.xlu0 %v3118
      %v3120 = vpop.xlane.xlu0 %3119
      %v3121 = vmax.f32 %v2832, %v2833
      %3122 = vmax.xlane.f32.xlu0 %v3121
      %v3123 = vpop.xlane.xlu0 %3122
      %v3124 = vmax.f32 %v2834, %v2835
      %3125 = vmax.xlane.f32.xlu0 %v3124
      %v3126 = vpop.xlane.xlu0 %3125
      %v3127 = vmax.f32 %v2836, %v2837
      %3128 = vmax.xlane.f32.xlu0 %v3127
      %v3129 = vpop.xlane.xlu0 %3128
      %v3130 = vmax.f32 %v2838, %v2839
      %3131 = vmax.xlane.f32.xlu0 %v3130
      %v3132 = vpop.xlane.xlu0 %3131
      %v3133 = vmax.f32 %v2840, %v2841
      %3134 = vmax.xlane.f32.xlu0 %v3133
      %v3135 = vpop.xlane.xlu0 %3134
      %v3136 = vmax.f32 %v2842, %v2843
      %3137 = vmax.xlane.f32.xlu0 %v3136
      %v3138 = vpop.xlane.xlu0 %3137
      %v3139 = vmax.f32 %v2844, %v2845
      %3140 = vmax.xlane.f32.xlu0 %v3139
      %v3141 = vpop.xlane.xlu0 %3140
      %v3142 = vmax.f32 %v2846, %v2847
      %3143 = vmax.xlane.f32.xlu0 %v3142
      %v3144 = vpop.xlane.xlu0 %3143
      %v3145 = vmax.f32 %v2848, %v2849
      %3146 = vmax.xlane.f32.xlu0 %v3145
      %v3147 = vpop.xlane.xlu0 %3146
      %v3148 = vmax.f32 %v2850, %v2851
      %3149 = vmax.xlane.f32.xlu0 %v3148
      %v3150 = vpop.xlane.xlu0 %3149
      %v3151 = vmax.f32 %v2852, %v2853
      %3152 = vmax.xlane.f32.xlu0 %v3151
      %v3153 = vpop.xlane.xlu0 %3152
      %v3154 = vmax.f32 %v2854, %v2855
      %3155 = vmax.xlane.f32.xlu0 %v3154
      %v3156 = vpop.xlane.xlu0 %3155
      %v3157 = vmax.f32 %v2856, %v2857
      %3158 = vmax.xlane.f32.xlu0 %v3157
      %v3159 = vpop.xlane.xlu0 %3158
      %v3160 = vmax.f32 %v2858, %v2859
      %3161 = vmax.xlane.f32.xlu0 %v3160
      %v3162 = vpop.xlane.xlu0 %3161
      %v3163 = vmax.f32 %v2860, %v2861
      %3164 = vmax.xlane.f32.xlu0 %v3163
      %v3165 = vpop.xlane.xlu0 %3164
      %v3166 = vmax.f32 %v2862, %v2863
      %3167 = vmax.xlane.f32.xlu0 %v3166
      %v3168 = vpop.xlane.xlu0 %3167
      %v3169 = vmax.f32 %v2864, %v2865
      %3170 = vmax.xlane.f32.xlu0 %v3169
      %v3171 = vpop.xlane.xlu0 %3170
      %v3172 = vmax.f32 %v2866, %v2867
      %3173 = vmax.xlane.f32.xlu0 %v3172
      %v3174 = vpop.xlane.xlu0 %3173
      %v3175 = vmax.f32 %v2868, %v2869
      %3176 = vmax.xlane.f32.xlu0 %v3175
      %v3177 = vpop.xlane.xlu0 %3176
      %v3178 = vmax.f32 %v2870, %v2871
      %3179 = vmax.xlane.f32.xlu0 %v3178
      %v3180 = vpop.xlane.xlu0 %3179
      %v3181 = vmax.f32 %v2872, %v2873
      %3182 = vmax.xlane.f32.xlu0 %v3181
      %v3183 = vpop.xlane.xlu0 %3182
      %v3184 = vmax.f32 %v2874, %v2875
      %3185 = vmax.xlane.f32.xlu0 %v3184
      %v3186 = vpop.xlane.xlu0 %3185
      %v3187 = vmax.f32 %v2876, %v2877
      %3188 = vmax.xlane.f32.xlu0 %v3187
      %v3189 = vpop.xlane.xlu0 %3188
      %v3190 = vmax.f32 %v2878, %v2879
      %3191 = vmax.xlane.f32.xlu0 %v3190
      %v3192 = vpop.xlane.xlu0 %3191
      %v3193 = vmax.f32 %v2880, %v2881
      %3194 = vmax.xlane.f32.xlu0 %v3193
      %v3195 = vpop.xlane.xlu0 %3194
      %v3196 = vmax.f32 %v2882, %v2883
      %3197 = vmax.xlane.f32.xlu0 %v3196
      %v3198 = vpop.xlane.xlu0 %3197
      %v3199 = vmax.f32 %v2884, %v2885
      %3200 = vmax.xlane.f32.xlu0 %v3199
      %v3201 = vpop.xlane.xlu0 %3200
      %v3202 = vmax.f32 %v2886, %v2887
      %3203 = vmax.xlane.f32.xlu0 %v3202
      %v3204 = vpop.xlane.xlu0 %3203
      %v3205 = vmax.f32 %v2888, %v2889
      %3206 = vmax.xlane.f32.xlu0 %v3205
      %v3207 = vpop.xlane.xlu0 %3206
      %v3208 = vmax.f32 %v2890, %v2891
      %3209 = vmax.xlane.f32.xlu0 %v3208
      %v3210 = vpop.xlane.xlu0 %3209
      %v3211 = vmax.f32 %v2892, %v2893
      %3212 = vmax.xlane.f32.xlu0 %v3211
      %v3213 = vpop.xlane.xlu0 %3212
      %v3214 = vmax.f32 %v2894, %v2895
      %3215 = vmax.xlane.f32.xlu0 %v3214
      %v3216 = vpop.xlane.xlu0 %3215
      %v3217 = vmax.f32 %v2896, %v2897
      %3218 = vmax.xlane.f32.xlu0 %v3217
      %v3219 = vpop.xlane.xlu0 %3218
      %v3220 = vmax.f32 %v2898, %v2899
      %3221 = vmax.xlane.f32.xlu0 %v3220
      %v3222 = vpop.xlane.xlu0 %3221
      %v3223 = vmax.f32 %v2900, %v2901
      %3224 = vmax.xlane.f32.xlu0 %v3223
      %v3225 = vpop.xlane.xlu0 %3224
      %v3226 = vmax.f32 %v2902, %v2903
      %3227 = vmax.xlane.f32.xlu0 %v3226
      %v3228 = vpop.xlane.xlu0 %3227
      %v3229 = vmax.f32 %v2904, %v2905
      %3230 = vmax.xlane.f32.xlu0 %v3229
      %v3231 = vpop.xlane.xlu0 %3230
      %v3232 = vmax.f32 %v2906, %v2907
      %3233 = vmax.xlane.f32.xlu0 %v3232
      %v3234 = vpop.xlane.xlu0 %3233
      %v3235 = vmax.f32 %v2908, %v2909
      %3236 = vmax.xlane.f32.xlu0 %v3235
      %v3237 = vpop.xlane.xlu0 %3236
      %v3238 = vmax.f32 %v2910, %v2911
      %3239 = vmax.xlane.f32.xlu0 %v3238
      %v3240 = vpop.xlane.xlu0 %3239
      %v3241 = vmax.f32 %v2912, %v2913
      %3242 = vmax.xlane.f32.xlu0 %v3241
      %v3243 = vpop.xlane.xlu0 %3242
      %v3244 = vmax.f32 %v2914, %v2915
      %3245 = vmax.xlane.f32.xlu0 %v3244
      %v3246 = vpop.xlane.xlu0 %3245
      %v3247 = vmax.f32 %v2916, %v2917
      %3248 = vmax.xlane.f32.xlu0 %v3247
      %v3249 = vpop.xlane.xlu0 %3248
      %v3250 = vmax.f32 %v2918, %v2919
      %3251 = vmax.xlane.f32.xlu0 %v3250
      %v3252 = vpop.xlane.xlu0 %3251
      %v3253 = vmax.f32 %v2920, %v2921
      %3254 = vmax.xlane.f32.xlu0 %v3253
      %v3255 = vpop.xlane.xlu0 %3254
      %v3256 = vmax.f32 %v2922, %v2923
      %3257 = vmax.xlane.f32.xlu0 %v3256
      %v3258 = vpop.xlane.xlu0 %3257
      %v3259 = vmax.f32 %v2924, %v2925
      %3260 = vmax.xlane.f32.xlu0 %v3259
      %v3261 = vpop.xlane.xlu0 %3260
      %v3262 = vmax.f32 %v2926, %v2927
      %3263 = vmax.xlane.f32.xlu0 %v3262
      %v3264 = vpop.xlane.xlu0 %3263
      %v3265 = vmax.f32 %v2928, %v2929
      %3266 = vmax.xlane.f32.xlu0 %v3265
      %v3267 = vpop.xlane.xlu0 %3266
      %v3268 = vmax.f32 %v2930, %v2931
      %3269 = vmax.xlane.f32.xlu0 %v3268
      %v3270 = vpop.xlane.xlu0 %3269
      %v3271 = vmax.f32 %v2932, %v2933
      %3272 = vmax.xlane.f32.xlu0 %v3271
      %v3273 = vpop.xlane.xlu0 %3272
      %v3274 = vmax.f32 %v2934, %v2935
      %3275 = vmax.xlane.f32.xlu0 %v3274
      %v3276 = vpop.xlane.xlu0 %3275
      %v3277 = vmax.f32 %v2936, %v2937
      %3278 = vmax.xlane.f32.xlu0 %v3277
      %v3279 = vpop.xlane.xlu0 %3278
      %v3280 = vmax.f32 %v2938, %v2939
      %3281 = vmax.xlane.f32.xlu0 %v3280
      %v3282 = vpop.xlane.xlu0 %3281
      %v3283 = vmax.f32 %v2940, %v2941
      %3284 = vmax.xlane.f32.xlu0 %v3283
      %v3285 = vpop.xlane.xlu0 %3284
      %v3286 = vmax.f32 %v2942, %v2943
      %3287 = vmax.xlane.f32.xlu0 %v3286
      %v3288 = vpop.xlane.xlu0 %3287
      %v3289 = vmax.f32 %v2944, %v2945
      %3290 = vmax.xlane.f32.xlu0 %v3289
      %v3291 = vpop.xlane.xlu0 %3290
      %v3292 = vmax.f32 %v2946, %v2947
      %3293 = vmax.xlane.f32.xlu0 %v3292
      %v3294 = vpop.xlane.xlu0 %3293
      %v3295 = vmax.f32 %v2948, %v2949
      %3296 = vmax.xlane.f32.xlu0 %v3295
      %v3297 = vpop.xlane.xlu0 %3296
      %v3298 = vmax.f32 %v2950, %v2951
      %3299 = vmax.xlane.f32.xlu0 %v3298
      %v3300 = vpop.xlane.xlu0 %3299
      %v3301 = vmax.f32 %v2952, %v2953
      %3302 = vmax.xlane.f32.xlu0 %v3301
      %v3303 = vpop.xlane.xlu0 %3302
      %v3304 = vmax.f32 %v2954, %v2955
      %3305 = vmax.xlane.f32.xlu0 %v3304
      %v3306 = vpop.xlane.xlu0 %3305
      %v3307 = vmax.f32 %v2956, %v2957
      %3308 = vmax.xlane.f32.xlu0 %v3307
      %v3309 = vpop.xlane.xlu0 %3308
      %v3310 = vmax.f32 %v2958, %v2959
      %3311 = vmax.xlane.f32.xlu0 %v3310
      %v3312 = vpop.xlane.xlu0 %3311
      %v3313 = vmax.f32 %v2960, %v2961
      %3314 = vmax.xlane.f32.xlu0 %v3313
      %v3315 = vpop.xlane.xlu0 %3314
      %v3316 = vmax.f32 %v2962, %v2963
      %3317 = vmax.xlane.f32.xlu0 %v3316
      %v3318 = vpop.xlane.xlu0 %3317
      %v3319 = vmax.f32 %v2964, %v2965
      %3320 = vmax.xlane.f32.xlu0 %v3319
      %v3321 = vpop.xlane.xlu0 %3320
      %v3322 = vmax.f32 %v2966, %v2967
      %3323 = vmax.xlane.f32.xlu0 %v3322
      %v3324 = vpop.xlane.xlu0 %3323
      %v3325 = vmax.f32 %v2968, %v2969
      %3326 = vmax.xlane.f32.xlu0 %v3325
      %v3327 = vpop.xlane.xlu0 %3326
      %v3328 = vmax.f32 %v2970, %v2971
      %3329 = vmax.xlane.f32.xlu0 %v3328
      %v3330 = vpop.xlane.xlu0 %3329
      %v3331 = vmax.f32 %v2972, %v2973
      %3332 = vmax.xlane.f32.xlu0 %v3331
      %v3333 = vpop.xlane.xlu0 %3332
      %v3334 = vmax.f32 %v2974, %v2975
      %3335 = vmax.xlane.f32.xlu0 %v3334
      %v3336 = vpop.xlane.xlu0 %3335
      %v3337 = vmax.f32 %v2976, %v2977
      %3338 = vmax.xlane.f32.xlu0 %v3337
      %v3339 = vpop.xlane.xlu0 %3338
      %v3340 = vmax.f32 %v2978, %v2979
      %3341 = vmax.xlane.f32.xlu0 %v3340
      %v3342 = vpop.xlane.xlu0 %3341
      %v3343 = vmax.f32 %v2980, %v2981
      %3344 = vmax.xlane.f32.xlu0 %v3343
      %v3345 = vpop.xlane.xlu0 %3344
      %v3346 = vmax.f32 %v2982, %v2983
      %3347 = vmax.xlane.f32.xlu0 %v3346
      %v3348 = vpop.xlane.xlu0 %3347
      %v3349 = vmax.f32 %v2984, %v2985
      %3350 = vmax.xlane.f32.xlu0 %v3349
      %v3351 = vpop.xlane.xlu0 %3350
      %v3352 = vmax.f32 %v2986, %v2987
      %3353 = vmax.xlane.f32.xlu0 %v3352
      %v3354 = vpop.xlane.xlu0 %3353
      %v3355 = vmax.f32 %v2988, %v2989
      %3356 = vmax.xlane.f32.xlu0 %v3355
      %v3357 = vpop.xlane.xlu0 %3356
      %v3358 = vmax.f32 %v2990, %v2991
      %3359 = vmax.xlane.f32.xlu0 %v3358
      %v3360 = vpop.xlane.xlu0 %3359
      %v3361 = vmax.f32 %v2992, %v2993
      %3362 = vmax.xlane.f32.xlu0 %v3361
      %v3363 = vpop.xlane.xlu0 %3362
      %v3364 = vmax.f32 %v2994, %v2995
      %3365 = vmax.xlane.f32.xlu0 %v3364
      %v3366 = vpop.xlane.xlu0 %3365
      %v3367 = vmax.f32 %v2996, %v2997
      %3368 = vmax.xlane.f32.xlu0 %v3367
      %v3369 = vpop.xlane.xlu0 %3368
      %v3370 = vmax.f32 %v2998, %v2999
      %3371 = vmax.xlane.f32.xlu0 %v3370
      %v3372 = vpop.xlane.xlu0 %3371
      %v3373 = vmax.f32 %v3000, %v3001
      %3374 = vmax.xlane.f32.xlu0 %v3373
      %v3375 = vpop.xlane.xlu0 %3374
      %v3376 = vmax.f32 %v3002, %v3003
      %3377 = vmax.xlane.f32.xlu0 %v3376
      %v3378 = vpop.xlane.xlu0 %3377
      %v3379 = vmax.f32 %v3004, %v3005
      %3380 = vmax.xlane.f32.xlu0 %v3379
      %v3381 = vpop.xlane.xlu0 %3380
      %v3382 = vmax.f32 %v3006, %v3007
      %3383 = vmax.xlane.f32.xlu0 %v3382
      %v3384 = vpop.xlane.xlu0 %3383
      %v3385 = vmax.f32 %v3008, %v3009
      %3386 = vmax.xlane.f32.xlu0 %v3385
      %v3387 = vpop.xlane.xlu0 %3386
      %v3388 = vmax.f32 %v3010, %v3011
      %3389 = vmax.xlane.f32.xlu0 %v3388
      %v3390 = vpop.xlane.xlu0 %3389
      %v3391 = vmax.f32 %v3012, %v3013
      %3392 = vmax.xlane.f32.xlu0 %v3391
      %v3393 = vpop.xlane.xlu0 %3392
      %v3394 = vmax.f32 %v3014, %v3015
      %3395 = vmax.xlane.f32.xlu0 %v3394
      %v3396 = vpop.xlane.xlu0 %3395
      %v3397 = vmax.f32 %v3016, %v3017
      %3398 = vmax.xlane.f32.xlu0 %v3397
      %v3399 = vpop.xlane.xlu0 %3398
      %v3400 = vmax.f32 %v3018, %v3019
      %3401 = vmax.xlane.f32.xlu0 %v3400
      %v3402 = vpop.xlane.xlu0 %3401
      %v3403 = vmax.f32 %v3020, %v3021
      %3404 = vmax.xlane.f32.xlu0 %v3403
      %v3405 = vpop.xlane.xlu0 %3404
      %p3406 = scmp.eq.s32.totalorder %s23, 0
      // Predicated region
      $region49: #{tpu_custom_call.1} parent=47 // pred_check
        %p3407 = pneg %p3406
      $region50: #{tpu_custom_call.1} parent=47 // pred_check_branch
        %3409 = sbr.rel (%p3407) target = $region52
      $region51: #{tpu_custom_call.1} parent=47 // pred_region
        %vm3410 = vcmask 7168
        %3411 = vst.msk [vmem:[%s306] sm:$0xff] %vm3410, -inf
        %3412 = vst.msk [vmem:[%s306 + $0x8] sm:$0xff] %vm3410, -inf
        %3413 = vst.msk [vmem:[%s306 + $0x10] sm:$0xff] %vm3410, -inf
        %3414 = vst.msk [vmem:[%s306 + $0x18] sm:$0xff] %vm3410, -inf
        %3415 = vst.msk [vmem:[%s306 + $0x20] sm:$0xff] %vm3410, -inf
        %3416 = vst.msk [vmem:[%s306 + $0x28] sm:$0xff] %vm3410, -inf
        %3417 = vst.msk [vmem:[%s306 + $0x30] sm:$0xff] %vm3410, -inf
        %3418 = vst.msk [vmem:[%s306 + $0x38] sm:$0xff] %vm3410, -inf
        %3419 = vst.msk [vmem:[%s306 + $0x40] sm:$0xff] %vm3410, -inf
        %3420 = vst.msk [vmem:[%s306 + $0x48] sm:$0xff] %vm3410, -inf
        %3421 = vst.msk [vmem:[%s306 + $0x50] sm:$0xff] %vm3410, -inf
        %3422 = vst.msk [vmem:[%s306 + $0x58] sm:$0xff] %vm3410, -inf
        %3423 = vst.msk [vmem:[%s306 + $0x60] sm:$0xff] %vm3410, -inf
        %3424 = vst.msk [vmem:[%s306 + $0x68] sm:$0xff] %vm3410, -inf
        %3425 = vst.msk [vmem:[%s306 + $0x70] sm:$0xff] %vm3410, -inf
        %3426 = vst.msk [vmem:[%s306 + $0x78] sm:$0xff] %vm3410, -inf
        %3427 = vst.msk [vmem:[%s306 + $0x80] sm:$0xff] %vm3410, -inf
        %3428 = vst.msk [vmem:[%s306 + $0x88] sm:$0xff] %vm3410, -inf
        %3429 = vst.msk [vmem:[%s306 + $0x90] sm:$0xff] %vm3410, -inf
        %3430 = vst.msk [vmem:[%s306 + $0x98] sm:$0xff] %vm3410, -inf
        %3431 = vst.msk [vmem:[%s306 + $0xa0] sm:$0xff] %vm3410, -inf
        %3432 = vst.msk [vmem:[%s306 + $0xa8] sm:$0xff] %vm3410, -inf
        %3433 = vst.msk [vmem:[%s306 + $0xb0] sm:$0xff] %vm3410, -inf
        %3434 = vst.msk [vmem:[%s306 + $0xb8] sm:$0xff] %vm3410, -inf
        %3435 = vst.msk [vmem:[%s306 + $0xc0] sm:$0xff] %vm3410, -inf
        %3436 = vst.msk [vmem:[%s306 + $0xc8] sm:$0xff] %vm3410, -inf
        %3437 = vst.msk [vmem:[%s306 + $0xd0] sm:$0xff] %vm3410, -inf
        %3438 = vst.msk [vmem:[%s306 + $0xd8] sm:$0xff] %vm3410, -inf
        %3439 = vst.msk [vmem:[%s306 + $0xe0] sm:$0xff] %vm3410, -inf
        %3440 = vst.msk [vmem:[%s306 + $0xe8] sm:$0xff] %vm3410, -inf
        %3441 = vst.msk [vmem:[%s306 + $0xf0] sm:$0xff] %vm3410, -inf
        %3442 = vst.msk [vmem:[%s306 + $0xf8] sm:$0xff] %vm3410, -inf
        %3443 = vst.msk [vmem:[%s306 + $0x100] sm:$0xff] %vm3410, -inf
        %3444 = vst.msk [vmem:[%s306 + $0x108] sm:$0xff] %vm3410, -inf
        %3445 = vst.msk [vmem:[%s306 + $0x110] sm:$0xff] %vm3410, -inf
        %3446 = vst.msk [vmem:[%s306 + $0x118] sm:$0xff] %vm3410, -inf
        %3447 = vst.msk [vmem:[%s306 + $0x120] sm:$0xff] %vm3410, -inf
        %3448 = vst.msk [vmem:[%s306 + $0x128] sm:$0xff] %vm3410, -inf
        %3449 = vst.msk [vmem:[%s306 + $0x130] sm:$0xff] %vm3410, -inf
        %3450 = vst.msk [vmem:[%s306 + $0x138] sm:$0xff] %vm3410, -inf
        %3451 = vst.msk [vmem:[%s306 + $0x140] sm:$0xff] %vm3410, -inf
        %3452 = vst.msk [vmem:[%s306 + $0x148] sm:$0xff] %vm3410, -inf
        %3453 = vst.msk [vmem:[%s306 + $0x150] sm:$0xff] %vm3410, -inf
        %3454 = vst.msk [vmem:[%s306 + $0x158] sm:$0xff] %vm3410, -inf
        %3455 = vst.msk [vmem:[%s306 + $0x160] sm:$0xff] %vm3410, -inf
        %3456 = vst.msk [vmem:[%s306 + $0x168] sm:$0xff] %vm3410, -inf
        %3457 = vst.msk [vmem:[%s306 + $0x170] sm:$0xff] %vm3410, -inf
        %3458 = vst.msk [vmem:[%s306 + $0x178] sm:$0xff] %vm3410, -inf
        %3459 = vst.msk [vmem:[%s306 + $0x180] sm:$0xff] %vm3410, -inf
        %3460 = vst.msk [vmem:[%s306 + $0x188] sm:$0xff] %vm3410, -inf
        %3461 = vst.msk [vmem:[%s306 + $0x190] sm:$0xff] %vm3410, -inf
        %3462 = vst.msk [vmem:[%s306 + $0x198] sm:$0xff] %vm3410, -inf
        %3463 = vst.msk [vmem:[%s306 + $0x1a0] sm:$0xff] %vm3410, -inf
        %3464 = vst.msk [vmem:[%s306 + $0x1a8] sm:$0xff] %vm3410, -inf
        %3465 = vst.msk [vmem:[%s306 + $0x1b0] sm:$0xff] %vm3410, -inf
        %3466 = vst.msk [vmem:[%s306 + $0x1b8] sm:$0xff] %vm3410, -inf
        %3467 = vst.msk [vmem:[%s306 + $0x1c0] sm:$0xff] %vm3410, -inf
        %3468 = vst.msk [vmem:[%s306 + $0x1c8] sm:$0xff] %vm3410, -inf
        %3469 = vst.msk [vmem:[%s306 + $0x1d0] sm:$0xff] %vm3410, -inf
        %3470 = vst.msk [vmem:[%s306 + $0x1d8] sm:$0xff] %vm3410, -inf
        %3471 = vst.msk [vmem:[%s306 + $0x1e0] sm:$0xff] %vm3410, -inf
        %3472 = vst.msk [vmem:[%s306 + $0x1e8] sm:$0xff] %vm3410, -inf
        %3473 = vst.msk [vmem:[%s306 + $0x1f0] sm:$0xff] %vm3410, -inf
        %3474 = vst.msk [vmem:[%s306 + $0x1f8] sm:$0xff] %vm3410, -inf
        %3475 = vst.msk [vmem:[%s306 + $0x200] sm:$0xff] %vm3410, -inf
        %3476 = vst.msk [vmem:[%s306 + $0x208] sm:$0xff] %vm3410, -inf
        %3477 = vst.msk [vmem:[%s306 + $0x210] sm:$0xff] %vm3410, -inf
        %3478 = vst.msk [vmem:[%s306 + $0x218] sm:$0xff] %vm3410, -inf
        %3479 = vst.msk [vmem:[%s306 + $0x220] sm:$0xff] %vm3410, -inf
        %3480 = vst.msk [vmem:[%s306 + $0x228] sm:$0xff] %vm3410, -inf
        %3481 = vst.msk [vmem:[%s306 + $0x230] sm:$0xff] %vm3410, -inf
        %3482 = vst.msk [vmem:[%s306 + $0x238] sm:$0xff] %vm3410, -inf
        %3483 = vst.msk [vmem:[%s306 + $0x240] sm:$0xff] %vm3410, -inf
        %3484 = vst.msk [vmem:[%s306 + $0x248] sm:$0xff] %vm3410, -inf
        %3485 = vst.msk [vmem:[%s306 + $0x250] sm:$0xff] %vm3410, -inf
        %3486 = vst.msk [vmem:[%s306 + $0x258] sm:$0xff] %vm3410, -inf
        %3487 = vst.msk [vmem:[%s306 + $0x260] sm:$0xff] %vm3410, -inf
        %3488 = vst.msk [vmem:[%s306 + $0x268] sm:$0xff] %vm3410, -inf
        %3489 = vst.msk [vmem:[%s306 + $0x270] sm:$0xff] %vm3410, -inf
        %3490 = vst.msk [vmem:[%s306 + $0x278] sm:$0xff] %vm3410, -inf
        %3491 = vst.msk [vmem:[%s306 + $0x280] sm:$0xff] %vm3410, -inf
        %3492 = vst.msk [vmem:[%s306 + $0x288] sm:$0xff] %vm3410, -inf
        %3493 = vst.msk [vmem:[%s306 + $0x290] sm:$0xff] %vm3410, -inf
        %3494 = vst.msk [vmem:[%s306 + $0x298] sm:$0xff] %vm3410, -inf
        %3495 = vst.msk [vmem:[%s306 + $0x2a0] sm:$0xff] %vm3410, -inf
        %3496 = vst.msk [vmem:[%s306 + $0x2a8] sm:$0xff] %vm3410, -inf
        %3497 = vst.msk [vmem:[%s306 + $0x2b0] sm:$0xff] %vm3410, -inf
        %3498 = vst.msk [vmem:[%s306 + $0x2b8] sm:$0xff] %vm3410, -inf
        %3499 = vst.msk [vmem:[%s306 + $0x2c0] sm:$0xff] %vm3410, -inf
        %3500 = vst.msk [vmem:[%s306 + $0x2c8] sm:$0xff] %vm3410, -inf
        %3501 = vst.msk [vmem:[%s306 + $0x2d0] sm:$0xff] %vm3410, -inf
        %3502 = vst.msk [vmem:[%s306 + $0x2d8] sm:$0xff] %vm3410, -inf
        %3503 = vst.msk [vmem:[%s306 + $0x2e0] sm:$0xff] %vm3410, -inf
        %3504 = vst.msk [vmem:[%s306 + $0x2e8] sm:$0xff] %vm3410, -inf
        %3505 = vst.msk [vmem:[%s306 + $0x2f0] sm:$0xff] %vm3410, -inf
        %3506 = vst.msk [vmem:[%s306 + $0x2f8] sm:$0xff] %vm3410, -inf
        %3507 = vst.msk [vmem:[%s306 + $0x300] sm:$0xff] %vm3410, -inf
        %3508 = vst.msk [vmem:[%s306 + $0x308] sm:$0xff] %vm3410, -inf
        %3509 = vst.msk [vmem:[%s306 + $0x310] sm:$0xff] %vm3410, -inf
        %3510 = vst.msk [vmem:[%s306 + $0x318] sm:$0xff] %vm3410, -inf
        %3511 = vst.msk [vmem:[%s306 + $0x320] sm:$0xff] %vm3410, -inf
        %3512 = vst.msk [vmem:[%s306 + $0x328] sm:$0xff] %vm3410, -inf
        %3513 = vst.msk [vmem:[%s306 + $0x330] sm:$0xff] %vm3410, -inf
        %3514 = vst.msk [vmem:[%s306 + $0x338] sm:$0xff] %vm3410, -inf
        %3515 = vst.msk [vmem:[%s306 + $0x340] sm:$0xff] %vm3410, -inf
        %3516 = vst.msk [vmem:[%s306 + $0x348] sm:$0xff] %vm3410, -inf
        %3517 = vst.msk [vmem:[%s306 + $0x350] sm:$0xff] %vm3410, -inf
        %3518 = vst.msk [vmem:[%s306 + $0x358] sm:$0xff] %vm3410, -inf
        %3519 = vst.msk [vmem:[%s306 + $0x360] sm:$0xff] %vm3410, -inf
        %3520 = vst.msk [vmem:[%s306 + $0x368] sm:$0xff] %vm3410, -inf
        %3521 = vst.msk [vmem:[%s306 + $0x370] sm:$0xff] %vm3410, -inf
        %3522 = vst.msk [vmem:[%s306 + $0x378] sm:$0xff] %vm3410, -inf
        %3523 = vst.msk [vmem:[%s306 + $0x380] sm:$0xff] %vm3410, -inf
        %3524 = vst.msk [vmem:[%s306 + $0x388] sm:$0xff] %vm3410, -inf
        %3525 = vst.msk [vmem:[%s306 + $0x390] sm:$0xff] %vm3410, -inf
        %3526 = vst.msk [vmem:[%s306 + $0x398] sm:$0xff] %vm3410, -inf
        %3527 = vst.msk [vmem:[%s306 + $0x3a0] sm:$0xff] %vm3410, -inf
        %3528 = vst.msk [vmem:[%s306 + $0x3a8] sm:$0xff] %vm3410, -inf
        %3529 = vst.msk [vmem:[%s306 + $0x3b0] sm:$0xff] %vm3410, -inf
        %3530 = vst.msk [vmem:[%s306 + $0x3b8] sm:$0xff] %vm3410, -inf
        %3531 = vst.msk [vmem:[%s306 + $0x3c0] sm:$0xff] %vm3410, -inf
        %3532 = vst.msk [vmem:[%s306 + $0x3c8] sm:$0xff] %vm3410, -inf
        %3533 = vst.msk [vmem:[%s306 + $0x3d0] sm:$0xff] %vm3410, -inf
        %3534 = vst.msk [vmem:[%s306 + $0x3d8] sm:$0xff] %vm3410, -inf
        %3535 = vst.msk [vmem:[%s306 + $0x3e0] sm:$0xff] %vm3410, -inf
        %3536 = vst.msk [vmem:[%s306 + $0x3e8] sm:$0xff] %vm3410, -inf
        %3537 = vst.msk [vmem:[%s306 + $0x3f0] sm:$0xff] %vm3410, -inf
        %3538 = vst.msk [vmem:[%s306 + $0x3f8] sm:$0xff] %vm3410, -inf
      $region52: #{tpu_custom_call.1} parent=47 // pred_fallthru
        _
      %v3539 = vld [vmem:[%s306] sm:$0xff]
      %v3540 = vld [vmem:[%s306 + $0x8] sm:$0xff]
      %v3541 = vld [vmem:[%s306 + $0x10] sm:$0xff]
      %v3542 = vld [vmem:[%s306 + $0x18] sm:$0xff]
      %v3543 = vld [vmem:[%s306 + $0x20] sm:$0xff]
      %v3544 = vld [vmem:[%s306 + $0x28] sm:$0xff]
      %v3545 = vld [vmem:[%s306 + $0x30] sm:$0xff]
      %v3546 = vld [vmem:[%s306 + $0x38] sm:$0xff]
      %v3547 = vld [vmem:[%s306 + $0x40] sm:$0xff]
      %v3548 = vld [vmem:[%s306 + $0x48] sm:$0xff]
      %v3549 = vld [vmem:[%s306 + $0x50] sm:$0xff]
      %v3550 = vld [vmem:[%s306 + $0x58] sm:$0xff]
      %v3551 = vld [vmem:[%s306 + $0x60] sm:$0xff]
      %v3552 = vld [vmem:[%s306 + $0x68] sm:$0xff]
      %v3553 = vld [vmem:[%s306 + $0x70] sm:$0xff]
      %v3554 = vld [vmem:[%s306 + $0x78] sm:$0xff]
      %v3555 = vld [vmem:[%s306 + $0x80] sm:$0xff]
      %v3556 = vld [vmem:[%s306 + $0x88] sm:$0xff]
      %v3557 = vld [vmem:[%s306 + $0x90] sm:$0xff]
      %v3558 = vld [vmem:[%s306 + $0x98] sm:$0xff]
      %v3559 = vld [vmem:[%s306 + $0xa0] sm:$0xff]
      %v3560 = vld [vmem:[%s306 + $0xa8] sm:$0xff]
      %v3561 = vld [vmem:[%s306 + $0xb0] sm:$0xff]
      %v3562 = vld [vmem:[%s306 + $0xb8] sm:$0xff]
      %v3563 = vld [vmem:[%s306 + $0xc0] sm:$0xff]
      %v3564 = vld [vmem:[%s306 + $0xc8] sm:$0xff]
      %v3565 = vld [vmem:[%s306 + $0xd0] sm:$0xff]
      %v3566 = vld [vmem:[%s306 + $0xd8] sm:$0xff]
      %v3567 = vld [vmem:[%s306 + $0xe0] sm:$0xff]
      %v3568 = vld [vmem:[%s306 + $0xe8] sm:$0xff]
      %v3569 = vld [vmem:[%s306 + $0xf0] sm:$0xff]
      %v3570 = vld [vmem:[%s306 + $0xf8] sm:$0xff]
      %v3571 = vld [vmem:[%s306 + $0x100] sm:$0xff]
      %v3572 = vld [vmem:[%s306 + $0x108] sm:$0xff]
      %v3573 = vld [vmem:[%s306 + $0x110] sm:$0xff]
      %v3574 = vld [vmem:[%s306 + $0x118] sm:$0xff]
      %v3575 = vld [vmem:[%s306 + $0x120] sm:$0xff]
      %v3576 = vld [vmem:[%s306 + $0x128] sm:$0xff]
      %v3577 = vld [vmem:[%s306 + $0x130] sm:$0xff]
      %v3578 = vld [vmem:[%s306 + $0x138] sm:$0xff]
      %v3579 = vld [vmem:[%s306 + $0x140] sm:$0xff]
      %v3580 = vld [vmem:[%s306 + $0x148] sm:$0xff]
      %v3581 = vld [vmem:[%s306 + $0x150] sm:$0xff]
      %v3582 = vld [vmem:[%s306 + $0x158] sm:$0xff]
      %v3583 = vld [vmem:[%s306 + $0x160] sm:$0xff]
      %v3584 = vld [vmem:[%s306 + $0x168] sm:$0xff]
      %v3585 = vld [vmem:[%s306 + $0x170] sm:$0xff]
      %v3586 = vld [vmem:[%s306 + $0x178] sm:$0xff]
      %v3587 = vld [vmem:[%s306 + $0x180] sm:$0xff]
      %v3588 = vld [vmem:[%s306 + $0x188] sm:$0xff]
      %v3589 = vld [vmem:[%s306 + $0x190] sm:$0xff]
      %v3590 = vld [vmem:[%s306 + $0x198] sm:$0xff]
      %v3591 = vld [vmem:[%s306 + $0x1a0] sm:$0xff]
      %v3592 = vld [vmem:[%s306 + $0x1a8] sm:$0xff]
      %v3593 = vld [vmem:[%s306 + $0x1b0] sm:$0xff]
      %v3594 = vld [vmem:[%s306 + $0x1b8] sm:$0xff]
      %v3595 = vld [vmem:[%s306 + $0x1c0] sm:$0xff]
      %v3596 = vld [vmem:[%s306 + $0x1c8] sm:$0xff]
      %v3597 = vld [vmem:[%s306 + $0x1d0] sm:$0xff]
      %v3598 = vld [vmem:[%s306 + $0x1d8] sm:$0xff]
      %v3599 = vld [vmem:[%s306 + $0x1e0] sm:$0xff]
      %v3600 = vld [vmem:[%s306 + $0x1e8] sm:$0xff]
      %v3601 = vld [vmem:[%s306 + $0x1f0] sm:$0xff]
      %v3602 = vld [vmem:[%s306 + $0x1f8] sm:$0xff]
      %v3603 = vld [vmem:[%s306 + $0x200] sm:$0xff]
      %v3604 = vld [vmem:[%s306 + $0x208] sm:$0xff]
      %v3605 = vld [vmem:[%s306 + $0x210] sm:$0xff]
      %v3606 = vld [vmem:[%s306 + $0x218] sm:$0xff]
      %v3607 = vld [vmem:[%s306 + $0x220] sm:$0xff]
      %v3608 = vld [vmem:[%s306 + $0x228] sm:$0xff]
      %v3609 = vld [vmem:[%s306 + $0x230] sm:$0xff]
      %v3610 = vld [vmem:[%s306 + $0x238] sm:$0xff]
      %v3611 = vld [vmem:[%s306 + $0x240] sm:$0xff]
      %v3612 = vld [vmem:[%s306 + $0x248] sm:$0xff]
      %v3613 = vld [vmem:[%s306 + $0x250] sm:$0xff]
      %v3614 = vld [vmem:[%s306 + $0x258] sm:$0xff]
      %v3615 = vld [vmem:[%s306 + $0x260] sm:$0xff]
      %v3616 = vld [vmem:[%s306 + $0x268] sm:$0xff]
      %v3617 = vld [vmem:[%s306 + $0x270] sm:$0xff]
      %v3618 = vld [vmem:[%s306 + $0x278] sm:$0xff]
      %v3619 = vld [vmem:[%s306 + $0x280] sm:$0xff]
      %v3620 = vld [vmem:[%s306 + $0x288] sm:$0xff]
      %v3621 = vld [vmem:[%s306 + $0x290] sm:$0xff]
      %v3622 = vld [vmem:[%s306 + $0x298] sm:$0xff]
      %v3623 = vld [vmem:[%s306 + $0x2a0] sm:$0xff]
      %v3624 = vld [vmem:[%s306 + $0x2a8] sm:$0xff]
      %v3625 = vld [vmem:[%s306 + $0x2b0] sm:$0xff]
      %v3626 = vld [vmem:[%s306 + $0x2b8] sm:$0xff]
      %v3627 = vld [vmem:[%s306 + $0x2c0] sm:$0xff]
      %v3628 = vld [vmem:[%s306 + $0x2c8] sm:$0xff]
      %v3629 = vld [vmem:[%s306 + $0x2d0] sm:$0xff]
      %v3630 = vld [vmem:[%s306 + $0x2d8] sm:$0xff]
      %v3631 = vld [vmem:[%s306 + $0x2e0] sm:$0xff]
      %v3632 = vld [vmem:[%s306 + $0x2e8] sm:$0xff]
      %v3633 = vld [vmem:[%s306 + $0x2f0] sm:$0xff]
      %v3634 = vld [vmem:[%s306 + $0x2f8] sm:$0xff]
      %v3635 = vld [vmem:[%s306 + $0x300] sm:$0xff]
      %v3636 = vld [vmem:[%s306 + $0x308] sm:$0xff]
      %v3637 = vld [vmem:[%s306 + $0x310] sm:$0xff]
      %v3638 = vld [vmem:[%s306 + $0x318] sm:$0xff]
      %v3639 = vld [vmem:[%s306 + $0x320] sm:$0xff]
      %v3640 = vld [vmem:[%s306 + $0x328] sm:$0xff]
      %v3641 = vld [vmem:[%s306 + $0x330] sm:$0xff]
      %v3642 = vld [vmem:[%s306 + $0x338] sm:$0xff]
      %v3643 = vld [vmem:[%s306 + $0x340] sm:$0xff]
      %v3644 = vld [vmem:[%s306 + $0x348] sm:$0xff]
      %v3645 = vld [vmem:[%s306 + $0x350] sm:$0xff]
      %v3646 = vld [vmem:[%s306 + $0x358] sm:$0xff]
      %v3647 = vld [vmem:[%s306 + $0x360] sm:$0xff]
      %v3648 = vld [vmem:[%s306 + $0x368] sm:$0xff]
      %v3649 = vld [vmem:[%s306 + $0x370] sm:$0xff]
      %v3650 = vld [vmem:[%s306 + $0x378] sm:$0xff]
      %v3651 = vld [vmem:[%s306 + $0x380] sm:$0xff]
      %v3652 = vld [vmem:[%s306 + $0x388] sm:$0xff]
      %v3653 = vld [vmem:[%s306 + $0x390] sm:$0xff]
      %v3654 = vld [vmem:[%s306 + $0x398] sm:$0xff]
      %v3655 = vld [vmem:[%s306 + $0x3a0] sm:$0xff]
      %v3656 = vld [vmem:[%s306 + $0x3a8] sm:$0xff]
      %v3657 = vld [vmem:[%s306 + $0x3b0] sm:$0xff]
      %v3658 = vld [vmem:[%s306 + $0x3b8] sm:$0xff]
      %v3659 = vld [vmem:[%s306 + $0x3c0] sm:$0xff]
      %v3660 = vld [vmem:[%s306 + $0x3c8] sm:$0xff]
      %v3661 = vld [vmem:[%s306 + $0x3d0] sm:$0xff]
      %v3662 = vld [vmem:[%s306 + $0x3d8] sm:$0xff]
      %v3663 = vld [vmem:[%s306 + $0x3e0] sm:$0xff]
      %v3664 = vld [vmem:[%s306 + $0x3e8] sm:$0xff]
      %v3665 = vld [vmem:[%s306 + $0x3f0] sm:$0xff]
      %v3666 = vld [vmem:[%s306 + $0x3f8] sm:$0xff]
      %v3667 = vmax.f32 %v3539, %v3024
      %v3668 = vmax.f32 %v3540, %v3027
      %v3669 = vmax.f32 %v3541, %v3030
      %v3670 = vmax.f32 %v3542, %v3033
      %v3671 = vmax.f32 %v3543, %v3036
      %v3672 = vmax.f32 %v3544, %v3039
      %v3673 = vmax.f32 %v3545, %v3042
      %v3674 = vmax.f32 %v3546, %v3045
      %v3675 = vmax.f32 %v3547, %v3048
      %v3676 = vmax.f32 %v3548, %v3051
      %v3677 = vmax.f32 %v3549, %v3054
      %v3678 = vmax.f32 %v3550, %v3057
      %v3679 = vmax.f32 %v3551, %v3060
      %v3680 = vmax.f32 %v3552, %v3063
      %v3681 = vmax.f32 %v3553, %v3066
      %v3682 = vmax.f32 %v3554, %v3069
      %v3683 = vmax.f32 %v3555, %v3072
      %v3684 = vmax.f32 %v3556, %v3075
      %v3685 = vmax.f32 %v3557, %v3078
      %v3686 = vmax.f32 %v3558, %v3081
      %v3687 = vmax.f32 %v3559, %v3084
      %v3688 = vmax.f32 %v3560, %v3087
      %v3689 = vmax.f32 %v3561, %v3090
      %v3690 = vmax.f32 %v3562, %v3093
      %v3691 = vmax.f32 %v3563, %v3096
      %v3692 = vmax.f32 %v3564, %v3099
      %v3693 = vmax.f32 %v3565, %v3102
      %v3694 = vmax.f32 %v3566, %v3105
      %v3695 = vmax.f32 %v3567, %v3108
      %v3696 = vmax.f32 %v3568, %v3111
      %v3697 = vmax.f32 %v3569, %v3114
      %v3698 = vmax.f32 %v3570, %v3117
      %v3699 = vmax.f32 %v3571, %v3120
      %v3700 = vmax.f32 %v3572, %v3123
      %v3701 = vmax.f32 %v3573, %v3126
      %v3702 = vmax.f32 %v3574, %v3129
      %v3703 = vmax.f32 %v3575, %v3132
      %v3704 = vmax.f32 %v3576, %v3135
      %v3705 = vmax.f32 %v3577, %v3138
      %v3706 = vmax.f32 %v3578, %v3141
      %v3707 = vmax.f32 %v3579, %v3144
      %v3708 = vmax.f32 %v3580, %v3147
      %v3709 = vmax.f32 %v3581, %v3150
      %v3710 = vmax.f32 %v3582, %v3153
      %v3711 = vmax.f32 %v3583, %v3156
      %v3712 = vmax.f32 %v3584, %v3159
      %v3713 = vmax.f32 %v3585, %v3162
      %v3714 = vmax.f32 %v3586, %v3165
      %v3715 = vmax.f32 %v3587, %v3168
      %v3716 = vmax.f32 %v3588, %v3171
      %v3717 = vmax.f32 %v3589, %v3174
      %v3718 = vmax.f32 %v3590, %v3177
      %v3719 = vmax.f32 %v3591, %v3180
      %v3720 = vmax.f32 %v3592, %v3183
      %v3721 = vmax.f32 %v3593, %v3186
      %v3722 = vmax.f32 %v3594, %v3189
      %v3723 = vmax.f32 %v3595, %v3192
      %v3724 = vmax.f32 %v3596, %v3195
      %v3725 = vmax.f32 %v3597, %v3198
      %v3726 = vmax.f32 %v3598, %v3201
      %v3727 = vmax.f32 %v3599, %v3204
      %v3728 = vmax.f32 %v3600, %v3207
      %v3729 = vmax.f32 %v3601, %v3210
      %v3730 = vmax.f32 %v3602, %v3213
      %v3731 = vmax.f32 %v3603, %v3216
      %v3732 = vmax.f32 %v3604, %v3219
      %v3733 = vmax.f32 %v3605, %v3222
      %v3734 = vmax.f32 %v3606, %v3225
      %v3735 = vmax.f32 %v3607, %v3228
      %v3736 = vmax.f32 %v3608, %v3231
      %v3737 = vmax.f32 %v3609, %v3234
      %v3738 = vmax.f32 %v3610, %v3237
      %v3739 = vmax.f32 %v3611, %v3240
      %v3740 = vmax.f32 %v3612, %v3243
      %v3741 = vmax.f32 %v3613, %v3246
      %v3742 = vmax.f32 %v3614, %v3249
      %v3743 = vmax.f32 %v3615, %v3252
      %v3744 = vmax.f32 %v3616, %v3255
      %v3745 = vmax.f32 %v3617, %v3258
      %v3746 = vmax.f32 %v3618, %v3261
      %v3747 = vmax.f32 %v3619, %v3264
      %v3748 = vmax.f32 %v3620, %v3267
      %v3749 = vmax.f32 %v3621, %v3270
      %v3750 = vmax.f32 %v3622, %v3273
      %v3751 = vmax.f32 %v3623, %v3276
      %v3752 = vmax.f32 %v3624, %v3279
      %v3753 = vmax.f32 %v3625, %v3282
      %v3754 = vmax.f32 %v3626, %v3285
      %v3755 = vmax.f32 %v3627, %v3288
      %v3756 = vmax.f32 %v3628, %v3291
      %v3757 = vmax.f32 %v3629, %v3294
      %v3758 = vmax.f32 %v3630, %v3297
      %v3759 = vmax.f32 %v3631, %v3300
      %v3760 = vmax.f32 %v3632, %v3303
      %v3761 = vmax.f32 %v3633, %v3306
      %v3762 = vmax.f32 %v3634, %v3309
      %v3763 = vmax.f32 %v3635, %v3312
      %v3764 = vmax.f32 %v3636, %v3315
      %v3765 = vmax.f32 %v3637, %v3318
      %v3766 = vmax.f32 %v3638, %v3321
      %v3767 = vmax.f32 %v3639, %v3324
      %v3768 = vmax.f32 %v3640, %v3327
      %v3769 = vmax.f32 %v3641, %v3330
      %v3770 = vmax.f32 %v3642, %v3333
      %v3771 = vmax.f32 %v3643, %v3336
      %v3772 = vmax.f32 %v3644, %v3339
      %v3773 = vmax.f32 %v3645, %v3342
      %v3774 = vmax.f32 %v3646, %v3345
      %v3775 = vmax.f32 %v3647, %v3348
      %v3776 = vmax.f32 %v3648, %v3351
      %v3777 = vmax.f32 %v3649, %v3354
      %v3778 = vmax.f32 %v3650, %v3357
      %v3779 = vmax.f32 %v3651, %v3360
      %v3780 = vmax.f32 %v3652, %v3363
      %v3781 = vmax.f32 %v3653, %v3366
      %v3782 = vmax.f32 %v3654, %v3369
      %v3783 = vmax.f32 %v3655, %v3372
      %v3784 = vmax.f32 %v3656, %v3375
      %v3785 = vmax.f32 %v3657, %v3378
      %v3786 = vmax.f32 %v3658, %v3381
      %v3787 = vmax.f32 %v3659, %v3384
      %v3788 = vmax.f32 %v3660, %v3387
      %v3789 = vmax.f32 %v3661, %v3390
      %v3790 = vmax.f32 %v3662, %v3393
      %v3791 = vmax.f32 %v3663, %v3396
      %v3792 = vmax.f32 %v3664, %v3399
      %v3793 = vmax.f32 %v3665, %v3402
      %v3794 = vmax.f32 %v3666, %v3405
      %vm3795 = vcmask 7168
      %3796 = vst.msk [vmem:[%s306] sm:$0xff] %vm3795, %v3667
      %3797 = vst.msk [vmem:[%s306 + $0x8] sm:$0xff] %vm3795, %v3668
      %3798 = vst.msk [vmem:[%s306 + $0x10] sm:$0xff] %vm3795, %v3669
      %3799 = vst.msk [vmem:[%s306 + $0x18] sm:$0xff] %vm3795, %v3670
      %3800 = vst.msk [vmem:[%s306 + $0x20] sm:$0xff] %vm3795, %v3671
      %3801 = vst.msk [vmem:[%s306 + $0x28] sm:$0xff] %vm3795, %v3672
      %3802 = vst.msk [vmem:[%s306 + $0x30] sm:$0xff] %vm3795, %v3673
      %3803 = vst.msk [vmem:[%s306 + $0x38] sm:$0xff] %vm3795, %v3674
      %3804 = vst.msk [vmem:[%s306 + $0x40] sm:$0xff] %vm3795, %v3675
      %3805 = vst.msk [vmem:[%s306 + $0x48] sm:$0xff] %vm3795, %v3676
      %3806 = vst.msk [vmem:[%s306 + $0x50] sm:$0xff] %vm3795, %v3677
      %3807 = vst.msk [vmem:[%s306 + $0x58] sm:$0xff] %vm3795, %v3678
      %3808 = vst.msk [vmem:[%s306 + $0x60] sm:$0xff] %vm3795, %v3679
      %3809 = vst.msk [vmem:[%s306 + $0x68] sm:$0xff] %vm3795, %v3680
      %3810 = vst.msk [vmem:[%s306 + $0x70] sm:$0xff] %vm3795, %v3681
      %3811 = vst.msk [vmem:[%s306 + $0x78] sm:$0xff] %vm3795, %v3682
      %3812 = vst.msk [vmem:[%s306 + $0x80] sm:$0xff] %vm3795, %v3683
      %3813 = vst.msk [vmem:[%s306 + $0x88] sm:$0xff] %vm3795, %v3684
      %3814 = vst.msk [vmem:[%s306 + $0x90] sm:$0xff] %vm3795, %v3685
      %3815 = vst.msk [vmem:[%s306 + $0x98] sm:$0xff] %vm3795, %v3686
      %3816 = vst.msk [vmem:[%s306 + $0xa0] sm:$0xff] %vm3795, %v3687
      %3817 = vst.msk [vmem:[%s306 + $0xa8] sm:$0xff] %vm3795, %v3688
      %3818 = vst.msk [vmem:[%s306 + $0xb0] sm:$0xff] %vm3795, %v3689
      %3819 = vst.msk [vmem:[%s306 + $0xb8] sm:$0xff] %vm3795, %v3690
      %3820 = vst.msk [vmem:[%s306 + $0xc0] sm:$0xff] %vm3795, %v3691
      %3821 = vst.msk [vmem:[%s306 + $0xc8] sm:$0xff] %vm3795, %v3692
      %3822 = vst.msk [vmem:[%s306 + $0xd0] sm:$0xff] %vm3795, %v3693
      %3823 = vst.msk [vmem:[%s306 + $0xd8] sm:$0xff] %vm3795, %v3694
      %3824 = vst.msk [vmem:[%s306 + $0xe0] sm:$0xff] %vm3795, %v3695
      %3825 = vst.msk [vmem:[%s306 + $0xe8] sm:$0xff] %vm3795, %v3696
      %3826 = vst.msk [vmem:[%s306 + $0xf0] sm:$0xff] %vm3795, %v3697
      %3827 = vst.msk [vmem:[%s306 + $0xf8] sm:$0xff] %vm3795, %v3698
      %3828 = vst.msk [vmem:[%s306 + $0x100] sm:$0xff] %vm3795, %v3699
      %3829 = vst.msk [vmem:[%s306 + $0x108] sm:$0xff] %vm3795, %v3700
      %3830 = vst.msk [vmem:[%s306 + $0x110] sm:$0xff] %vm3795, %v3701
      %3831 = vst.msk [vmem:[%s306 + $0x118] sm:$0xff] %vm3795, %v3702
      %3832 = vst.msk [vmem:[%s306 + $0x120] sm:$0xff] %vm3795, %v3703
      %3833 = vst.msk [vmem:[%s306 + $0x128] sm:$0xff] %vm3795, %v3704
      %3834 = vst.msk [vmem:[%s306 + $0x130] sm:$0xff] %vm3795, %v3705
      %3835 = vst.msk [vmem:[%s306 + $0x138] sm:$0xff] %vm3795, %v3706
      %3836 = vst.msk [vmem:[%s306 + $0x140] sm:$0xff] %vm3795, %v3707
      %3837 = vst.msk [vmem:[%s306 + $0x148] sm:$0xff] %vm3795, %v3708
      %3838 = vst.msk [vmem:[%s306 + $0x150] sm:$0xff] %vm3795, %v3709
      %3839 = vst.msk [vmem:[%s306 + $0x158] sm:$0xff] %vm3795, %v3710
      %3840 = vst.msk [vmem:[%s306 + $0x160] sm:$0xff] %vm3795, %v3711
      %3841 = vst.msk [vmem:[%s306 + $0x168] sm:$0xff] %vm3795, %v3712
      %3842 = vst.msk [vmem:[%s306 + $0x170] sm:$0xff] %vm3795, %v3713
      %3843 = vst.msk [vmem:[%s306 + $0x178] sm:$0xff] %vm3795, %v3714
      %3844 = vst.msk [vmem:[%s306 + $0x180] sm:$0xff] %vm3795, %v3715
      %3845 = vst.msk [vmem:[%s306 + $0x188] sm:$0xff] %vm3795, %v3716
      %3846 = vst.msk [vmem:[%s306 + $0x190] sm:$0xff] %vm3795, %v3717
      %3847 = vst.msk [vmem:[%s306 + $0x198] sm:$0xff] %vm3795, %v3718
      %3848 = vst.msk [vmem:[%s306 + $0x1a0] sm:$0xff] %vm3795, %v3719
      %3849 = vst.msk [vmem:[%s306 + $0x1a8] sm:$0xff] %vm3795, %v3720
      %3850 = vst.msk [vmem:[%s306 + $0x1b0] sm:$0xff] %vm3795, %v3721
      %3851 = vst.msk [vmem:[%s306 + $0x1b8] sm:$0xff] %vm3795, %v3722
      %3852 = vst.msk [vmem:[%s306 + $0x1c0] sm:$0xff] %vm3795, %v3723
      %3853 = vst.msk [vmem:[%s306 + $0x1c8] sm:$0xff] %vm3795, %v3724
      %3854 = vst.msk [vmem:[%s306 + $0x1d0] sm:$0xff] %vm3795, %v3725
      %3855 = vst.msk [vmem:[%s306 + $0x1d8] sm:$0xff] %vm3795, %v3726
      %3856 = vst.msk [vmem:[%s306 + $0x1e0] sm:$0xff] %vm3795, %v3727
      %3857 = vst.msk [vmem:[%s306 + $0x1e8] sm:$0xff] %vm3795, %v3728
      %3858 = vst.msk [vmem:[%s306 + $0x1f0] sm:$0xff] %vm3795, %v3729
      %3859 = vst.msk [vmem:[%s306 + $0x1f8] sm:$0xff] %vm3795, %v3730
      %3860 = vst.msk [vmem:[%s306 + $0x200] sm:$0xff] %vm3795, %v3731
      %3861 = vst.msk [vmem:[%s306 + $0x208] sm:$0xff] %vm3795, %v3732
      %3862 = vst.msk [vmem:[%s306 + $0x210] sm:$0xff] %vm3795, %v3733
      %3863 = vst.msk [vmem:[%s306 + $0x218] sm:$0xff] %vm3795, %v3734
      %3864 = vst.msk [vmem:[%s306 + $0x220] sm:$0xff] %vm3795, %v3735
      %3865 = vst.msk [vmem:[%s306 + $0x228] sm:$0xff] %vm3795, %v3736
      %3866 = vst.msk [vmem:[%s306 + $0x230] sm:$0xff] %vm3795, %v3737
      %3867 = vst.msk [vmem:[%s306 + $0x238] sm:$0xff] %vm3795, %v3738
      %3868 = vst.msk [vmem:[%s306 + $0x240] sm:$0xff] %vm3795, %v3739
      %3869 = vst.msk [vmem:[%s306 + $0x248] sm:$0xff] %vm3795, %v3740
      %3870 = vst.msk [vmem:[%s306 + $0x250] sm:$0xff] %vm3795, %v3741
      %3871 = vst.msk [vmem:[%s306 + $0x258] sm:$0xff] %vm3795, %v3742
      %3872 = vst.msk [vmem:[%s306 + $0x260] sm:$0xff] %vm3795, %v3743
      %3873 = vst.msk [vmem:[%s306 + $0x268] sm:$0xff] %vm3795, %v3744
      %3874 = vst.msk [vmem:[%s306 + $0x270] sm:$0xff] %vm3795, %v3745
      %3875 = vst.msk [vmem:[%s306 + $0x278] sm:$0xff] %vm3795, %v3746
      %3876 = vst.msk [vmem:[%s306 + $0x280] sm:$0xff] %vm3795, %v3747
      %3877 = vst.msk [vmem:[%s306 + $0x288] sm:$0xff] %vm3795, %v3748
      %3878 = vst.msk [vmem:[%s306 + $0x290] sm:$0xff] %vm3795, %v3749
      %3879 = vst.msk [vmem:[%s306 + $0x298] sm:$0xff] %vm3795, %v3750
      %3880 = vst.msk [vmem:[%s306 + $0x2a0] sm:$0xff] %vm3795, %v3751
      %3881 = vst.msk [vmem:[%s306 + $0x2a8] sm:$0xff] %vm3795, %v3752
      %3882 = vst.msk [vmem:[%s306 + $0x2b0] sm:$0xff] %vm3795, %v3753
      %3883 = vst.msk [vmem:[%s306 + $0x2b8] sm:$0xff] %vm3795, %v3754
      %3884 = vst.msk [vmem:[%s306 + $0x2c0] sm:$0xff] %vm3795, %v3755
      %3885 = vst.msk [vmem:[%s306 + $0x2c8] sm:$0xff] %vm3795, %v3756
      %3886 = vst.msk [vmem:[%s306 + $0x2d0] sm:$0xff] %vm3795, %v3757
      %3887 = vst.msk [vmem:[%s306 + $0x2d8] sm:$0xff] %vm3795, %v3758
      %3888 = vst.msk [vmem:[%s306 + $0x2e0] sm:$0xff] %vm3795, %v3759
      %3889 = vst.msk [vmem:[%s306 + $0x2e8] sm:$0xff] %vm3795, %v3760
      %3890 = vst.msk [vmem:[%s306 + $0x2f0] sm:$0xff] %vm3795, %v3761
      %3891 = vst.msk [vmem:[%s306 + $0x2f8] sm:$0xff] %vm3795, %v3762
      %3892 = vst.msk [vmem:[%s306 + $0x300] sm:$0xff] %vm3795, %v3763
      %3893 = vst.msk [vmem:[%s306 + $0x308] sm:$0xff] %vm3795, %v3764
      %3894 = vst.msk [vmem:[%s306 + $0x310] sm:$0xff] %vm3795, %v3765
      %3895 = vst.msk [vmem:[%s306 + $0x318] sm:$0xff] %vm3795, %v3766
      %3896 = vst.msk [vmem:[%s306 + $0x320] sm:$0xff] %vm3795, %v3767
      %3897 = vst.msk [vmem:[%s306 + $0x328] sm:$0xff] %vm3795, %v3768
      %3898 = vst.msk [vmem:[%s306 + $0x330] sm:$0xff] %vm3795, %v3769
      %3899 = vst.msk [vmem:[%s306 + $0x338] sm:$0xff] %vm3795, %v3770
      %3900 = vst.msk [vmem:[%s306 + $0x340] sm:$0xff] %vm3795, %v3771
      %3901 = vst.msk [vmem:[%s306 + $0x348] sm:$0xff] %vm3795, %v3772
      %3902 = vst.msk [vmem:[%s306 + $0x350] sm:$0xff] %vm3795, %v3773
      %3903 = vst.msk [vmem:[%s306 + $0x358] sm:$0xff] %vm3795, %v3774
      %3904 = vst.msk [vmem:[%s306 + $0x360] sm:$0xff] %vm3795, %v3775
      %3905 = vst.msk [vmem:[%s306 + $0x368] sm:$0xff] %vm3795, %v3776
      %3906 = vst.msk [vmem:[%s306 + $0x370] sm:$0xff] %vm3795, %v3777
      %3907 = vst.msk [vmem:[%s306 + $0x378] sm:$0xff] %vm3795, %v3778
      %3908 = vst.msk [vmem:[%s306 + $0x380] sm:$0xff] %vm3795, %v3779
      %3909 = vst.msk [vmem:[%s306 + $0x388] sm:$0xff] %vm3795, %v3780
      %3910 = vst.msk [vmem:[%s306 + $0x390] sm:$0xff] %vm3795, %v3781
      %3911 = vst.msk [vmem:[%s306 + $0x398] sm:$0xff] %vm3795, %v3782
      %3912 = vst.msk [vmem:[%s306 + $0x3a0] sm:$0xff] %vm3795, %v3783
      %3913 = vst.msk [vmem:[%s306 + $0x3a8] sm:$0xff] %vm3795, %v3784
      %3914 = vst.msk [vmem:[%s306 + $0x3b0] sm:$0xff] %vm3795, %v3785
      %3915 = vst.msk [vmem:[%s306 + $0x3b8] sm:$0xff] %vm3795, %v3786
      %3916 = vst.msk [vmem:[%s306 + $0x3c0] sm:$0xff] %vm3795, %v3787
      %3917 = vst.msk [vmem:[%s306 + $0x3c8] sm:$0xff] %vm3795, %v3788
      %3918 = vst.msk [vmem:[%s306 + $0x3d0] sm:$0xff] %vm3795, %v3789
      %3919 = vst.msk [vmem:[%s306 + $0x3d8] sm:$0xff] %vm3795, %v3790
      %3920 = vst.msk [vmem:[%s306 + $0x3e0] sm:$0xff] %vm3795, %v3791
      %3921 = vst.msk [vmem:[%s306 + $0x3e8] sm:$0xff] %vm3795, %v3792
      %3922 = vst.msk [vmem:[%s306 + $0x3f0] sm:$0xff] %vm3795, %v3793
      %3923 = vst.msk [vmem:[%s306 + $0x3f8] sm:$0xff] %vm3795, %v3794
      %p3924 = scmp.lt.s32.totalorder %s22, 1
      %s3925 = scalar_select %p3924, %s22, 1
      %s3926 = smul.addr %s3925, 128
      %s3927 = smul.addr %s3926, 8
      %s3928 = scalar_lea.vmem %s7, %s3927
      // Predicated region
      $region53: #{tpu_custom_call.1} parent=47 // pred_check
        %p3929 = pneg %p202
      $region54: #{tpu_custom_call.1} parent=47 // pred_check_branch
        %3931 = sbr.rel (%p3929) target = $region56
      $region55: #{tpu_custom_call.1} parent=47 // pred_region
        _
      $region56: #{tpu_custom_call.1} parent=47 // pred_fallthru
        _
    $region48: #{tpu_custom_call.1} parent=5 // pred_fallthru
      _
    %p3932 = scmp.le.s32.totalorder 2, %s13
    // Predicated region
    $region57: #{tpu_custom_call.1} parent=5 // pred_check
      %p3933 = pneg %p3932
    $region58: #{tpu_custom_call.1} parent=5 // pred_check_branch
      %3935 = sbr.rel (%p3933) target = $region60
    $region59: #{tpu_custom_call.1} parent=5 // pred_region
      %s3936 = ssub.s32 %s13, 2
      // Predicated region
      $region61: #{tpu_custom_call.1} parent=59 // pred_check
        %p3937 = pneg %p208
      $region62: #{tpu_custom_call.1} parent=59 // pred_check_branch
        %3939 = sbr.rel (%p3937) target = $region64
      $region63: #{tpu_custom_call.1} parent=59 // pred_region
        %p3940 = scmp.lt.s32.totalorder %s24, 1
        %s3941 = scalar_select %p3940, %s24, 1
        %s3942 = smul.addr %s3941, 128
        %s3943 = smul.addr %s3942, 8
        %s3944 = scalar_lea.vmem %s7, %s3943
      $region64: #{tpu_custom_call.1} parent=59 // pred_fallthru
        _
    $region60: #{tpu_custom_call.1} parent=5 // pred_fallthru
      _
  $region6: #{tpu_custom_call.1} parent=0 // loop_footer
    %s17 = sadd.s32 1, %s13
  $region7: #{tpu_custom_call.1} parent=0 // loop_footer_branch
    %12 = sbr.rel target = $region3
  $region8: #{tpu_custom_call.1} parent=0 // loop_exit
    _

</llo_original>
